<compile_context>
chip_gen: v6e
topology: v6e:2x2x1
jax: 0.10.0
libtpu: 0.0.40
codegen_flags: <defaults>
</compile_context>

<pallas_src>
import functools

import jax
import jax.numpy as jnp
from jax.experimental import pallas as pl
from jax.experimental.pallas import tpu as pltpu

# ---------------- model hyperparameters (small, deterministic) ----------------
NUM_CLASSES = 16
EMB_DIM = 32
HIDDEN_DIM = 32
NUM_LAYERS = 2
SEQ_LEN = 8
BATCH = 4


def _round_up(x, m):
    return ((x + m - 1) // m) * m


# ---------------------------- fused Pallas kernel -------------------------------
def _fused_rnn_kernel(tokens_ref, w_emb_ih0_ref, b0_ref, w_hh0_ref, *refs,
                      num_layers, seq_len, batch, hidden):
    """Embedding -> wavefront-interleaved LSTM layers -> fused Linear head.

    Fully VMEM resident, no grid.
    """
    S, B, H, L = seq_len, batch, hidden, num_layers
    SB = S * B

    upper_refs = refs[:2 * (L - 1)]                    # (w_cat_l, b_l) for l = 1..L-1
    (h0_ref, c0_ref, wout_ref, bout_ref,
     logits_ref, hN_ref, cN_ref, gx_ref) = refs[2 * (L - 1):]

    # ---- embedding folded into layer-0 input projection (one-hot MXU gather) ----
    # TODO(synk): tokens outside [0, NUM_CLASSES) silently map to a zero row here,
    # whereas PyTorch nn.Embedding would raise.
    num_classes = w_emb_ih0_ref.shape[0]
    tok = tokens_ref[...]                                              # (SB, 1) int32
    cls = jax.lax.broadcasted_iota(jnp.int32, (SB, num_classes), 1)    # (SB, C)
    onehot = (tok == cls).astype(jnp.float32)                          # (SB, C)
    gx_ref[...] = jnp.dot(onehot, w_emb_ih0_ref[...],
                          preferred_element_type=jnp.float32) + b0_ref[...]   # (SB, 4H)

    def _row(t):
        r = t * B
        if isinstance(t, int):
            return r
        return pl.multiple_of(r, B)

    def lstm_update(gates, c_old):
        sig = jax.nn.sigmoid(gates)     # one full-vreg EUP pass over (B, 4H)
        th = jnp.tanh(gates)            # one full-vreg EUP pass over (B, 4H)
        i_g = sig[:, 0 * H:1 * H]
        f_g = sig[:, 1 * H:2 * H]
        g_g = th[:, 2 * H:3 * H]
        o_g = sig[:, 3 * H:4 * H]
        c_new = f_g * c_old + i_g * g_g
        h_new = o_g * jnp.tanh(c_new)
        return h_new, c_new

    def layer0_step(t, h, c):
        # hoisted input projection is read back from gx; only h @ W_hh is serial
        gates = gx_ref[pl.ds(_row(t), B), :] + jnp.dot(
            h, w_hh0_ref[...], preferred_element_type=jnp.float32)     # (B, 4H)
        return lstm_update(gates, c)

    def layerl_step(l, x_in, h, c):
        w_cat = upper_refs[2 * (l - 1)][...]        # (2H, 4H) == [W_ih_l; W_hh_l]^T
        b = upper_refs[2 * (l - 1) + 1][...]        # (1, 4H)
        xh = jnp.concatenate([x_in, h], axis=1)     # (B, 2H): single K=2H MXU push
        gates = jnp.dot(xh, w_cat, preferred_element_type=jnp.float32) + b
        return lstm_update(gates, c)

    def head_store(t_top, h_top):
        # fused output Linear: one full-lane (B, 128) store per step
        logits_ref[pl.ds(_row(t_top), B), :] = (
            jnp.dot(h_top, wout_ref[...], preferred_element_type=jnp.float32)
            + bout_ref[...])

    def wave(t, carry, active):
        hs, cs = list(carry[0]), list(carry[1])
        hs_old, cs_old = list(hs), list(cs)       # snapshot: all layers read pre-update state
        for l in active:
            if l == 0:
                h_new, c_new = layer0_step(t, hs_old[0], cs_old[0])
            else:
                h_new, c_new = layerl_step(l, hs_old[l - 1], hs_old[l], cs_old[l])
            hs[l], cs[l] = h_new, c_new
            if l == L - 1:
                head_store(t - (L - 1), h_new)
        return (tuple(hs), tuple(cs))

    carry = (tuple(h0_ref[l] for l in range(L)),
             tuple(c0_ref[l] for l in range(L)))

    # ramp-up: waves t = 0 .. L-2 (only the first t+1 layers are live)
    for t in range(L - 1):
        carry = wave(t, carry, [l for l in range(L) if l <= t <= l + S - 1])

    # steady state: all layers live each wave step
    carry = jax.lax.fori_loop(
        L - 1, S, lambda t, c: wave(t, c, tuple(range(L))), carry, unroll=True)

    # ramp-down: waves t = S .. S+L-2 (only the trailing layers are live)
    for t in range(S, S + L - 1):
        carry = wave(t, carry, [l for l in range(L) if l <= t <= l + S - 1])

    hs, cs = carry
    for l in range(L):
        hN_ref[l] = hs[l]
        cN_ref[l] = cs[l]


# -------------------- one-time parameter prep (host-side, not per call) ----------
def prepare_params(params):
    """Fold embedding into layer-0 W_ih, concat upper-layer weights, pad output head."""
    H, L, C = HIDDEN_DIM, NUM_LAYERS, NUM_CLASSES
    Cp = _round_up(C, 128)
    prep = {
        "w_emb_ih0": params["emb"] @ params["w_ih_t"][0],       # (C, 4H)
        "b0": params["b"][0],                                   # (1, 4H)
        "w_hh0": params["w_hh_t"][0],                           # (H, 4H)
        "upper": [],                                            # per l>=1: (2H,4H), (1,4H)
        "wout_p": jnp.pad(params["w_out_t"], ((0, 0), (0, Cp - C))),
        "bout_p": jnp.pad(params["b_out"], ((0, 0), (0, Cp - C))),
    }
    for l in range(1, L):
        w_cat = jnp.concatenate([params["w_ih_t"][l], params["w_hh_t"][l]], axis=0)
        prep["upper"] += [w_cat, params["b"][l]]
    return jax.tree_util.tree_map(jnp.asarray, prep)


# --------------------------- model forward (wrapper) -----------------------------
@jax.jit
def rnn_forward(prep, tokens, state):
    """tokens: (S, B) int32; state: (h0, c0) each (num_layers, B, H)."""
    h0, c0 = state
    S, B = tokens.shape
    H, L, C = HIDDEN_DIM, NUM_LAYERS, NUM_CLASSES
    Bp = _round_up(B, 8)        # pad batch to vreg sublane height
    Cp = _round_up(C, 128)      # output classes padded to a full lane group

    tok_p = jnp.pad(tokens, ((0, 0), (0, Bp - B))).reshape(S * Bp, 1)
    h0_p = jnp.pad(h0, ((0, 0), (0, Bp - B), (0, 0)))
    c0_p = jnp.pad(c0, ((0, 0), (0, Bp - B), (0, 0)))

    vmem = pl.BlockSpec(memory_space=pltpu.MemorySpace.VMEM)
    n_in = 8 + 2 * (L - 1)
    kernel = functools.partial(_fused_rnn_kernel,
                               num_layers=L, seq_len=S, batch=Bp, hidden=H)

    logits_p, hN_p, cN_p = pl.pallas_call(
        kernel,
        out_shape=(
            jax.ShapeDtypeStruct((S * Bp, Cp), jnp.float32),   # logits (lane-dense)
            jax.ShapeDtypeStruct((L, Bp, H), jnp.float32),     # final h
            jax.ShapeDtypeStruct((L, Bp, H), jnp.float32),     # final c
        ),
        in_specs=[vmem] * n_in,
        out_specs=(vmem, vmem, vmem),
        scratch_shapes=[
            pltpu.VMEM((S * Bp, 4 * H), jnp.float32),          # hoisted layer-0 gx
        ],
    )(tok_p, prep["w_emb_ih0"], prep["b0"], prep["w_hh0"], *prep["upper"],
      h0_p, c0_p, prep["wout_p"], prep["bout_p"])

    logits = logits_p.reshape(S, Bp, Cp)[:, :B, :C].reshape(S * B, C)
    return logits, (hN_p[:, :B, :], cN_p[:, :B, :])


# --------------------------- parameter / state init ------------------------------
def init_params(key):
    """Deterministic init matching PyTorch parameter shapes (uniform +/- 1/sqrt(H))."""
    ks = jax.random.split(key, 3 + 4 * NUM_LAYERS)
    bound = 1.0 / jnp.sqrt(jnp.float32(HIDDEN_DIM))
    params = {
        "emb": jax.random.normal(ks[0], (NUM_CLASSES, EMB_DIM), jnp.float32) * 0.1,
        "w_ih_t": [],   # per layer: (in_dim, 4H)   == weight_ih_l{k}.T
        "w_hh_t": [],   # per layer: (H, 4H)        == weight_hh_l{k}.T
        "b": [],        # per layer: (1, 4H)        == bias_ih + bias_hh
        "w_out_t": jax.random.uniform(ks[1], (HIDDEN_DIM, NUM_CLASSES), jnp.float32,
                                      -bound, bound),
        "b_out": jax.random.uniform(ks[2], (1, NUM_CLASSES), jnp.float32, -bound, bound),
    }
    for l in range(NUM_LAYERS):
        in_dim = EMB_DIM if l == 0 else HIDDEN_DIM
        k0, k1, k2, k3 = ks[3 + 4 * l: 3 + 4 * (l + 1)]
        params["w_ih_t"].append(
            jax.random.uniform(k0, (in_dim, 4 * HIDDEN_DIM), jnp.float32, -bound, bound))
        params["w_hh_t"].append(
            jax.random.uniform(k1, (HIDDEN_DIM, 4 * HIDDEN_DIM), jnp.float32, -bound, bound))
        b_ih = jax.random.uniform(k2, (4 * HIDDEN_DIM,), jnp.float32, -bound, bound)
        b_hh = jax.random.uniform(k3, (4 * HIDDEN_DIM,), jnp.float32, -bound, bound)
        params["b"].append((b_ih + b_hh)[None, :])
    return params


def init_hidden(bsz):
    z = jnp.zeros((NUM_LAYERS, bsz, HIDDEN_DIM), jnp.float32)
    return (z, z)


# ------------------------------ pure-JAX reference -------------------------------
def ref_forward(params, tokens, state):
    h0, c0 = state
    x = params["emb"][tokens]
    H = HIDDEN_DIM
    h_fin, c_fin = [], []
    for l in range(NUM_LAYERS):
        w_ih_t, w_hh_t, b = params["w_ih_t"][l], params["w_hh_t"][l], params["b"][l]

        def step(carry, xt):
            h, c = carry
            gates = xt @ w_ih_t + h @ w_hh_t + b
            i = jax.nn.sigmoid(gates[:, :H])
            f = jax.nn.sigmoid(gates[:, H:2 * H])
            g = jnp.tanh(gates[:, 2 * H:3 * H])
            o = jax.nn.sigmoid(gates[:, 3 * H:])
            c2 = f * c + i * g
            h2 = o * jnp.tanh(c2)
            return (h2, c2), h2

        (hN, cN), x = jax.lax.scan(step, (h0[l], c0[l]), x)
        h_fin.append(hN)
        c_fin.append(cN)
    logits = x.reshape(-1, H) @ params["w_out_t"] + params["b_out"]
    return logits, (jnp.stack(h_fin), jnp.stack(c_fin))


# ------------------------------------ main ---------------------------------------
if __name__ == "__main__":
    key = jax.random.PRNGKey(0)
    pkey, tkey = jax.random.split(key)
    params = init_params(pkey)
    prep = prepare_params(params)
    tokens = jax.random.randint(tkey, (SEQ_LEN, BATCH), 0, NUM_CLASSES, jnp.int32)
    state = init_hidden(BATCH)

    logits, (hN, cN) = rnn_forward(prep, tokens, state)
    jax.block_until_ready((logits, hN, cN))

    ref_logits, (ref_hN, ref_cN) = ref_forward(params, tokens, state)
    assert logits.shape == (SEQ_LEN * BATCH, NUM_CLASSES)
    assert hN.shape == (NUM_LAYERS, BATCH, HIDDEN_DIM)
    assert cN.shape == (NUM_LAYERS, BATCH, HIDDEN_DIM)
    assert jnp.allclose(logits, ref_logits, atol=1e-4, rtol=1e-4)
    assert jnp.allclose(hN, ref_hN, atol=1e-4, rtol=1e-4)
    assert jnp.allclose(cN, ref_cN, atol=1e-4, rtol=1e-4)

    print("KERNEL_OK")
</pallas_src>

<mosaic_0001>
module attributes {stable_mosaic.version = 11 : i64} {
  func.func @_fused_rnn_kernel(%arg0: memref<64x1xi32, #tpu.memory_space<vmem>>, %arg1: memref<16x128xf32, #tpu.memory_space<vmem>>, %arg2: memref<1x128xf32, #tpu.memory_space<vmem>>, %arg3: memref<32x128xf32, #tpu.memory_space<vmem>>, %arg4: memref<64x128xf32, #tpu.memory_space<vmem>>, %arg5: memref<1x128xf32, #tpu.memory_space<vmem>>, %arg6: memref<2x8x32xf32, #tpu.memory_space<vmem>>, %arg7: memref<2x8x32xf32, #tpu.memory_space<vmem>>, %arg8: memref<32x128xf32, #tpu.memory_space<vmem>>, %arg9: memref<1x128xf32, #tpu.memory_space<vmem>>, %arg10: memref<64x128xf32, #tpu.memory_space<vmem>>, %arg11: memref<2x8x32xf32, #tpu.memory_space<vmem>>, %arg12: memref<2x8x32xf32, #tpu.memory_space<vmem>>, %arg13: memref<64x128xf32, #tpu.memory_space<vmem>>) attributes {dimension_semantics = [], scalar_prefetch = 0 : i64, scratch_operands = 1 : i64, tpu.core_type = #tpu.core_type<tc>} {
    %c0 = arith.constant 0 : index
    %c0_0 = arith.constant 0 : index
    %0 = vector.load %arg0[%c0, %c0_0] : memref<64x1xi32, #tpu.memory_space<vmem>>, vector<64x1xi32>
    %1 = tpu.iota {dimensions = array<i32: 1>} : vector<64x16xi32>
    %2 = vector.broadcast %0 : vector<64x1xi32> to vector<64x16xi32>
    %3 = arith.cmpi eq, %2, %1 : vector<64x16xi32>
    %4 = arith.extui %3 : vector<64x16xi1> to vector<64x16xi32>
    %5 = arith.sitofp %4 : vector<64x16xi32> to vector<64x16xf32>
    %c0_1 = arith.constant 0 : index
    %c0_2 = arith.constant 0 : index
    %6 = vector.load %arg1[%c0_1, %c0_2] : memref<16x128xf32, #tpu.memory_space<vmem>>, vector<16x128xf32>
    %cst = arith.constant dense<0.000000e+00> : vector<64x128xf32>
    %7 = tpu.matmul %5, %6, %cst {dimension_numbers = #tpu.dot_dimension_numbers<[1], [0], [0], [1], [0, 0, 1, 1], [], []>} : vector<64x16xf32>, vector<16x128xf32>, vector<64x128xf32> -> vector<64x128xf32>
    %c0_3 = arith.constant 0 : index
    %c0_4 = arith.constant 0 : index
    %8 = vector.load %arg2[%c0_3, %c0_4] : memref<1x128xf32, #tpu.memory_space<vmem>>, vector<1x128xf32>
    %9 = vector.broadcast %8 : vector<1x128xf32> to vector<64x128xf32>
    %10 = arith.addf %7, %9 : vector<64x128xf32>
    %c0_5 = arith.constant 0 : index
    %c0_6 = arith.constant 0 : index
    %11 = vector.load %arg13[%c0_5, %c0_6] : memref<64x128xf32, #tpu.memory_space<vmem>>, vector<64x128xf32>
    tpu.vector_store %arg13[%c0_5, %c0_6], %10 {strides = array<i32>} : memref<64x128xf32, #tpu.memory_space<vmem>>, vector<64x128xf32>,
    %c0_7 = arith.constant 0 : index
    %c0_8 = arith.constant 0 : index
    %c0_9 = arith.constant 0 : index
    %12 = vector.load %arg6[%c0_7, %c0_8, %c0_9] : memref<2x8x32xf32, #tpu.memory_space<vmem>>, vector<1x8x32xf32>
    %13 = vector.shape_cast %12 : vector<1x8x32xf32> to vector<8x32xf32>
    %c1 = arith.constant 1 : index
    %c0_10 = arith.constant 0 : index
    %c0_11 = arith.constant 0 : index
    %14 = vector.load %arg6[%c1, %c0_10, %c0_11] : memref<2x8x32xf32, #tpu.memory_space<vmem>>, vector<1x8x32xf32>
    %15 = vector.shape_cast %14 : vector<1x8x32xf32> to vector<8x32xf32>
    %c0_12 = arith.constant 0 : index
    %c0_13 = arith.constant 0 : index
    %c0_14 = arith.constant 0 : index
    %16 = vector.load %arg7[%c0_12, %c0_13, %c0_14] : memref<2x8x32xf32, #tpu.memory_space<vmem>>, vector<1x8x32xf32>
    %17 = vector.shape_cast %16 : vector<1x8x32xf32> to vector<8x32xf32>
    %c1_15 = arith.constant 1 : index
    %c0_16 = arith.constant 0 : index
    %c0_17 = arith.constant 0 : index
    %18 = vector.load %arg7[%c1_15, %c0_16, %c0_17] : memref<2x8x32xf32, #tpu.memory_space<vmem>>, vector<1x8x32xf32>
    %19 = vector.shape_cast %18 : vector<1x8x32xf32> to vector<8x32xf32>
    %c0_18 = arith.constant 0 : index
    %c0_19 = arith.constant 0 : index
    %20 = vector.load %arg13[%c0_18, %c0_19] : memref<64x128xf32, #tpu.memory_space<vmem>>, vector<8x128xf32>
    %c0_20 = arith.constant 0 : index
    %c0_21 = arith.constant 0 : index
    %21 = vector.load %arg3[%c0_20, %c0_21] : memref<32x128xf32, #tpu.memory_space<vmem>>, vector<32x128xf32>
    %cst_22 = arith.constant dense<0.000000e+00> : vector<8x128xf32>
    %22 = tpu.matmul %13, %21, %cst_22 {dimension_numbers = #tpu.dot_dimension_numbers<[1], [0], [0], [1], [0, 0, 1, 1], [], []>} : vector<8x32xf32>, vector<32x128xf32>, vector<8x128xf32> -> vector<8x128xf32>
    %23 = arith.addf %20, %22 : vector<8x128xf32>
    %24 = arith.negf %23 : vector<8x128xf32>
    %25 = math.exp %24 : vector<8x128xf32>
    %cst_23 = arith.constant 1.000000e+00 : f32
    %26 = vector.broadcast %cst_23 : f32 to vector<8x128xf32>
    %27 = arith.addf %26, %25 : vector<8x128xf32>
    %28 = arith.divf %26, %27 : vector<8x128xf32>
    %29 = math.tanh %23 : vector<8x128xf32>
    %30 = vector.extract_strided_slice %28 {offsets = [0, 0], sizes = [8, 32], strides = [1, 1]} : vector<8x128xf32> to vector<8x32xf32>
    %31 = vector.extract_strided_slice %28 {offsets = [0, 32], sizes = [8, 32], strides = [1, 1]} : vector<8x128xf32> to vector<8x32xf32>
    %32 = vector.extract_strided_slice %29 {offsets = [0, 64], sizes = [8, 32], strides = [1, 1]} : vector<8x128xf32> to vector<8x32xf32>
    %33 = vector.extract_strided_slice %28 {offsets = [0, 96], sizes = [8, 32], strides = [1, 1]} : vector<8x128xf32> to vector<8x32xf32>
    %34 = arith.mulf %31, %17 : vector<8x32xf32>
    %35 = arith.mulf %30, %32 : vector<8x32xf32>
    %36 = arith.addf %34, %35 : vector<8x32xf32>
    %37 = math.tanh %36 : vector<8x32xf32>
    %38 = arith.mulf %33, %37 : vector<8x32xf32>
    %c1_i32 = arith.constant 1 : i32
    %c8_i32 = arith.constant 8 : i32
    %39 = arith.muli %c1_i32, %c8_i32 : i32
    %40 = tpu.assume_multiple %39, 8 : i32
    %41 = arith.index_cast %40 : i32 to index
    %c0_24 = arith.constant 0 : index
    %42 = vector.load %arg13[%41, %c0_24] : memref<64x128xf32, #tpu.memory_space<vmem>>, vector<8x128xf32>
    %c0_25 = arith.constant 0 : index
    %c0_26 = arith.constant 0 : index
    %43 = vector.load %arg3[%c0_25, %c0_26] : memref<32x128xf32, #tpu.memory_space<vmem>>, vector<32x128xf32>
    %cst_27 = arith.constant dense<0.000000e+00> : vector<8x128xf32>
    %44 = tpu.matmul %38, %43, %cst_27 {dimension_numbers = #tpu.dot_dimension_numbers<[1], [0], [0], [1], [0, 0, 1, 1], [], []>} : vector<8x32xf32>, vector<32x128xf32>, vector<8x128xf32> -> vector<8x128xf32>
    %45 = arith.addf %42, %44 : vector<8x128xf32>
    %46 = arith.negf %45 : vector<8x128xf32>
    %47 = math.exp %46 : vector<8x128xf32>
    %cst_28 = arith.constant 1.000000e+00 : f32
    %48 = vector.broadcast %cst_28 : f32 to vector<8x128xf32>
    %49 = arith.addf %48, %47 : vector<8x128xf32>
    %50 = arith.divf %48, %49 : vector<8x128xf32>
    %51 = math.tanh %45 : vector<8x128xf32>
    %52 = vector.extract_strided_slice %50 {offsets = [0, 0], sizes = [8, 32], strides = [1, 1]} : vector<8x128xf32> to vector<8x32xf32>
    %53 = vector.extract_strided_slice %50 {offsets = [0, 32], sizes = [8, 32], strides = [1, 1]} : vector<8x128xf32> to vector<8x32xf32>
    %54 = vector.extract_strided_slice %51 {offsets = [0, 64], sizes = [8, 32], strides = [1, 1]} : vector<8x128xf32> to vector<8x32xf32>
    %55 = vector.extract_strided_slice %50 {offsets = [0, 96], sizes = [8, 32], strides = [1, 1]} : vector<8x128xf32> to vector<8x32xf32>
    %56 = arith.mulf %53, %36 : vector<8x32xf32>
    %57 = arith.mulf %52, %54 : vector<8x32xf32>
    %58 = arith.addf %56, %57 : vector<8x32xf32>
    %59 = math.tanh %58 : vector<8x32xf32>
    %60 = arith.mulf %55, %59 : vector<8x32xf32>
    %c0_29 = arith.constant 0 : index
    %c0_30 = arith.constant 0 : index
    %61 = vector.load %arg4[%c0_29, %c0_30] : memref<64x128xf32, #tpu.memory_space<vmem>>, vector<64x128xf32>
    %c0_31 = arith.constant 0 : index
    %c0_32 = arith.constant 0 : index
    %62 = vector.load %arg5[%c0_31, %c0_32] : memref<1x128xf32, #tpu.memory_space<vmem>>, vector<1x128xf32>
    %63 = tpu.concatenate %38, %15 in 1 : vector<8x32xf32>, vector<8x32xf32> -> vector<8x64xf32>
    %cst_33 = arith.constant dense<0.000000e+00> : vector<8x128xf32>
    %64 = tpu.matmul %63, %61, %cst_33 {dimension_numbers = #tpu.dot_dimension_numbers<[1], [0], [0], [1], [0, 0, 1, 1], [], []>} : vector<8x64xf32>, vector<64x128xf32>, vector<8x128xf32> -> vector<8x128xf32>
    %65 = vector.broadcast %62 : vector<1x128xf32> to vector<8x128xf32>
    %66 = arith.addf %64, %65 : vector<8x128xf32>
    %67 = arith.negf %66 : vector<8x128xf32>
    %68 = math.exp %67 : vector<8x128xf32>
    %cst_34 = arith.constant 1.000000e+00 : f32
    %69 = vector.broadcast %cst_34 : f32 to vector<8x128xf32>
    %70 = arith.addf %69, %68 : vector<8x128xf32>
    %71 = arith.divf %69, %70 : vector<8x128xf32>
    %72 = math.tanh %66 : vector<8x128xf32>
    %73 = vector.extract_strided_slice %71 {offsets = [0, 0], sizes = [8, 32], strides = [1, 1]} : vector<8x128xf32> to vector<8x32xf32>
    %74 = vector.extract_strided_slice %71 {offsets = [0, 32], sizes = [8, 32], strides = [1, 1]} : vector<8x128xf32> to vector<8x32xf32>
    %75 = vector.extract_strided_slice %72 {offsets = [0, 64], sizes = [8, 32], strides = [1, 1]} : vector<8x128xf32> to vector<8x32xf32>
    %76 = vector.extract_strided_slice %71 {offsets = [0, 96], sizes = [8, 32], strides = [1, 1]} : vector<8x128xf32> to vector<8x32xf32>
    %77 = arith.mulf %74, %19 : vector<8x32xf32>
    %78 = arith.mulf %73, %75 : vector<8x32xf32>
    %79 = arith.addf %77, %78 : vector<8x32xf32>
    %80 = math.tanh %79 : vector<8x32xf32>
    %81 = arith.mulf %76, %80 : vector<8x32xf32>
    %c1_i32_35 = arith.constant 1 : i32
    %82 = arith.subi %c1_i32, %c1_i32_35 : i32
    %c0_36 = arith.constant 0 : index
    %c0_37 = arith.constant 0 : index
    %83 = vector.load %arg8[%c0_36, %c0_37] : memref<32x128xf32, #tpu.memory_space<vmem>>, vector<32x128xf32>
    %cst_38 = arith.constant dense<0.000000e+00> : vector<8x128xf32>
    %84 = tpu.matmul %81, %83, %cst_38 {dimension_numbers = #tpu.dot_dimension_numbers<[1], [0], [0], [1], [0, 0, 1, 1], [], []>} : vector<8x32xf32>, vector<32x128xf32>, vector<8x128xf32> -> vector<8x128xf32>
    %c0_39 = arith.constant 0 : index
    %c0_40 = arith.constant 0 : index
    %85 = vector.load %arg9[%c0_39, %c0_40] : memref<1x128xf32, #tpu.memory_space<vmem>>, vector<1x128xf32>
    %86 = vector.broadcast %85 : vector<1x128xf32> to vector<8x128xf32>
    %87 = arith.addf %84, %86 : vector<8x128xf32>
    %c8_i32_41 = arith.constant 8 : i32
    %88 = arith.muli %82, %c8_i32_41 : i32
    %89 = tpu.assume_multiple %88, 8 : i32
    %90 = arith.index_cast %89 : i32 to index
    %c0_42 = arith.constant 0 : index
    %91 = vector.load %arg10[%90, %c0_42] : memref<64x128xf32, #tpu.memory_space<vmem>>, vector<8x128xf32>
    tpu.vector_store %arg10[%90, %c0_42], %87 {strides = array<i32>} : memref<64x128xf32, #tpu.memory_space<vmem>>, vector<8x128xf32>,
    %c2_i32 = arith.constant 2 : i32
    %c8_i32_43 = arith.constant 8 : i32
    %92 = arith.muli %c2_i32, %c8_i32_43 : i32
    %93 = tpu.assume_multiple %92, 8 : i32
    %94 = arith.index_cast %93 : i32 to index
    %c0_44 = arith.constant 0 : index
    %95 = vector.load %arg13[%94, %c0_44] : memref<64x128xf32, #tpu.memory_space<vmem>>, vector<8x128xf32>
    %c0_45 = arith.constant 0 : index
    %c0_46 = arith.constant 0 : index
    %96 = vector.load %arg3[%c0_45, %c0_46] : memref<32x128xf32, #tpu.memory_space<vmem>>, vector<32x128xf32>
    %cst_47 = arith.constant dense<0.000000e+00> : vector<8x128xf32>
    %97 = tpu.matmul %60, %96, %cst_47 {dimension_numbers = #tpu.dot_dimension_numbers<[1], [0], [0], [1], [0, 0, 1, 1], [], []>} : vector<8x32xf32>, vector<32x128xf32>, vector<8x128xf32> -> vector<8x128xf32>
    %98 = arith.addf %95, %97 : vector<8x128xf32>
    %99 = arith.negf %98 : vector<8x128xf32>
    %100 = math.exp %99 : vector<8x128xf32>
    %cst_48 = arith.constant 1.000000e+00 : f32
    %101 = vector.broadcast %cst_48 : f32 to vector<8x128xf32>
    %102 = arith.addf %101, %100 : vector<8x128xf32>
    %103 = arith.divf %101, %102 : vector<8x128xf32>
    %104 = math.tanh %98 : vector<8x128xf32>
    %105 = vector.extract_strided_slice %103 {offsets = [0, 0], sizes = [8, 32], strides = [1, 1]} : vector<8x128xf32> to vector<8x32xf32>
    %106 = vector.extract_strided_slice %103 {offsets = [0, 32], sizes = [8, 32], strides = [1, 1]} : vector<8x128xf32> to vector<8x32xf32>
    %107 = vector.extract_strided_slice %104 {offsets = [0, 64], sizes = [8, 32], strides = [1, 1]} : vector<8x128xf32> to vector<8x32xf32>
    %108 = vector.extract_strided_slice %103 {offsets = [0, 96], sizes = [8, 32], strides = [1, 1]} : vector<8x128xf32> to vector<8x32xf32>
    %109 = arith.mulf %106, %58 : vector<8x32xf32>
    %110 = arith.mulf %105, %107 : vector<8x32xf32>
    %111 = arith.addf %109, %110 : vector<8x32xf32>
    %112 = math.tanh %111 : vector<8x32xf32>
    %113 = arith.mulf %108, %112 : vector<8x32xf32>
    %c0_49 = arith.constant 0 : index
    %c0_50 = arith.constant 0 : index
    %114 = vector.load %arg4[%c0_49, %c0_50] : memref<64x128xf32, #tpu.memory_space<vmem>>, vector<64x128xf32>
    %c0_51 = arith.constant 0 : index
    %c0_52 = arith.constant 0 : index
    %115 = vector.load %arg5[%c0_51, %c0_52] : memref<1x128xf32, #tpu.memory_space<vmem>>, vector<1x128xf32>
    %116 = tpu.concatenate %60, %81 in 1 : vector<8x32xf32>, vector<8x32xf32> -> vector<8x64xf32>
    %cst_53 = arith.constant dense<0.000000e+00> : vector<8x128xf32>
    %117 = tpu.matmul %116, %114, %cst_53 {dimension_numbers = #tpu.dot_dimension_numbers<[1], [0], [0], [1], [0, 0, 1, 1], [], []>} : vector<8x64xf32>, vector<64x128xf32>, vector<8x128xf32> -> vector<8x128xf32>
    %118 = vector.broadcast %115 : vector<1x128xf32> to vector<8x128xf32>
    %119 = arith.addf %117, %118 : vector<8x128xf32>
    %120 = arith.negf %119 : vector<8x128xf32>
    %121 = math.exp %120 : vector<8x128xf32>
    %cst_54 = arith.constant 1.000000e+00 : f32
    %122 = vector.broadcast %cst_54 : f32 to vector<8x128xf32>
    %123 = arith.addf %122, %121 : vector<8x128xf32>
    %124 = arith.divf %122, %123 : vector<8x128xf32>
    %125 = math.tanh %119 : vector<8x128xf32>
    %126 = vector.extract_strided_slice %124 {offsets = [0, 0], sizes = [8, 32], strides = [1, 1]} : vector<8x128xf32> to vector<8x32xf32>
    %127 = vector.extract_strided_slice %124 {offsets = [0, 32], sizes = [8, 32], strides = [1, 1]} : vector<8x128xf32> to vector<8x32xf32>
    %128 = vector.extract_strided_slice %125 {offsets = [0, 64], sizes = [8, 32], strides = [1, 1]} : vector<8x128xf32> to vector<8x32xf32>
    %129 = vector.extract_strided_slice %124 {offsets = [0, 96], sizes = [8, 32], strides = [1, 1]} : vector<8x128xf32> to vector<8x32xf32>
    %130 = arith.mulf %127, %79 : vector<8x32xf32>
    %131 = arith.mulf %126, %128 : vector<8x32xf32>
    %132 = arith.addf %130, %131 : vector<8x32xf32>
    %133 = math.tanh %132 : vector<8x32xf32>
    %134 = arith.mulf %129, %133 : vector<8x32xf32>
    %c1_i32_55 = arith.constant 1 : i32
    %135 = arith.subi %c2_i32, %c1_i32_55 : i32
    %c0_56 = arith.constant 0 : index
    %c0_57 = arith.constant 0 : index
    %136 = vector.load %arg8[%c0_56, %c0_57] : memref<32x128xf32, #tpu.memory_space<vmem>>, vector<32x128xf32>
    %cst_58 = arith.constant dense<0.000000e+00> : vector<8x128xf32>
    %137 = tpu.matmul %134, %136, %cst_58 {dimension_numbers = #tpu.dot_dimension_numbers<[1], [0], [0], [1], [0, 0, 1, 1], [], []>} : vector<8x32xf32>, vector<32x128xf32>, vector<8x128xf32> -> vector<8x128xf32>
    %c0_59 = arith.constant 0 : index
    %c0_60 = arith.constant 0 : index
    %138 = vector.load %arg9[%c0_59, %c0_60] : memref<1x128xf32, #tpu.memory_space<vmem>>, vector<1x128xf32>
    %139 = vector.broadcast %138 : vector<1x128xf32> to vector<8x128xf32>
    %140 = arith.addf %137, %139 : vector<8x128xf32>
    %c8_i32_61 = arith.constant 8 : i32
    %141 = arith.muli %135, %c8_i32_61 : i32
    %142 = tpu.assume_multiple %141, 8 : i32
    %143 = arith.index_cast %142 : i32 to index
    %c0_62 = arith.constant 0 : index
    %144 = vector.load %arg10[%143, %c0_62] : memref<64x128xf32, #tpu.memory_space<vmem>>, vector<8x128xf32>
    tpu.vector_store %arg10[%143, %c0_62], %140 {strides = array<i32>} : memref<64x128xf32, #tpu.memory_space<vmem>>, vector<8x128xf32>,
    %c3_i32 = arith.constant 3 : i32
    %c8_i32_63 = arith.constant 8 : i32
    %145 = arith.muli %c3_i32, %c8_i32_63 : i32
    %146 = tpu.assume_multiple %145, 8 : i32
    %147 = arith.index_cast %146 : i32 to index
    %c0_64 = arith.constant 0 : index
    %148 = vector.load %arg13[%147, %c0_64] : memref<64x128xf32, #tpu.memory_space<vmem>>, vector<8x128xf32>
    %c0_65 = arith.constant 0 : index
    %c0_66 = arith.constant 0 : index
    %149 = vector.load %arg3[%c0_65, %c0_66] : memref<32x128xf32, #tpu.memory_space<vmem>>, vector<32x128xf32>
    %cst_67 = arith.constant dense<0.000000e+00> : vector<8x128xf32>
    %150 = tpu.matmul %113, %149, %cst_67 {dimension_numbers = #tpu.dot_dimension_numbers<[1], [0], [0], [1], [0, 0, 1, 1], [], []>} : vector<8x32xf32>, vector<32x128xf32>, vector<8x128xf32> -> vector<8x128xf32>
    %151 = arith.addf %148, %150 : vector<8x128xf32>
    %152 = arith.negf %151 : vector<8x128xf32>
    %153 = math.exp %152 : vector<8x128xf32>
    %cst_68 = arith.constant 1.000000e+00 : f32
    %154 = vector.broadcast %cst_68 : f32 to vector<8x128xf32>
    %155 = arith.addf %154, %153 : vector<8x128xf32>
    %156 = arith.divf %154, %155 : vector<8x128xf32>
    %157 = math.tanh %151 : vector<8x128xf32>
    %158 = vector.extract_strided_slice %156 {offsets = [0, 0], sizes = [8, 32], strides = [1, 1]} : vector<8x128xf32> to vector<8x32xf32>
    %159 = vector.extract_strided_slice %156 {offsets = [0, 32], sizes = [8, 32], strides = [1, 1]} : vector<8x128xf32> to vector<8x32xf32>
    %160 = vector.extract_strided_slice %157 {offsets = [0, 64], sizes = [8, 32], strides = [1, 1]} : vector<8x128xf32> to vector<8x32xf32>
    %161 = vector.extract_strided_slice %156 {offsets = [0, 96], sizes = [8, 32], strides = [1, 1]} : vector<8x128xf32> to vector<8x32xf32>
    %162 = arith.mulf %159, %111 : vector<8x32xf32>
    %163 = arith.mulf %158, %160 : vector<8x32xf32>
    %164 = arith.addf %162, %163 : vector<8x32xf32>
    %165 = math.tanh %164 : vector<8x32xf32>
    %166 = arith.mulf %161, %165 : vector<8x32xf32>
    %c0_69 = arith.constant 0 : index
    %c0_70 = arith.constant 0 : index
    %167 = vector.load %arg4[%c0_69, %c0_70] : memref<64x128xf32, #tpu.memory_space<vmem>>, vector<64x128xf32>
    %c0_71 = arith.constant 0 : index
    %c0_72 = arith.constant 0 : index
    %168 = vector.load %arg5[%c0_71, %c0_72] : memref<1x128xf32, #tpu.memory_space<vmem>>, vector<1x128xf32>
    %169 = tpu.concatenate %113, %134 in 1 : vector<8x32xf32>, vector<8x32xf32> -> vector<8x64xf32>
    %cst_73 = arith.constant dense<0.000000e+00> : vector<8x128xf32>
    %170 = tpu.matmul %169, %167, %cst_73 {dimension_numbers = #tpu.dot_dimension_numbers<[1], [0], [0], [1], [0, 0, 1, 1], [], []>} : vector<8x64xf32>, vector<64x128xf32>, vector<8x128xf32> -> vector<8x128xf32>
    %171 = vector.broadcast %168 : vector<1x128xf32> to vector<8x128xf32>
    %172 = arith.addf %170, %171 : vector<8x128xf32>
    %173 = arith.negf %172 : vector<8x128xf32>
    %174 = math.exp %173 : vector<8x128xf32>
    %cst_74 = arith.constant 1.000000e+00 : f32
    %175 = vector.broadcast %cst_74 : f32 to vector<8x128xf32>
    %176 = arith.addf %175, %174 : vector<8x128xf32>
    %177 = arith.divf %175, %176 : vector<8x128xf32>
    %178 = math.tanh %172 : vector<8x128xf32>
    %179 = vector.extract_strided_slice %177 {offsets = [0, 0], sizes = [8, 32], strides = [1, 1]} : vector<8x128xf32> to vector<8x32xf32>
    %180 = vector.extract_strided_slice %177 {offsets = [0, 32], sizes = [8, 32], strides = [1, 1]} : vector<8x128xf32> to vector<8x32xf32>
    %181 = vector.extract_strided_slice %178 {offsets = [0, 64], sizes = [8, 32], strides = [1, 1]} : vector<8x128xf32> to vector<8x32xf32>
    %182 = vector.extract_strided_slice %177 {offsets = [0, 96], sizes = [8, 32], strides = [1, 1]} : vector<8x128xf32> to vector<8x32xf32>
    %183 = arith.mulf %180, %132 : vector<8x32xf32>
    %184 = arith.mulf %179, %181 : vector<8x32xf32>
    %185 = arith.addf %183, %184 : vector<8x32xf32>
    %186 = math.tanh %185 : vector<8x32xf32>
    %187 = arith.mulf %182, %186 : vector<8x32xf32>
    %c1_i32_75 = arith.constant 1 : i32
    %188 = arith.subi %c3_i32, %c1_i32_75 : i32
    %c0_76 = arith.constant 0 : index
    %c0_77 = arith.constant 0 : index
    %189 = vector.load %arg8[%c0_76, %c0_77] : memref<32x128xf32, #tpu.memory_space<vmem>>, vector<32x128xf32>
    %cst_78 = arith.constant dense<0.000000e+00> : vector<8x128xf32>
    %190 = tpu.matmul %187, %189, %cst_78 {dimension_numbers = #tpu.dot_dimension_numbers<[1], [0], [0], [1], [0, 0, 1, 1], [], []>} : vector<8x32xf32>, vector<32x128xf32>, vector<8x128xf32> -> vector<8x128xf32>
    %c0_79 = arith.constant 0 : index
    %c0_80 = arith.constant 0 : index
    %191 = vector.load %arg9[%c0_79, %c0_80] : memref<1x128xf32, #tpu.memory_space<vmem>>, vector<1x128xf32>
    %192 = vector.broadcast %191 : vector<1x128xf32> to vector<8x128xf32>
    %193 = arith.addf %190, %192 : vector<8x128xf32>
    %c8_i32_81 = arith.constant 8 : i32
    %194 = arith.muli %188, %c8_i32_81 : i32
    %195 = tpu.assume_multiple %194, 8 : i32
    %196 = arith.index_cast %195 : i32 to index
    %c0_82 = arith.constant 0 : index
    %197 = vector.load %arg10[%196, %c0_82] : memref<64x128xf32, #tpu.memory_space<vmem>>, vector<8x128xf32>
    tpu.vector_store %arg10[%196, %c0_82], %193 {strides = array<i32>} : memref<64x128xf32, #tpu.memory_space<vmem>>, vector<8x128xf32>,
    %c4_i32 = arith.constant 4 : i32
    %c8_i32_83 = arith.constant 8 : i32
    %198 = arith.muli %c4_i32, %c8_i32_83 : i32
    %199 = tpu.assume_multiple %198, 8 : i32
    %200 = arith.index_cast %199 : i32 to index
    %c0_84 = arith.constant 0 : index
    %201 = vector.load %arg13[%200, %c0_84] : memref<64x128xf32, #tpu.memory_space<vmem>>, vector<8x128xf32>
    %c0_85 = arith.constant 0 : index
    %c0_86 = arith.constant 0 : index
    %202 = vector.load %arg3[%c0_85, %c0_86] : memref<32x128xf32, #tpu.memory_space<vmem>>, vector<32x128xf32>
    %cst_87 = arith.constant dense<0.000000e+00> : vector<8x128xf32>
    %203 = tpu.matmul %166, %202, %cst_87 {dimension_numbers = #tpu.dot_dimension_numbers<[1], [0], [0], [1], [0, 0, 1, 1], [], []>} : vector<8x32xf32>, vector<32x128xf32>, vector<8x128xf32> -> vector<8x128xf32>
    %204 = arith.addf %201, %203 : vector<8x128xf32>
    %205 = arith.negf %204 : vector<8x128xf32>
    %206 = math.exp %205 : vector<8x128xf32>
    %cst_88 = arith.constant 1.000000e+00 : f32
    %207 = vector.broadcast %cst_88 : f32 to vector<8x128xf32>
    %208 = arith.addf %207, %206 : vector<8x128xf32>
    %209 = arith.divf %207, %208 : vector<8x128xf32>
    %210 = math.tanh %204 : vector<8x128xf32>
    %211 = vector.extract_strided_slice %209 {offsets = [0, 0], sizes = [8, 32], strides = [1, 1]} : vector<8x128xf32> to vector<8x32xf32>
    %212 = vector.extract_strided_slice %209 {offsets = [0, 32], sizes = [8, 32], strides = [1, 1]} : vector<8x128xf32> to vector<8x32xf32>
    %213 = vector.extract_strided_slice %210 {offsets = [0, 64], sizes = [8, 32], strides = [1, 1]} : vector<8x128xf32> to vector<8x32xf32>
    %214 = vector.extract_strided_slice %209 {offsets = [0, 96], sizes = [8, 32], strides = [1, 1]} : vector<8x128xf32> to vector<8x32xf32>
    %215 = arith.mulf %212, %164 : vector<8x32xf32>
    %216 = arith.mulf %211, %213 : vector<8x32xf32>
    %217 = arith.addf %215, %216 : vector<8x32xf32>
    %218 = math.tanh %217 : vector<8x32xf32>
    %219 = arith.mulf %214, %218 : vector<8x32xf32>
    %c0_89 = arith.constant 0 : index
    %c0_90 = arith.constant 0 : index
    %220 = vector.load %arg4[%c0_89, %c0_90] : memref<64x128xf32, #tpu.memory_space<vmem>>, vector<64x128xf32>
    %c0_91 = arith.constant 0 : index
    %c0_92 = arith.constant 0 : index
    %221 = vector.load %arg5[%c0_91, %c0_92] : memref<1x128xf32, #tpu.memory_space<vmem>>, vector<1x128xf32>
    %222 = tpu.concatenate %166, %187 in 1 : vector<8x32xf32>, vector<8x32xf32> -> vector<8x64xf32>
    %cst_93 = arith.constant dense<0.000000e+00> : vector<8x128xf32>
    %223 = tpu.matmul %222, %220, %cst_93 {dimension_numbers = #tpu.dot_dimension_numbers<[1], [0], [0], [1], [0, 0, 1, 1], [], []>} : vector<8x64xf32>, vector<64x128xf32>, vector<8x128xf32> -> vector<8x128xf32>
    %224 = vector.broadcast %221 : vector<1x128xf32> to vector<8x128xf32>
    %225 = arith.addf %223, %224 : vector<8x128xf32>
    %226 = arith.negf %225 : vector<8x128xf32>
    %227 = math.exp %226 : vector<8x128xf32>
    %cst_94 = arith.constant 1.000000e+00 : f32
    %228 = vector.broadcast %cst_94 : f32 to vector<8x128xf32>
    %229 = arith.addf %228, %227 : vector<8x128xf32>
    %230 = arith.divf %228, %229 : vector<8x128xf32>
    %231 = math.tanh %225 : vector<8x128xf32>
    %232 = vector.extract_strided_slice %230 {offsets = [0, 0], sizes = [8, 32], strides = [1, 1]} : vector<8x128xf32> to vector<8x32xf32>
    %233 = vector.extract_strided_slice %230 {offsets = [0, 32], sizes = [8, 32], strides = [1, 1]} : vector<8x128xf32> to vector<8x32xf32>
    %234 = vector.extract_strided_slice %231 {offsets = [0, 64], sizes = [8, 32], strides = [1, 1]} : vector<8x128xf32> to vector<8x32xf32>
    %235 = vector.extract_strided_slice %230 {offsets = [0, 96], sizes = [8, 32], strides = [1, 1]} : vector<8x128xf32> to vector<8x32xf32>
    %236 = arith.mulf %233, %185 : vector<8x32xf32>
    %237 = arith.mulf %232, %234 : vector<8x32xf32>
    %238 = arith.addf %236, %237 : vector<8x32xf32>
    %239 = math.tanh %238 : vector<8x32xf32>
    %240 = arith.mulf %235, %239 : vector<8x32xf32>
    %c1_i32_95 = arith.constant 1 : i32
    %241 = arith.subi %c4_i32, %c1_i32_95 : i32
    %c0_96 = arith.constant 0 : index
    %c0_97 = arith.constant 0 : index
    %242 = vector.load %arg8[%c0_96, %c0_97] : memref<32x128xf32, #tpu.memory_space<vmem>>, vector<32x128xf32>
    %cst_98 = arith.constant dense<0.000000e+00> : vector<8x128xf32>
    %243 = tpu.matmul %240, %242, %cst_98 {dimension_numbers = #tpu.dot_dimension_numbers<[1], [0], [0], [1], [0, 0, 1, 1], [], []>} : vector<8x32xf32>, vector<32x128xf32>, vector<8x128xf32> -> vector<8x128xf32>
    %c0_99 = arith.constant 0 : index
    %c0_100 = arith.constant 0 : index
    %244 = vector.load %arg9[%c0_99, %c0_100] : memref<1x128xf32, #tpu.memory_space<vmem>>, vector<1x128xf32>
    %245 = vector.broadcast %244 : vector<1x128xf32> to vector<8x128xf32>
    %246 = arith.addf %243, %245 : vector<8x128xf32>
    %c8_i32_101 = arith.constant 8 : i32
    %247 = arith.muli %241, %c8_i32_101 : i32
    %248 = tpu.assume_multiple %247, 8 : i32
    %249 = arith.index_cast %248 : i32 to index
    %c0_102 = arith.constant 0 : index
    %250 = vector.load %arg10[%249, %c0_102] : memref<64x128xf32, #tpu.memory_space<vmem>>, vector<8x128xf32>
    tpu.vector_store %arg10[%249, %c0_102], %246 {strides = array<i32>} : memref<64x128xf32, #tpu.memory_space<vmem>>, vector<8x128xf32>,
    %c5_i32 = arith.constant 5 : i32
    %c8_i32_103 = arith.constant 8 : i32
    %251 = arith.muli %c5_i32, %c8_i32_103 : i32
    %252 = tpu.assume_multiple %251, 8 : i32
    %253 = arith.index_cast %252 : i32 to index
    %c0_104 = arith.constant 0 : index
    %254 = vector.load %arg13[%253, %c0_104] : memref<64x128xf32, #tpu.memory_space<vmem>>, vector<8x128xf32>
    %c0_105 = arith.constant 0 : index
    %c0_106 = arith.constant 0 : index
    %255 = vector.load %arg3[%c0_105, %c0_106] : memref<32x128xf32, #tpu.memory_space<vmem>>, vector<32x128xf32>
    %cst_107 = arith.constant dense<0.000000e+00> : vector<8x128xf32>
    %256 = tpu.matmul %219, %255, %cst_107 {dimension_numbers = #tpu.dot_dimension_numbers<[1], [0], [0], [1], [0, 0, 1, 1], [], []>} : vector<8x32xf32>, vector<32x128xf32>, vector<8x128xf32> -> vector<8x128xf32>
    %257 = arith.addf %254, %256 : vector<8x128xf32>
    %258 = arith.negf %257 : vector<8x128xf32>
    %259 = math.exp %258 : vector<8x128xf32>
    %cst_108 = arith.constant 1.000000e+00 : f32
    %260 = vector.broadcast %cst_108 : f32 to vector<8x128xf32>
    %261 = arith.addf %260, %259 : vector<8x128xf32>
    %262 = arith.divf %260, %261 : vector<8x128xf32>
    %263 = math.tanh %257 : vector<8x128xf32>
    %264 = vector.extract_strided_slice %262 {offsets = [0, 0], sizes = [8, 32], strides = [1, 1]} : vector<8x128xf32> to vector<8x32xf32>
    %265 = vector.extract_strided_slice %262 {offsets = [0, 32], sizes = [8, 32], strides = [1, 1]} : vector<8x128xf32> to vector<8x32xf32>
    %266 = vector.extract_strided_slice %263 {offsets = [0, 64], sizes = [8, 32], strides = [1, 1]} : vector<8x128xf32> to vector<8x32xf32>
    %267 = vector.extract_strided_slice %262 {offsets = [0, 96], sizes = [8, 32], strides = [1, 1]} : vector<8x128xf32> to vector<8x32xf32>
    %268 = arith.mulf %265, %217 : vector<8x32xf32>
    %269 = arith.mulf %264, %266 : vector<8x32xf32>
    %270 = arith.addf %268, %269 : vector<8x32xf32>
    %271 = math.tanh %270 : vector<8x32xf32>
    %272 = arith.mulf %267, %271 : vector<8x32xf32>
    %c0_109 = arith.constant 0 : index
    %c0_110 = arith.constant 0 : index
    %273 = vector.load %arg4[%c0_109, %c0_110] : memref<64x128xf32, #tpu.memory_space<vmem>>, vector<64x128xf32>
    %c0_111 = arith.constant 0 : index
    %c0_112 = arith.constant 0 : index
    %274 = vector.load %arg5[%c0_111, %c0_112] : memref<1x128xf32, #tpu.memory_space<vmem>>, vector<1x128xf32>
    %275 = tpu.concatenate %219, %240 in 1 : vector<8x32xf32>, vector<8x32xf32> -> vector<8x64xf32>
    %cst_113 = arith.constant dense<0.000000e+00> : vector<8x128xf32>
    %276 = tpu.matmul %275, %273, %cst_113 {dimension_numbers = #tpu.dot_dimension_numbers<[1], [0], [0], [1], [0, 0, 1, 1], [], []>} : vector<8x64xf32>, vector<64x128xf32>, vector<8x128xf32> -> vector<8x128xf32>
    %277 = vector.broadcast %274 : vector<1x128xf32> to vector<8x128xf32>
    %278 = arith.addf %276, %277 : vector<8x128xf32>
    %279 = arith.negf %278 : vector<8x128xf32>
    %280 = math.exp %279 : vector<8x128xf32>
    %cst_114 = arith.constant 1.000000e+00 : f32
    %281 = vector.broadcast %cst_114 : f32 to vector<8x128xf32>
    %282 = arith.addf %281, %280 : vector<8x128xf32>
    %283 = arith.divf %281, %282 : vector<8x128xf32>
    %284 = math.tanh %278 : vector<8x128xf32>
    %285 = vector.extract_strided_slice %283 {offsets = [0, 0], sizes = [8, 32], strides = [1, 1]} : vector<8x128xf32> to vector<8x32xf32>
    %286 = vector.extract_strided_slice %283 {offsets = [0, 32], sizes = [8, 32], strides = [1, 1]} : vector<8x128xf32> to vector<8x32xf32>
    %287 = vector.extract_strided_slice %284 {offsets = [0, 64], sizes = [8, 32], strides = [1, 1]} : vector<8x128xf32> to vector<8x32xf32>
    %288 = vector.extract_strided_slice %283 {offsets = [0, 96], sizes = [8, 32], strides = [1, 1]} : vector<8x128xf32> to vector<8x32xf32>
    %289 = arith.mulf %286, %238 : vector<8x32xf32>
    %290 = arith.mulf %285, %287 : vector<8x32xf32>
    %291 = arith.addf %289, %290 : vector<8x32xf32>
    %292 = math.tanh %291 : vector<8x32xf32>
    %293 = arith.mulf %288, %292 : vector<8x32xf32>
    %c1_i32_115 = arith.constant 1 : i32
    %294 = arith.subi %c5_i32, %c1_i32_115 : i32
    %c0_116 = arith.constant 0 : index
    %c0_117 = arith.constant 0 : index
    %295 = vector.load %arg8[%c0_116, %c0_117] : memref<32x128xf32, #tpu.memory_space<vmem>>, vector<32x128xf32>
    %cst_118 = arith.constant dense<0.000000e+00> : vector<8x128xf32>
    %296 = tpu.matmul %293, %295, %cst_118 {dimension_numbers = #tpu.dot_dimension_numbers<[1], [0], [0], [1], [0, 0, 1, 1], [], []>} : vector<8x32xf32>, vector<32x128xf32>, vector<8x128xf32> -> vector<8x128xf32>
    %c0_119 = arith.constant 0 : index
    %c0_120 = arith.constant 0 : index
    %297 = vector.load %arg9[%c0_119, %c0_120] : memref<1x128xf32, #tpu.memory_space<vmem>>, vector<1x128xf32>
    %298 = vector.broadcast %297 : vector<1x128xf32> to vector<8x128xf32>
    %299 = arith.addf %296, %298 : vector<8x128xf32>
    %c8_i32_121 = arith.constant 8 : i32
    %300 = arith.muli %294, %c8_i32_121 : i32
    %301 = tpu.assume_multiple %300, 8 : i32
    %302 = arith.index_cast %301 : i32 to index
    %c0_122 = arith.constant 0 : index
    %303 = vector.load %arg10[%302, %c0_122] : memref<64x128xf32, #tpu.memory_space<vmem>>, vector<8x128xf32>
    tpu.vector_store %arg10[%302, %c0_122], %299 {strides = array<i32>} : memref<64x128xf32, #tpu.memory_space<vmem>>, vector<8x128xf32>,
    %c6_i32 = arith.constant 6 : i32
    %c8_i32_123 = arith.constant 8 : i32
    %304 = arith.muli %c6_i32, %c8_i32_123 : i32
    %305 = tpu.assume_multiple %304, 8 : i32
    %306 = arith.index_cast %305 : i32 to index
    %c0_124 = arith.constant 0 : index
    %307 = vector.load %arg13[%306, %c0_124] : memref<64x128xf32, #tpu.memory_space<vmem>>, vector<8x128xf32>
    %c0_125 = arith.constant 0 : index
    %c0_126 = arith.constant 0 : index
    %308 = vector.load %arg3[%c0_125, %c0_126] : memref<32x128xf32, #tpu.memory_space<vmem>>, vector<32x128xf32>
    %cst_127 = arith.constant dense<0.000000e+00> : vector<8x128xf32>
    %309 = tpu.matmul %272, %308, %cst_127 {dimension_numbers = #tpu.dot_dimension_numbers<[1], [0], [0], [1], [0, 0, 1, 1], [], []>} : vector<8x32xf32>, vector<32x128xf32>, vector<8x128xf32> -> vector<8x128xf32>
    %310 = arith.addf %307, %309 : vector<8x128xf32>
    %311 = arith.negf %310 : vector<8x128xf32>
    %312 = math.exp %311 : vector<8x128xf32>
    %cst_128 = arith.constant 1.000000e+00 : f32
    %313 = vector.broadcast %cst_128 : f32 to vector<8x128xf32>
    %314 = arith.addf %313, %312 : vector<8x128xf32>
    %315 = arith.divf %313, %314 : vector<8x128xf32>
    %316 = math.tanh %310 : vector<8x128xf32>
    %317 = vector.extract_strided_slice %315 {offsets = [0, 0], sizes = [8, 32], strides = [1, 1]} : vector<8x128xf32> to vector<8x32xf32>
    %318 = vector.extract_strided_slice %315 {offsets = [0, 32], sizes = [8, 32], strides = [1, 1]} : vector<8x128xf32> to vector<8x32xf32>
    %319 = vector.extract_strided_slice %316 {offsets = [0, 64], sizes = [8, 32], strides = [1, 1]} : vector<8x128xf32> to vector<8x32xf32>
    %320 = vector.extract_strided_slice %315 {offsets = [0, 96], sizes = [8, 32], strides = [1, 1]} : vector<8x128xf32> to vector<8x32xf32>
    %321 = arith.mulf %318, %270 : vector<8x32xf32>
    %322 = arith.mulf %317, %319 : vector<8x32xf32>
    %323 = arith.addf %321, %322 : vector<8x32xf32>
    %324 = math.tanh %323 : vector<8x32xf32>
    %325 = arith.mulf %320, %324 : vector<8x32xf32>
    %c0_129 = arith.constant 0 : index
    %c0_130 = arith.constant 0 : index
    %326 = vector.load %arg4[%c0_129, %c0_130] : memref<64x128xf32, #tpu.memory_space<vmem>>, vector<64x128xf32>
    %c0_131 = arith.constant 0 : index
    %c0_132 = arith.constant 0 : index
    %327 = vector.load %arg5[%c0_131, %c0_132] : memref<1x128xf32, #tpu.memory_space<vmem>>, vector<1x128xf32>
    %328 = tpu.concatenate %272, %293 in 1 : vector<8x32xf32>, vector<8x32xf32> -> vector<8x64xf32>
    %cst_133 = arith.constant dense<0.000000e+00> : vector<8x128xf32>
    %329 = tpu.matmul %328, %326, %cst_133 {dimension_numbers = #tpu.dot_dimension_numbers<[1], [0], [0], [1], [0, 0, 1, 1], [], []>} : vector<8x64xf32>, vector<64x128xf32>, vector<8x128xf32> -> vector<8x128xf32>
    %330 = vector.broadcast %327 : vector<1x128xf32> to vector<8x128xf32>
    %331 = arith.addf %329, %330 : vector<8x128xf32>
    %332 = arith.negf %331 : vector<8x128xf32>
    %333 = math.exp %332 : vector<8x128xf32>
    %cst_134 = arith.constant 1.000000e+00 : f32
    %334 = vector.broadcast %cst_134 : f32 to vector<8x128xf32>
    %335 = arith.addf %334, %333 : vector<8x128xf32>
    %336 = arith.divf %334, %335 : vector<8x128xf32>
    %337 = math.tanh %331 : vector<8x128xf32>
    %338 = vector.extract_strided_slice %336 {offsets = [0, 0], sizes = [8, 32], strides = [1, 1]} : vector<8x128xf32> to vector<8x32xf32>
    %339 = vector.extract_strided_slice %336 {offsets = [0, 32], sizes = [8, 32], strides = [1, 1]} : vector<8x128xf32> to vector<8x32xf32>
    %340 = vector.extract_strided_slice %337 {offsets = [0, 64], sizes = [8, 32], strides = [1, 1]} : vector<8x128xf32> to vector<8x32xf32>
    %341 = vector.extract_strided_slice %336 {offsets = [0, 96], sizes = [8, 32], strides = [1, 1]} : vector<8x128xf32> to vector<8x32xf32>
    %342 = arith.mulf %339, %291 : vector<8x32xf32>
    %343 = arith.mulf %338, %340 : vector<8x32xf32>
    %344 = arith.addf %342, %343 : vector<8x32xf32>
    %345 = math.tanh %344 : vector<8x32xf32>
    %346 = arith.mulf %341, %345 : vector<8x32xf32>
    %c1_i32_135 = arith.constant 1 : i32
    %347 = arith.subi %c6_i32, %c1_i32_135 : i32
    %c0_136 = arith.constant 0 : index
    %c0_137 = arith.constant 0 : index
    %348 = vector.load %arg8[%c0_136, %c0_137] : memref<32x128xf32, #tpu.memory_space<vmem>>, vector<32x128xf32>
    %cst_138 = arith.constant dense<0.000000e+00> : vector<8x128xf32>
    %349 = tpu.matmul %346, %348, %cst_138 {dimension_numbers = #tpu.dot_dimension_numbers<[1], [0], [0], [1], [0, 0, 1, 1], [], []>} : vector<8x32xf32>, vector<32x128xf32>, vector<8x128xf32> -> vector<8x128xf32>
    %c0_139 = arith.constant 0 : index
    %c0_140 = arith.constant 0 : index
    %350 = vector.load %arg9[%c0_139, %c0_140] : memref<1x128xf32, #tpu.memory_space<vmem>>, vector<1x128xf32>
    %351 = vector.broadcast %350 : vector<1x128xf32> to vector<8x128xf32>
    %352 = arith.addf %349, %351 : vector<8x128xf32>
    %c8_i32_141 = arith.constant 8 : i32
    %353 = arith.muli %347, %c8_i32_141 : i32
    %354 = tpu.assume_multiple %353, 8 : i32
    %355 = arith.index_cast %354 : i32 to index
    %c0_142 = arith.constant 0 : index
    %356 = vector.load %arg10[%355, %c0_142] : memref<64x128xf32, #tpu.memory_space<vmem>>, vector<8x128xf32>
    tpu.vector_store %arg10[%355, %c0_142], %352 {strides = array<i32>} : memref<64x128xf32, #tpu.memory_space<vmem>>, vector<8x128xf32>,
    %c7_i32 = arith.constant 7 : i32
    %c8_i32_143 = arith.constant 8 : i32
    %357 = arith.muli %c7_i32, %c8_i32_143 : i32
    %358 = tpu.assume_multiple %357, 8 : i32
    %359 = arith.index_cast %358 : i32 to index
    %c0_144 = arith.constant 0 : index
    %360 = vector.load %arg13[%359, %c0_144] : memref<64x128xf32, #tpu.memory_space<vmem>>, vector<8x128xf32>
    %c0_145 = arith.constant 0 : index
    %c0_146 = arith.constant 0 : index
    %361 = vector.load %arg3[%c0_145, %c0_146] : memref<32x128xf32, #tpu.memory_space<vmem>>, vector<32x128xf32>
    %cst_147 = arith.constant dense<0.000000e+00> : vector<8x128xf32>
    %362 = tpu.matmul %325, %361, %cst_147 {dimension_numbers = #tpu.dot_dimension_numbers<[1], [0], [0], [1], [0, 0, 1, 1], [], []>} : vector<8x32xf32>, vector<32x128xf32>, vector<8x128xf32> -> vector<8x128xf32>
    %363 = arith.addf %360, %362 : vector<8x128xf32>
    %364 = arith.negf %363 : vector<8x128xf32>
    %365 = math.exp %364 : vector<8x128xf32>
    %cst_148 = arith.constant 1.000000e+00 : f32
    %366 = vector.broadcast %cst_148 : f32 to vector<8x128xf32>
    %367 = arith.addf %366, %365 : vector<8x128xf32>
    %368 = arith.divf %366, %367 : vector<8x128xf32>
    %369 = math.tanh %363 : vector<8x128xf32>
    %370 = vector.extract_strided_slice %368 {offsets = [0, 0], sizes = [8, 32], strides = [1, 1]} : vector<8x128xf32> to vector<8x32xf32>
    %371 = vector.extract_strided_slice %368 {offsets = [0, 32], sizes = [8, 32], strides = [1, 1]} : vector<8x128xf32> to vector<8x32xf32>
    %372 = vector.extract_strided_slice %369 {offsets = [0, 64], sizes = [8, 32], strides = [1, 1]} : vector<8x128xf32> to vector<8x32xf32>
    %373 = vector.extract_strided_slice %368 {offsets = [0, 96], sizes = [8, 32], strides = [1, 1]} : vector<8x128xf32> to vector<8x32xf32>
    %374 = arith.mulf %371, %323 : vector<8x32xf32>
    %375 = arith.mulf %370, %372 : vector<8x32xf32>
    %376 = arith.addf %374, %375 : vector<8x32xf32>
    %377 = math.tanh %376 : vector<8x32xf32>
    %378 = arith.mulf %373, %377 : vector<8x32xf32>
    %c0_149 = arith.constant 0 : index
    %c0_150 = arith.constant 0 : index
    %379 = vector.load %arg4[%c0_149, %c0_150] : memref<64x128xf32, #tpu.memory_space<vmem>>, vector<64x128xf32>
    %c0_151 = arith.constant 0 : index
    %c0_152 = arith.constant 0 : index
    %380 = vector.load %arg5[%c0_151, %c0_152] : memref<1x128xf32, #tpu.memory_space<vmem>>, vector<1x128xf32>
    %381 = tpu.concatenate %325, %346 in 1 : vector<8x32xf32>, vector<8x32xf32> -> vector<8x64xf32>
    %cst_153 = arith.constant dense<0.000000e+00> : vector<8x128xf32>
    %382 = tpu.matmul %381, %379, %cst_153 {dimension_numbers = #tpu.dot_dimension_numbers<[1], [0], [0], [1], [0, 0, 1, 1], [], []>} : vector<8x64xf32>, vector<64x128xf32>, vector<8x128xf32> -> vector<8x128xf32>
    %383 = vector.broadcast %380 : vector<1x128xf32> to vector<8x128xf32>
    %384 = arith.addf %382, %383 : vector<8x128xf32>
    %385 = arith.negf %384 : vector<8x128xf32>
    %386 = math.exp %385 : vector<8x128xf32>
    %cst_154 = arith.constant 1.000000e+00 : f32
    %387 = vector.broadcast %cst_154 : f32 to vector<8x128xf32>
    %388 = arith.addf %387, %386 : vector<8x128xf32>
    %389 = arith.divf %387, %388 : vector<8x128xf32>
    %390 = math.tanh %384 : vector<8x128xf32>
    %391 = vector.extract_strided_slice %389 {offsets = [0, 0], sizes = [8, 32], strides = [1, 1]} : vector<8x128xf32> to vector<8x32xf32>
    %392 = vector.extract_strided_slice %389 {offsets = [0, 32], sizes = [8, 32], strides = [1, 1]} : vector<8x128xf32> to vector<8x32xf32>
    %393 = vector.extract_strided_slice %390 {offsets = [0, 64], sizes = [8, 32], strides = [1, 1]} : vector<8x128xf32> to vector<8x32xf32>
    %394 = vector.extract_strided_slice %389 {offsets = [0, 96], sizes = [8, 32], strides = [1, 1]} : vector<8x128xf32> to vector<8x32xf32>
    %395 = arith.mulf %392, %344 : vector<8x32xf32>
    %396 = arith.mulf %391, %393 : vector<8x32xf32>
    %397 = arith.addf %395, %396 : vector<8x32xf32>
    %398 = math.tanh %397 : vector<8x32xf32>
    %399 = arith.mulf %394, %398 : vector<8x32xf32>
    %c1_i32_155 = arith.constant 1 : i32
    %400 = arith.subi %c7_i32, %c1_i32_155 : i32
    %c0_156 = arith.constant 0 : index
    %c0_157 = arith.constant 0 : index
    %401 = vector.load %arg8[%c0_156, %c0_157] : memref<32x128xf32, #tpu.memory_space<vmem>>, vector<32x128xf32>
    %cst_158 = arith.constant dense<0.000000e+00> : vector<8x128xf32>
    %402 = tpu.matmul %399, %401, %cst_158 {dimension_numbers = #tpu.dot_dimension_numbers<[1], [0], [0], [1], [0, 0, 1, 1], [], []>} : vector<8x32xf32>, vector<32x128xf32>, vector<8x128xf32> -> vector<8x128xf32>
    %c0_159 = arith.constant 0 : index
    %c0_160 = arith.constant 0 : index
    %403 = vector.load %arg9[%c0_159, %c0_160] : memref<1x128xf32, #tpu.memory_space<vmem>>, vector<1x128xf32>
    %404 = vector.broadcast %403 : vector<1x128xf32> to vector<8x128xf32>
    %405 = arith.addf %402, %404 : vector<8x128xf32>
    %c8_i32_161 = arith.constant 8 : i32
    %406 = arith.muli %400, %c8_i32_161 : i32
    %407 = tpu.assume_multiple %406, 8 : i32
    %408 = arith.index_cast %407 : i32 to index
    %c0_162 = arith.constant 0 : index
    %409 = vector.load %arg10[%408, %c0_162] : memref<64x128xf32, #tpu.memory_space<vmem>>, vector<8x128xf32>
    tpu.vector_store %arg10[%408, %c0_162], %405 {strides = array<i32>} : memref<64x128xf32, #tpu.memory_space<vmem>>, vector<8x128xf32>,
    %c7_i32_163 = arith.constant 7 : i32
    %c0_164 = arith.constant 0 : index
    %c0_165 = arith.constant 0 : index
    %410 = vector.load %arg4[%c0_164, %c0_165] : memref<64x128xf32, #tpu.memory_space<vmem>>, vector<64x128xf32>
    %c0_166 = arith.constant 0 : index
    %c0_167 = arith.constant 0 : index
    %411 = vector.load %arg5[%c0_166, %c0_167] : memref<1x128xf32, #tpu.memory_space<vmem>>, vector<1x128xf32>
    %412 = tpu.concatenate %378, %399 in 1 : vector<8x32xf32>, vector<8x32xf32> -> vector<8x64xf32>
    %cst_168 = arith.constant dense<0.000000e+00> : vector<8x128xf32>
    %413 = tpu.matmul %412, %410, %cst_168 {dimension_numbers = #tpu.dot_dimension_numbers<[1], [0], [0], [1], [0, 0, 1, 1], [], []>} : vector<8x64xf32>, vector<64x128xf32>, vector<8x128xf32> -> vector<8x128xf32>
    %414 = vector.broadcast %411 : vector<1x128xf32> to vector<8x128xf32>
    %415 = arith.addf %413, %414 : vector<8x128xf32>
    %416 = arith.negf %415 : vector<8x128xf32>
    %417 = math.exp %416 : vector<8x128xf32>
    %cst_169 = arith.constant 1.000000e+00 : f32
    %418 = vector.broadcast %cst_169 : f32 to vector<8x128xf32>
    %419 = arith.addf %418, %417 : vector<8x128xf32>
    %420 = arith.divf %418, %419 : vector<8x128xf32>
    %421 = math.tanh %415 : vector<8x128xf32>
    %422 = vector.extract_strided_slice %420 {offsets = [0, 0], sizes = [8, 32], strides = [1, 1]} : vector<8x128xf32> to vector<8x32xf32>
    %423 = vector.extract_strided_slice %420 {offsets = [0, 32], sizes = [8, 32], strides = [1, 1]} : vector<8x128xf32> to vector<8x32xf32>
    %424 = vector.extract_strided_slice %421 {offsets = [0, 64], sizes = [8, 32], strides = [1, 1]} : vector<8x128xf32> to vector<8x32xf32>
    %425 = vector.extract_strided_slice %420 {offsets = [0, 96], sizes = [8, 32], strides = [1, 1]} : vector<8x128xf32> to vector<8x32xf32>
    %426 = arith.mulf %423, %397 : vector<8x32xf32>
    %427 = arith.mulf %422, %424 : vector<8x32xf32>
    %428 = arith.addf %426, %427 : vector<8x32xf32>
    %429 = math.tanh %428 : vector<8x32xf32>
    %430 = arith.mulf %425, %429 : vector<8x32xf32>
    %c0_170 = arith.constant 0 : index
    %c0_171 = arith.constant 0 : index
    %431 = vector.load %arg8[%c0_170, %c0_171] : memref<32x128xf32, #tpu.memory_space<vmem>>, vector<32x128xf32>
    %cst_172 = arith.constant dense<0.000000e+00> : vector<8x128xf32>
    %432 = tpu.matmul %430, %431, %cst_172 {dimension_numbers = #tpu.dot_dimension_numbers<[1], [0], [0], [1], [0, 0, 1, 1], [], []>} : vector<8x32xf32>, vector<32x128xf32>, vector<8x128xf32> -> vector<8x128xf32>
    %c0_173 = arith.constant 0 : index
    %c0_174 = arith.constant 0 : index
    %433 = vector.load %arg9[%c0_173, %c0_174] : memref<1x128xf32, #tpu.memory_space<vmem>>, vector<1x128xf32>
    %434 = vector.broadcast %433 : vector<1x128xf32> to vector<8x128xf32>
    %435 = arith.addf %432, %434 : vector<8x128xf32>
    %c56 = arith.constant 56 : index
    %c0_175 = arith.constant 0 : index
    %436 = vector.load %arg10[%c56, %c0_175] : memref<64x128xf32, #tpu.memory_space<vmem>>, vector<8x128xf32>
    tpu.vector_store %arg10[%c56, %c0_175], %435 {strides = array<i32>} : memref<64x128xf32, #tpu.memory_space<vmem>>, vector<8x128xf32>,
    %c0_176 = arith.constant 0 : index
    %c0_177 = arith.constant 0 : index
    %c0_178 = arith.constant 0 : index
    %437 = vector.load %arg11[%c0_176, %c0_177, %c0_178] : memref<2x8x32xf32, #tpu.memory_space<vmem>>, vector<1x8x32xf32>
    %438 = vector.shape_cast %437 : vector<1x8x32xf32> to vector<8x32xf32>
    %439 = vector.shape_cast %378 : vector<8x32xf32> to vector<1x8x32xf32>
    tpu.vector_store %arg11[%c0_176, %c0_177, %c0_178], %439 {strides = array<i32>} : memref<2x8x32xf32, #tpu.memory_space<vmem>>, vector<1x8x32xf32>,
    %c0_179 = arith.constant 0 : index
    %c0_180 = arith.constant 0 : index
    %c0_181 = arith.constant 0 : index
    %440 = vector.load %arg12[%c0_179, %c0_180, %c0_181] : memref<2x8x32xf32, #tpu.memory_space<vmem>>, vector<1x8x32xf32>
    %441 = vector.shape_cast %440 : vector<1x8x32xf32> to vector<8x32xf32>
    %442 = vector.shape_cast %376 : vector<8x32xf32> to vector<1x8x32xf32>
    tpu.vector_store %arg12[%c0_179, %c0_180, %c0_181], %442 {strides = array<i32>} : memref<2x8x32xf32, #tpu.memory_space<vmem>>, vector<1x8x32xf32>,
    %c1_182 = arith.constant 1 : index
    %c0_183 = arith.constant 0 : index
    %c0_184 = arith.constant 0 : index
    %443 = vector.load %arg11[%c1_182, %c0_183, %c0_184] : memref<2x8x32xf32, #tpu.memory_space<vmem>>, vector<1x8x32xf32>
    %444 = vector.shape_cast %443 : vector<1x8x32xf32> to vector<8x32xf32>
    %445 = vector.shape_cast %430 : vector<8x32xf32> to vector<1x8x32xf32>
    tpu.vector_store %arg11[%c1_182, %c0_183, %c0_184], %445 {strides = array<i32>} : memref<2x8x32xf32, #tpu.memory_space<vmem>>, vector<1x8x32xf32>,
    %c1_185 = arith.constant 1 : index
    %c0_186 = arith.constant 0 : index
    %c0_187 = arith.constant 0 : index
    %446 = vector.load %arg12[%c1_185, %c0_186, %c0_187] : memref<2x8x32xf32, #tpu.memory_space<vmem>>, vector<1x8x32xf32>
    %447 = vector.shape_cast %446 : vector<1x8x32xf32> to vector<8x32xf32>
    %448 = vector.shape_cast %428 : vector<8x32xf32> to vector<1x8x32xf32>
    tpu.vector_store %arg12[%c1_185, %c0_186, %c0_187], %448 {strides = array<i32>} : memref<2x8x32xf32, #tpu.memory_space<vmem>>, vector<1x8x32xf32>,
    return
  }
}

</mosaic_0001>

<llo_original>
// kernel: rnn_forward.1
$region0: #{rnn_forward.1}
  #allocation0 [shape = 'u32[]', space=smem, size = 0x4, offset = 0x4, fixed_abs, tag = 'smem constant byte address 0x4 - core index']
  #allocation1 [shape = 'u32[144,128]{1,0:T(1,128)}', space=vmem, size = 0x12000, scoped, tag = 'internal scratch']
  #allocation2 [shape = 'f32[64,128]{1,0:T(8,128)}', space=vmem, size = 0x8000, scoped, tag = 'scratch operand']
  %s0 = inlined_call_operand.vmem [shape: s32[64,1], index: 0, kind: input, shape index: {}]
  %s1 = inlined_call_operand.vmem [shape: f32[16,128], index: 1, kind: input, shape index: {}]
  %s2 = inlined_call_operand.hbm [shape: f32[1,128], index: 2, kind: input, shape index: {}]
  %s3 = inlined_call_operand.vmem [shape: f32[32,128], index: 3, kind: input, shape index: {}]
  %s4 = inlined_call_operand.vmem [shape: f32[64,128], index: 4, kind: input, shape index: {}]
  %s5 = inlined_call_operand.hbm [shape: f32[1,128], index: 5, kind: input, shape index: {}]
  %s6 = inlined_call_operand.vmem [shape: f32[2,8,32], index: 6, kind: input, shape index: {}]
  %s7 = inlined_call_operand.vmem [shape: f32[2,8,32], index: 7, kind: input, shape index: {}]
  %s8 = inlined_call_operand.vmem [shape: f32[32,128], index: 8, kind: input, shape index: {}]
  %s9 = inlined_call_operand.hbm [shape: f32[1,128], index: 9, kind: input, shape index: {}]
  %s10 = inlined_call_operand.vmem [shape: f32[64,128], index: 10, kind: output, shape index: {0}]
  %s11 = inlined_call_operand.vmem [shape: f32[2,8,32], index: 11, kind: output, shape index: {1}]
  %s12 = inlined_call_operand.vmem [shape: f32[2,8,32], index: 12, kind: output, shape index: {2}]
  %13 = xla_tuple %s10, %s11, %s12
  %s14 = sld [smem:[#allocation0]]
  $region78: #{rnn_forward.1} parent=0
    _
  %s16 = ssub.s32 1, %s14
  %s17 = scalar_select 0, %s16, %s14
  $region1: #{rnn_forward.1} parent=0
    #allocation3 [shape = 'u8[512]{0}', space=vmem, size = 0x400, scoped, tag = 'input window, operand 2, single buffered']
    #allocation4 [shape = 's32[1]{0}', space=sflag, size = 0x4, scoped, tag = 'scoped memory for rnn_forward.1']
    #allocation5 [shape = 'u8[512]{0}', space=vmem, size = 0x400, scoped, tag = 'input window, operand 5, single buffered']
    #allocation6 [shape = 's32[1]{0}', space=sflag, size = 0x4, scoped, tag = 'scoped memory for rnn_forward.1']
    #allocation7 [shape = 'u8[512]{0}', space=vmem, size = 0x400, scoped, tag = 'input window, operand 9, single buffered']
    %18 = vsyncpa [#allocation4], 0
    %19 = vsyncpa [#allocation6], 0
    // Predicated region
    $region2: #{rnn_forward.1} parent=1 // pred_check
      _
    $region3: #{rnn_forward.1} parent=1 // pred_check_branch
      %21 = sbr.rel (0) target = $region5
    $region4: #{rnn_forward.1} parent=1 // pred_region
      _
    $region5: #{rnn_forward.1} parent=1 // pred_fallthru
      _
    // Predicated region
    $region6: #{rnn_forward.1} parent=1 // pred_check
      _
    $region7: #{rnn_forward.1} parent=1 // pred_check_branch
      %23 = sbr.rel (0) target = $region9
    $region8: #{rnn_forward.1} parent=1 // pred_region
      _
    $region9: #{rnn_forward.1} parent=1 // pred_fallthru
      _
    // Predicated region
    $region10: #{rnn_forward.1} parent=1 // pred_check
      _
    $region11: #{rnn_forward.1} parent=1 // pred_check_branch
      %25 = sbr.rel (0) target = $region13
    $region12: #{rnn_forward.1} parent=1 // pred_region
      %s27 = ssub.s32 16, 16
      %28 = vsyncadd [#allocation4], %s27
      %s30 = sshll.u32 [#allocation3], 4
      %s31 = int_to_ptr.vmem [resolvable:$true] %s30
      %33 = dma.hbm_to_vmem [thread:$0]  %s2, 16, %s31, [#allocation4]
    $region13: #{rnn_forward.1} parent=1 // pred_fallthru
      _
    // Predicated region
    $region14: #{rnn_forward.1} parent=1 // pred_check
      _
    $region15: #{rnn_forward.1} parent=1 // pred_check_branch
      %35 = sbr.rel (0) target = $region17
    $region16: #{rnn_forward.1} parent=1 // pred_region
      _
    $region17: #{rnn_forward.1} parent=1 // pred_fallthru
      _
    // Predicated region
    $region18: #{rnn_forward.1} parent=1 // pred_check
      _
    $region19: #{rnn_forward.1} parent=1 // pred_check_branch
      %37 = sbr.rel (0) target = $region21
    $region20: #{rnn_forward.1} parent=1 // pred_region
      _
    $region21: #{rnn_forward.1} parent=1 // pred_fallthru
      _
    // Predicated region
    $region22: #{rnn_forward.1} parent=1 // pred_check
      _
    $region23: #{rnn_forward.1} parent=1 // pred_check_branch
      %39 = sbr.rel (0) target = $region25
    $region24: #{rnn_forward.1} parent=1 // pred_region
      %s41 = ssub.s32 16, 16
      %42 = vsyncadd [#allocation6], %s41
      %s44 = sshll.u32 [#allocation5], 4
      %s45 = int_to_ptr.vmem [resolvable:$true] %s44
      %47 = dma.hbm_to_vmem [thread:$0]  %s5, 16, %s45, [#allocation6]
    $region25: #{rnn_forward.1} parent=1 // pred_fallthru
      _
    // Predicated region
    $region26: #{rnn_forward.1} parent=1 // pred_check
      _
    $region27: #{rnn_forward.1} parent=1 // pred_check_branch
      %49 = sbr.rel (0) target = $region29
    $region28: #{rnn_forward.1} parent=1 // pred_region
      _
    $region29: #{rnn_forward.1} parent=1 // pred_fallthru
      _
    // Predicated region
    $region30: #{rnn_forward.1} parent=1 // pred_check
      _
    $region31: #{rnn_forward.1} parent=1 // pred_check_branch
      %51 = sbr.rel (0) target = $region33
    $region32: #{rnn_forward.1} parent=1 // pred_region
      _
    $region33: #{rnn_forward.1} parent=1 // pred_fallthru
      _
    // Predicated region
    $region34: #{rnn_forward.1} parent=1 // pred_check
      _
    $region35: #{rnn_forward.1} parent=1 // pred_check_branch
      %53 = sbr.rel (0) target = $region37
    $region36: #{rnn_forward.1} parent=1 // pred_region
      _
    $region37: #{rnn_forward.1} parent=1 // pred_fallthru
      _
    // Predicated region
    $region38: #{rnn_forward.1} parent=1 // pred_check
      _
    $region39: #{rnn_forward.1} parent=1 // pred_check_branch
      %55 = sbr.rel (0) target = $region41
    $region40: #{rnn_forward.1} parent=1 // pred_region
      %s57 = ssub.s32 16, 16
      %58 = vsyncadd [#allocation6], %s57
      %s60 = sshll.u32 [#allocation7], 4
      %s61 = int_to_ptr.vmem [resolvable:$true] %s60
      %63 = dma.hbm_to_vmem [thread:$0]  %s9, 16, %s61, [#allocation6]
    $region41: #{rnn_forward.1} parent=1 // pred_fallthru
      _
    // Predicated region
    $region42: #{rnn_forward.1} parent=1 // pred_check
      _
    $region43: #{rnn_forward.1} parent=1 // pred_check_branch
      %65 = sbr.rel (0) target = $region45
    $region44: #{rnn_forward.1} parent=1 // pred_region
      %66 = dma.done [#allocation4], 16
    $region45: #{rnn_forward.1} parent=1 // pred_fallthru
      _
    // Predicated region
    $region46: #{rnn_forward.1} parent=1 // pred_check
      _
    $region47: #{rnn_forward.1} parent=1 // pred_check_branch
      %68 = sbr.rel (0) target = $region49
    $region48: #{rnn_forward.1} parent=1 // pred_region
      %69 = dma.done [#allocation6], 16
    $region49: #{rnn_forward.1} parent=1 // pred_fallthru
      _
    // Predicated region
    $region50: #{rnn_forward.1} parent=1 // pred_check
      _
    $region51: #{rnn_forward.1} parent=1 // pred_check_branch
      %71 = sbr.rel (0) target = $region53
    $region52: #{rnn_forward.1} parent=1 // pred_region
      %72 = dma.done [#allocation6], 16
    $region53: #{rnn_forward.1} parent=1 // pred_fallthru
      _
    %v73 = vld [vmem:[%s0] sm:$0xff]
    %v74 = vld [vmem:[%s0 + $0x8] sm:$0xff]
    %v75 = vld [vmem:[%s0 + $0x10] sm:$0xff]
    %v76 = vld [vmem:[%s0 + $0x18] sm:$0xff]
    %v77 = vld [vmem:[%s0 + $0x20] sm:$0xff]
    %v78 = vld [vmem:[%s0 + $0x28] sm:$0xff]
    %v79 = vld [vmem:[%s0 + $0x30] sm:$0xff]
    %v80 = vld [vmem:[%s0 + $0x38] sm:$0xff]
    %v81 = vlaneseq
    %v82 = vand.u32 %v81, 127
    %83 = vset.pattern.permute.xlu0 0
    %84 = vperm.xlu0 %83, %v73
    %v85 = vpop.permute.xlu0 %84
    %86 = vset.pattern.permute.xlu0 0
    %87 = vperm.xlu0 %86, %v74
    %v88 = vpop.permute.xlu0 %87
    %89 = vset.pattern.permute.xlu0 0
    %90 = vperm.xlu0 %89, %v75
    %v91 = vpop.permute.xlu0 %90
    %92 = vset.pattern.permute.xlu0 0
    %93 = vperm.xlu0 %92, %v76
    %v94 = vpop.permute.xlu0 %93
    %95 = vset.pattern.permute.xlu0 0
    %96 = vperm.xlu0 %95, %v77
    %v97 = vpop.permute.xlu0 %96
    %98 = vset.pattern.permute.xlu0 0
    %99 = vperm.xlu0 %98, %v78
    %v100 = vpop.permute.xlu0 %99
    %101 = vset.pattern.permute.xlu0 0
    %102 = vperm.xlu0 %101, %v79
    %v103 = vpop.permute.xlu0 %102
    %104 = vset.pattern.permute.xlu0 0
    %105 = vperm.xlu0 %104, %v80
    %v106 = vpop.permute.xlu0 %105
    %vm107 = vcmp.eq.s32.totalorder %v85, %v82
    %vm108 = vcmp.eq.s32.totalorder %v88, %v82
    %vm109 = vcmp.eq.s32.totalorder %v91, %v82
    %vm110 = vcmp.eq.s32.totalorder %v94, %v82
    %vm111 = vcmp.eq.s32.totalorder %v97, %v82
    %vm112 = vcmp.eq.s32.totalorder %v100, %v82
    %vm113 = vcmp.eq.s32.totalorder %v103, %v82
    %vm114 = vcmp.eq.s32.totalorder %v106, %v82
    %v115 = vsel %vm107, 1, 0
    %v116 = vsel %vm108, 1, 0
    %v117 = vsel %vm109, 1, 0
    %v118 = vsel %vm110, 1, 0
    %v119 = vsel %vm111, 1, 0
    %v120 = vsel %vm112, 1, 0
    %v121 = vsel %vm113, 1, 0
    %v122 = vsel %vm114, 1, 0
    %v123 = vcvt.s32.f32 %v115
    %v124 = vcvt.s32.f32 %v116
    %v125 = vcvt.s32.f32 %v117
    %v126 = vcvt.s32.f32 %v118
    %v127 = vcvt.s32.f32 %v119
    %v128 = vcvt.s32.f32 %v120
    %v129 = vcvt.s32.f32 %v121
    %v130 = vcvt.s32.f32 %v122
    %v131 = vld [vmem:[%s1] sm:$0xff]
    %v132 = vld [vmem:[%s1 + $0x8] sm:$0xff]
    %v133 = vld [vmem:[#allocation3] sm:$0x1]
    %v135 = vlaneseq
    %v136 = vshrl.u32 %v135, 7
    %v137 = vsub.s32 0, %v136
    %v138 = vrot.slane %v133, %v137
    %vm140 = vcmask 130048
    %v142 = vsel %vm140, %v123, 0
    %v145 = vsel %vm140, %v124, 0
    %v148 = vsel %vm140, %v125, 0
    %v151 = vsel %vm140, %v126, 0
    %v154 = vsel %vm140, %v127, 0
    %v157 = vsel %vm140, %v128, 0
    %v160 = vsel %vm140, %v129, 0
    %v163 = vsel %vm140, %v130, 0
    %165 = vmatprep.subr.mxu0 0.0
    %166 = vmatpush1.msra.mxu0 0.0
    %167 = vmatprep.subr.mxu0 0.0
    %168 = vmatpush1.msra.mxu0 0.0
    %169 = vmatprep.subr.mxu0 0.0
    %170 = vmatpush1.msra.mxu0 0.0
    %171 = vmatprep.subr.mxu0 0.0
    %172 = vmatpush1.msra.mxu0 0.0
    %173 = vmatprep.subr.mxu0 0.0
    %174 = vmatpush1.msra.mxu0 0.0
    %175 = vmatprep.subr.mxu0 0.0
    %176 = vmatpush1.msra.mxu0 0.0
    %177 = vmatprep.subr.mxu0 0.0
    %178 = vmatpush1.msra.mxu0 0.0
    %179 = vmatprep.subr.mxu0 0.0
    %180 = vmatpush1.msra.mxu0 0.0
    %181 = vmatprep.subr.mxu0 0.0
    %182 = vmatpush1.msra.mxu0 0.0
    %183 = vmatprep.subr.mxu0 0.0
    %184 = vmatpush1.msra.mxu0 0.0
    %185 = vmatprep.subr.mxu0 0.0
    %186 = vmatpush1.msra.mxu0 0.0
    %187 = vmatprep.subr.mxu0 0.0
    %188 = vmatpush1.msra.mxu0 0.0
    %189 = vmatprep.subr.mxu0 0.0
    %190 = vmatpush1.msra.mxu0 0.0
    %191 = vmatprep.subr.mxu0 0.0
    %192 = vmatpush1.msra.mxu0 0.0
    %193 = vmatprep.subr.mxu0 0.0
    %194 = vmatpush1.msra.mxu0 %v132
    %195 = vmatprep.subr.mxu0 0.0
    %196 = vmatpush1.msra.mxu0 %v131
    %197 = vmatprep.subr.mxu0 0.0
    %198 = vmatpush2.msra.mxu0 0.0
    %199 = vmatprep.subr.mxu0 0.0
    %200 = vmatpush2.msra.mxu0 0.0
    %201 = vmatprep.subr.mxu0 0.0
    %202 = vmatpush2.msra.mxu0 0.0
    %203 = vmatprep.subr.mxu0 0.0
    %204 = vmatpush2.msra.mxu0 0.0
    %205 = vmatprep.subr.mxu0 0.0
    %206 = vmatpush2.msra.mxu0 0.0
    %207 = vmatprep.subr.mxu0 0.0
    %208 = vmatpush2.msra.mxu0 0.0
    %209 = vmatprep.subr.mxu0 0.0
    %210 = vmatpush2.msra.mxu0 0.0
    %211 = vmatprep.subr.mxu0 0.0
    %212 = vmatpush2.msra.mxu0 0.0
    %213 = vmatprep.subr.mxu0 0.0
    %214 = vmatpush2.msra.mxu0 0.0
    %215 = vmatprep.subr.mxu0 0.0
    %216 = vmatpush2.msra.mxu0 0.0
    %217 = vmatprep.subr.mxu0 0.0
    %218 = vmatpush2.msra.mxu0 0.0
    %219 = vmatprep.subr.mxu0 0.0
    %220 = vmatpush2.msra.mxu0 0.0
    %221 = vmatprep.subr.mxu0 0.0
    %222 = vmatpush2.msra.mxu0 0.0
    %223 = vmatprep.subr.mxu0 0.0
    %224 = vmatpush2.msra.mxu0 0.0
    %225 = vmatprep.subr.mxu0 0.0
    %226 = vmatpush2.msra.mxu0 0.0
    %227 = vmatprep.subr.mxu0 0.0
    %228 = vmatpush2.msra.mxu0 0.0
    %229 = vmatprep.mubr.f32.mxu0 0.0
    %230 = vmatmul.mubr.f32.gmra.mxu0 %v142
    %v231 = vpop.f32.mrf.mxu0
    %v232 = vadd.f32 %v138, %v231
    %v233 = vpop.f32.mrf.mxu0
    %234 = vmatprep.mubr.f32.mxu0 0.0
    %235 = vmatmul.mubr.f32.gmra.mxu0 %v145
    %v236 = vpop.f32.mrf.mxu0
    %v237 = vadd.f32 %v138, %v236
    %v238 = vpop.f32.mrf.mxu0
    %239 = vmatprep.mubr.f32.mxu0 0.0
    %240 = vmatmul.mubr.f32.gmra.mxu0 %v148
    %v241 = vpop.f32.mrf.mxu0
    %v242 = vadd.f32 %v138, %v241
    %v243 = vpop.f32.mrf.mxu0
    %244 = vmatprep.mubr.f32.mxu0 0.0
    %245 = vmatmul.mubr.f32.gmra.mxu0 %v151
    %v246 = vpop.f32.mrf.mxu0
    %v247 = vadd.f32 %v138, %v246
    %v248 = vpop.f32.mrf.mxu0
    %249 = vmatprep.mubr.f32.mxu0 0.0
    %250 = vmatmul.mubr.f32.gmra.mxu0 %v154
    %v251 = vpop.f32.mrf.mxu0
    %v252 = vadd.f32 %v138, %v251
    %v253 = vpop.f32.mrf.mxu0
    %254 = vmatprep.mubr.f32.mxu0 0.0
    %255 = vmatmul.mubr.f32.gmra.mxu0 %v157
    %v256 = vpop.f32.mrf.mxu0
    %v257 = vadd.f32 %v138, %v256
    %v258 = vpop.f32.mrf.mxu0
    %259 = vmatprep.mubr.f32.mxu0 0.0
    %260 = vmatmul.mubr.f32.gmra.mxu0 %v160
    %v261 = vpop.f32.mrf.mxu0
    %v262 = vadd.f32 %v138, %v261
    %v263 = vpop.f32.mrf.mxu0
    %264 = vmatprep.mubr.f32.mxu0 0.0
    %265 = vmatmul.mubr.f32.gmra.mxu0 %v163
    %v266 = vpop.f32.mrf.mxu0
    %v267 = vadd.f32 %v138, %v266
    %v268 = vpop.f32.mrf.mxu0
    %269 = vdwg.mxu0
    %270 = vst [vmem:[#allocation2] sm:$0xff] %v232
    %271 = vst [vmem:[#allocation2 + $0x8] sm:$0xff] %v237
    %272 = vst [vmem:[#allocation2 + $0x10] sm:$0xff] %v242
    %273 = vst [vmem:[#allocation2 + $0x18] sm:$0xff] %v247
    %274 = vst [vmem:[#allocation2 + $0x20] sm:$0xff] %v252
    %275 = vst [vmem:[#allocation2 + $0x28] sm:$0xff] %v257
    %276 = vst [vmem:[#allocation2 + $0x30] sm:$0xff] %v262
    %277 = vst [vmem:[#allocation2 + $0x38] sm:$0xff] %v267
    %v278 = vld [vmem:[%s6] sm:$0xff]
    %s279 = scalar_lea.vmem %s6, 8
    %v280 = vld [vmem:[%s279] sm:$0xff]
    %v281 = vld [vmem:[%s7] sm:$0xff]
    %s282 = scalar_lea.vmem %s7, 8
    %v283 = vld [vmem:[%s282] sm:$0xff]
    %v284 = vld [vmem:[#allocation2] sm:$0xff]
    %v285 = vld [vmem:[%s3] sm:$0xff]
    %v286 = vld [vmem:[%s3 + $0x8] sm:$0xff]
    %v287 = vld [vmem:[%s3 + $0x10] sm:$0xff]
    %v288 = vld [vmem:[%s3 + $0x18] sm:$0xff]
    %vm289 = vcmask 261120
    %v291 = vsel %vm289, %v278, 0
    %293 = vmatprep.subr.mxu0 0.0
    %294 = vmatpush1.msra.mxu0 0.0
    %295 = vmatprep.subr.mxu0 0.0
    %296 = vmatpush1.msra.mxu0 0.0
    %297 = vmatprep.subr.mxu0 0.0
    %298 = vmatpush1.msra.mxu0 0.0
    %299 = vmatprep.subr.mxu0 0.0
    %300 = vmatpush1.msra.mxu0 0.0
    %301 = vmatprep.subr.mxu0 0.0
    %302 = vmatpush1.msra.mxu0 0.0
    %303 = vmatprep.subr.mxu0 0.0
    %304 = vmatpush1.msra.mxu0 0.0
    %305 = vmatprep.subr.mxu0 0.0
    %306 = vmatpush1.msra.mxu0 0.0
    %307 = vmatprep.subr.mxu0 0.0
    %308 = vmatpush1.msra.mxu0 0.0
    %309 = vmatprep.subr.mxu0 0.0
    %310 = vmatpush1.msra.mxu0 0.0
    %311 = vmatprep.subr.mxu0 0.0
    %312 = vmatpush1.msra.mxu0 0.0
    %313 = vmatprep.subr.mxu0 0.0
    %314 = vmatpush1.msra.mxu0 0.0
    %315 = vmatprep.subr.mxu0 0.0
    %316 = vmatpush1.msra.mxu0 0.0
    %317 = vmatprep.subr.mxu0 0.0
    %318 = vmatpush1.msra.mxu0 %v288
    %319 = vmatprep.subr.mxu0 0.0
    %320 = vmatpush1.msra.mxu0 %v287
    %321 = vmatprep.subr.mxu0 0.0
    %322 = vmatpush1.msra.mxu0 %v286
    %323 = vmatprep.subr.mxu0 0.0
    %324 = vmatpush1.msra.mxu0 %v285
    %325 = vmatprep.subr.mxu0 0.0
    %326 = vmatpush2.msra.mxu0 0.0
    %327 = vmatprep.subr.mxu0 0.0
    %328 = vmatpush2.msra.mxu0 0.0
    %329 = vmatprep.subr.mxu0 0.0
    %330 = vmatpush2.msra.mxu0 0.0
    %331 = vmatprep.subr.mxu0 0.0
    %332 = vmatpush2.msra.mxu0 0.0
    %333 = vmatprep.subr.mxu0 0.0
    %334 = vmatpush2.msra.mxu0 0.0
    %335 = vmatprep.subr.mxu0 0.0
    %336 = vmatpush2.msra.mxu0 0.0
    %337 = vmatprep.subr.mxu0 0.0
    %338 = vmatpush2.msra.mxu0 0.0
    %339 = vmatprep.subr.mxu0 0.0
    %340 = vmatpush2.msra.mxu0 0.0
    %341 = vmatprep.subr.mxu0 0.0
    %342 = vmatpush2.msra.mxu0 0.0
    %343 = vmatprep.subr.mxu0 0.0
    %344 = vmatpush2.msra.mxu0 0.0
    %345 = vmatprep.subr.mxu0 0.0
    %346 = vmatpush2.msra.mxu0 0.0
    %347 = vmatprep.subr.mxu0 0.0
    %348 = vmatpush2.msra.mxu0 0.0
    %349 = vmatprep.subr.mxu0 0.0
    %350 = vmatpush2.msra.mxu0 0.0
    %351 = vmatprep.subr.mxu0 0.0
    %352 = vmatpush2.msra.mxu0 0.0
    %353 = vmatprep.subr.mxu0 0.0
    %354 = vmatpush2.msra.mxu0 0.0
    %355 = vmatprep.subr.mxu0 0.0
    %356 = vmatpush2.msra.mxu0 0.0
    %357 = vmatprep.mubr.f32.mxu0 0.0
    %358 = vmatmul.mubr.f32.gmra.mxu0 %v291
    %v359 = vpop.f32.mrf.mxu0
    %v360 = vadd.f32 0.0, %v359
    %v361 = vpop.f32.mrf.mxu0
    %362 = vdwg.mxu0
    %v363 = vadd.f32 %v284, %v360
    %v364 = vxor.u32 %v363, 2147483648
    %v365 = vmul.f32 %v364, 1.442695
    %v366 = vpow.pop %v365
    %v367 = vadd.f32 %v366, 1.0
    %v368 = vrcp.pop %v367
    %v369 = vmul.f32 1.0, %v368
    %v370 = vtanh.pop %v363
    %372 = vrot.lane.b32.xlu0 %v281, 32
    %v373 = vpop.permute.xlu0 %372
    %v375 = vmul.f32 %v369, %v373
    %377 = vrot.lane.b32.xlu0 %v370, 64
    %v378 = vpop.permute.xlu0 %377
    %v380 = vmul.f32 %v369, %v378
    %382 = vrot.lane.b32.xlu0 %v380, 32
    %v383 = vpop.permute.xlu0 %382
    %v385 = vadd.f32 %v375, %v383
    %v386 = vtanh.pop %v385
    %388 = vrot.lane.b32.xlu0 %v386, 64
    %v389 = vpop.permute.xlu0 %388
    %v391 = vmul.f32 %v369, %v389
    %s392 = scalar_lea.vmem [#allocation2], 8
    %v393 = vld [vmem:[%s392] sm:$0xff]
    %395 = vrot.lane.b32.xlu0 %v391, 32
    %v396 = vpop.permute.xlu0 %395
    %v397 = vsel %vm289, %v396, 0
    %399 = vmatprep.subr.mxu0 0.0
    %400 = vmatpush1.msra.mxu0 0.0
    %401 = vmatprep.subr.mxu0 0.0
    %402 = vmatpush1.msra.mxu0 0.0
    %403 = vmatprep.subr.mxu0 0.0
    %404 = vmatpush1.msra.mxu0 0.0
    %405 = vmatprep.subr.mxu0 0.0
    %406 = vmatpush1.msra.mxu0 0.0
    %407 = vmatprep.subr.mxu0 0.0
    %408 = vmatpush1.msra.mxu0 0.0
    %409 = vmatprep.subr.mxu0 0.0
    %410 = vmatpush1.msra.mxu0 0.0
    %411 = vmatprep.subr.mxu0 0.0
    %412 = vmatpush1.msra.mxu0 0.0
    %413 = vmatprep.subr.mxu0 0.0
    %414 = vmatpush1.msra.mxu0 0.0
    %415 = vmatprep.subr.mxu0 0.0
    %416 = vmatpush1.msra.mxu0 0.0
    %417 = vmatprep.subr.mxu0 0.0
    %418 = vmatpush1.msra.mxu0 0.0
    %419 = vmatprep.subr.mxu0 0.0
    %420 = vmatpush1.msra.mxu0 0.0
    %421 = vmatprep.subr.mxu0 0.0
    %422 = vmatpush1.msra.mxu0 0.0
    %423 = vmatprep.subr.mxu0 0.0
    %424 = vmatpush1.msra.mxu0 %v288
    %425 = vmatprep.subr.mxu0 0.0
    %426 = vmatpush1.msra.mxu0 %v287
    %427 = vmatprep.subr.mxu0 0.0
    %428 = vmatpush1.msra.mxu0 %v286
    %429 = vmatprep.subr.mxu0 0.0
    %430 = vmatpush1.msra.mxu0 %v285
    %431 = vmatprep.subr.mxu0 0.0
    %432 = vmatpush2.msra.mxu0 0.0
    %433 = vmatprep.subr.mxu0 0.0
    %434 = vmatpush2.msra.mxu0 0.0
    %435 = vmatprep.subr.mxu0 0.0
    %436 = vmatpush2.msra.mxu0 0.0
    %437 = vmatprep.subr.mxu0 0.0
    %438 = vmatpush2.msra.mxu0 0.0
    %439 = vmatprep.subr.mxu0 0.0
    %440 = vmatpush2.msra.mxu0 0.0
    %441 = vmatprep.subr.mxu0 0.0
    %442 = vmatpush2.msra.mxu0 0.0
    %443 = vmatprep.subr.mxu0 0.0
    %444 = vmatpush2.msra.mxu0 0.0
    %445 = vmatprep.subr.mxu0 0.0
    %446 = vmatpush2.msra.mxu0 0.0
    %447 = vmatprep.subr.mxu0 0.0
    %448 = vmatpush2.msra.mxu0 0.0
    %449 = vmatprep.subr.mxu0 0.0
    %450 = vmatpush2.msra.mxu0 0.0
    %451 = vmatprep.subr.mxu0 0.0
    %452 = vmatpush2.msra.mxu0 0.0
    %453 = vmatprep.subr.mxu0 0.0
    %454 = vmatpush2.msra.mxu0 0.0
    %455 = vmatprep.subr.mxu0 0.0
    %456 = vmatpush2.msra.mxu0 0.0
    %457 = vmatprep.subr.mxu0 0.0
    %458 = vmatpush2.msra.mxu0 0.0
    %459 = vmatprep.subr.mxu0 0.0
    %460 = vmatpush2.msra.mxu0 0.0
    %461 = vmatprep.subr.mxu0 0.0
    %462 = vmatpush2.msra.mxu0 0.0
    %463 = vmatprep.mubr.f32.mxu0 0.0
    %464 = vmatmul.mubr.f32.gmra.mxu0 %v397
    %v465 = vpop.f32.mrf.mxu0
    %v466 = vadd.f32 0.0, %v465
    %v467 = vpop.f32.mrf.mxu0
    %468 = vdwg.mxu0
    %v469 = vadd.f32 %v393, %v466
    %v470 = vxor.u32 %v469, 2147483648
    %v471 = vmul.f32 %v470, 1.442695
    %v472 = vpow.pop %v471
    %v473 = vadd.f32 %v472, 1.0
    %v474 = vrcp.pop %v473
    %v475 = vmul.f32 1.0, %v474
    %v476 = vtanh.pop %v469
    %v477 = vmul.f32 %v475, %v385
    %479 = vrot.lane.b32.xlu0 %v476, 64
    %v480 = vpop.permute.xlu0 %479
    %v482 = vmul.f32 %v475, %v480
    %484 = vrot.lane.b32.xlu0 %v482, 32
    %v485 = vpop.permute.xlu0 %484
    %v487 = vadd.f32 %v477, %v485
    %v488 = vtanh.pop %v487
    %490 = vrot.lane.b32.xlu0 %v488, 64
    %v491 = vpop.permute.xlu0 %490
    %v493 = vmul.f32 %v475, %v491
    %v494 = vld [vmem:[%s4] sm:$0xff]
    %v495 = vld [vmem:[%s4 + $0x8] sm:$0xff]
    %v496 = vld [vmem:[%s4 + $0x10] sm:$0xff]
    %v497 = vld [vmem:[%s4 + $0x18] sm:$0xff]
    %v498 = vld [vmem:[%s4 + $0x20] sm:$0xff]
    %v499 = vld [vmem:[%s4 + $0x28] sm:$0xff]
    %v500 = vld [vmem:[%s4 + $0x30] sm:$0xff]
    %v501 = vld [vmem:[%s4 + $0x38] sm:$0xff]
    %v502 = vld [vmem:[#allocation5] sm:$0x1]
    %505 = vrot.lane.b32.xlu0 %v280, 32
    %v506 = vpop.permute.xlu0 %505
    %v508 = vsel %vm289, %v396, %v506
    %v510 = vlaneseq
    %v511 = vshrl.u32 %v510, 7
    %v512 = vsub.s32 0, %v511
    %v513 = vrot.slane %v502, %v512
    %vm515 = vcmask 523264
    %v517 = vsel %vm515, %v508, 0
    %519 = vmatprep.subr.mxu0 0.0
    %520 = vmatpush1.msra.mxu0 0.0
    %521 = vmatprep.subr.mxu0 0.0
    %522 = vmatpush1.msra.mxu0 0.0
    %523 = vmatprep.subr.mxu0 0.0
    %524 = vmatpush1.msra.mxu0 0.0
    %525 = vmatprep.subr.mxu0 0.0
    %526 = vmatpush1.msra.mxu0 0.0
    %527 = vmatprep.subr.mxu0 0.0
    %528 = vmatpush1.msra.mxu0 0.0
    %529 = vmatprep.subr.mxu0 0.0
    %530 = vmatpush1.msra.mxu0 0.0
    %531 = vmatprep.subr.mxu0 0.0
    %532 = vmatpush1.msra.mxu0 0.0
    %533 = vmatprep.subr.mxu0 0.0
    %534 = vmatpush1.msra.mxu0 0.0
    %535 = vmatprep.subr.mxu0 0.0
    %536 = vmatpush1.msra.mxu0 %v501
    %537 = vmatprep.subr.mxu0 0.0
    %538 = vmatpush1.msra.mxu0 %v500
    %539 = vmatprep.subr.mxu0 0.0
    %540 = vmatpush1.msra.mxu0 %v499
    %541 = vmatprep.subr.mxu0 0.0
    %542 = vmatpush1.msra.mxu0 %v498
    %543 = vmatprep.subr.mxu0 0.0
    %544 = vmatpush1.msra.mxu0 %v497
    %545 = vmatprep.subr.mxu0 0.0
    %546 = vmatpush1.msra.mxu0 %v496
    %547 = vmatprep.subr.mxu0 0.0
    %548 = vmatpush1.msra.mxu0 %v495
    %549 = vmatprep.subr.mxu0 0.0
    %550 = vmatpush1.msra.mxu0 %v494
    %551 = vmatprep.subr.mxu0 0.0
    %552 = vmatpush2.msra.mxu0 0.0
    %553 = vmatprep.subr.mxu0 0.0
    %554 = vmatpush2.msra.mxu0 0.0
    %555 = vmatprep.subr.mxu0 0.0
    %556 = vmatpush2.msra.mxu0 0.0
    %557 = vmatprep.subr.mxu0 0.0
    %558 = vmatpush2.msra.mxu0 0.0
    %559 = vmatprep.subr.mxu0 0.0
    %560 = vmatpush2.msra.mxu0 0.0
    %561 = vmatprep.subr.mxu0 0.0
    %562 = vmatpush2.msra.mxu0 0.0
    %563 = vmatprep.subr.mxu0 0.0
    %564 = vmatpush2.msra.mxu0 0.0
    %565 = vmatprep.subr.mxu0 0.0
    %566 = vmatpush2.msra.mxu0 0.0
    %567 = vmatprep.subr.mxu0 0.0
    %568 = vmatpush2.msra.mxu0 0.0
    %569 = vmatprep.subr.mxu0 0.0
    %570 = vmatpush2.msra.mxu0 0.0
    %571 = vmatprep.subr.mxu0 0.0
    %572 = vmatpush2.msra.mxu0 0.0
    %573 = vmatprep.subr.mxu0 0.0
    %574 = vmatpush2.msra.mxu0 0.0
    %575 = vmatprep.subr.mxu0 0.0
    %576 = vmatpush2.msra.mxu0 0.0
    %577 = vmatprep.subr.mxu0 0.0
    %578 = vmatpush2.msra.mxu0 0.0
    %579 = vmatprep.subr.mxu0 0.0
    %580 = vmatpush2.msra.mxu0 0.0
    %581 = vmatprep.subr.mxu0 0.0
    %582 = vmatpush2.msra.mxu0 0.0
    %583 = vmatprep.mubr.f32.mxu0 0.0
    %584 = vmatmul.mubr.f32.gmra.mxu0 %v517
    %v585 = vpop.f32.mrf.mxu0
    %v586 = vadd.f32 %v513, %v585
    %v587 = vpop.f32.mrf.mxu0
    %588 = vdwg.mxu0
    %v589 = vxor.u32 %v586, 2147483648
    %v590 = vmul.f32 %v589, 1.442695
    %v591 = vpow.pop %v590
    %v592 = vadd.f32 %v591, 1.0
    %v593 = vrcp.pop %v592
    %v594 = vmul.f32 1.0, %v593
    %v595 = vtanh.pop %v586
    %597 = vrot.lane.b32.xlu0 %v283, 32
    %v598 = vpop.permute.xlu0 %597
    %v600 = vmul.f32 %v594, %v598
    %602 = vrot.lane.b32.xlu0 %v595, 64
    %v603 = vpop.permute.xlu0 %602
    %v605 = vmul.f32 %v594, %v603
    %607 = vrot.lane.b32.xlu0 %v605, 32
    %v608 = vpop.permute.xlu0 %607
    %v610 = vadd.f32 %v600, %v608
    %v611 = vtanh.pop %v610
    %613 = vrot.lane.b32.xlu0 %v611, 64
    %v614 = vpop.permute.xlu0 %613
    %v616 = vmul.f32 %v594, %v614
    %v617 = vld [vmem:[%s8] sm:$0xff]
    %v618 = vld [vmem:[%s8 + $0x8] sm:$0xff]
    %v619 = vld [vmem:[%s8 + $0x10] sm:$0xff]
    %v620 = vld [vmem:[%s8 + $0x18] sm:$0xff]
    %v621 = vld [vmem:[#allocation7] sm:$0x1]
    %v623 = vlaneseq
    %v624 = vshrl.u32 %v623, 7
    %v625 = vsub.s32 0, %v624
    %v626 = vrot.slane %v621, %v625
    %629 = vrot.lane.b32.xlu0 %v616, 32
    %v630 = vpop.permute.xlu0 %629
    %v631 = vsel %vm289, %v630, 0
    %633 = vmatprep.subr.mxu0 0.0
    %634 = vmatpush1.msra.mxu0 0.0
    %635 = vmatprep.subr.mxu0 0.0
    %636 = vmatpush1.msra.mxu0 0.0
    %637 = vmatprep.subr.mxu0 0.0
    %638 = vmatpush1.msra.mxu0 0.0
    %639 = vmatprep.subr.mxu0 0.0
    %640 = vmatpush1.msra.mxu0 0.0
    %641 = vmatprep.subr.mxu0 0.0
    %642 = vmatpush1.msra.mxu0 0.0
    %643 = vmatprep.subr.mxu0 0.0
    %644 = vmatpush1.msra.mxu0 0.0
    %645 = vmatprep.subr.mxu0 0.0
    %646 = vmatpush1.msra.mxu0 0.0
    %647 = vmatprep.subr.mxu0 0.0
    %648 = vmatpush1.msra.mxu0 0.0
    %649 = vmatprep.subr.mxu0 0.0
    %650 = vmatpush1.msra.mxu0 0.0
    %651 = vmatprep.subr.mxu0 0.0
    %652 = vmatpush1.msra.mxu0 0.0
    %653 = vmatprep.subr.mxu0 0.0
    %654 = vmatpush1.msra.mxu0 0.0
    %655 = vmatprep.subr.mxu0 0.0
    %656 = vmatpush1.msra.mxu0 0.0
    %657 = vmatprep.subr.mxu0 0.0
    %658 = vmatpush1.msra.mxu0 %v620
    %659 = vmatprep.subr.mxu0 0.0
    %660 = vmatpush1.msra.mxu0 %v619
    %661 = vmatprep.subr.mxu0 0.0
    %662 = vmatpush1.msra.mxu0 %v618
    %663 = vmatprep.subr.mxu0 0.0
    %664 = vmatpush1.msra.mxu0 %v617
    %665 = vmatprep.subr.mxu0 0.0
    %666 = vmatpush2.msra.mxu0 0.0
    %667 = vmatprep.subr.mxu0 0.0
    %668 = vmatpush2.msra.mxu0 0.0
    %669 = vmatprep.subr.mxu0 0.0
    %670 = vmatpush2.msra.mxu0 0.0
    %671 = vmatprep.subr.mxu0 0.0
    %672 = vmatpush2.msra.mxu0 0.0
    %673 = vmatprep.subr.mxu0 0.0
    %674 = vmatpush2.msra.mxu0 0.0
    %675 = vmatprep.subr.mxu0 0.0
    %676 = vmatpush2.msra.mxu0 0.0
    %677 = vmatprep.subr.mxu0 0.0
    %678 = vmatpush2.msra.mxu0 0.0
    %679 = vmatprep.subr.mxu0 0.0
    %680 = vmatpush2.msra.mxu0 0.0
    %681 = vmatprep.subr.mxu0 0.0
    %682 = vmatpush2.msra.mxu0 0.0
    %683 = vmatprep.subr.mxu0 0.0
    %684 = vmatpush2.msra.mxu0 0.0
    %685 = vmatprep.subr.mxu0 0.0
    %686 = vmatpush2.msra.mxu0 0.0
    %687 = vmatprep.subr.mxu0 0.0
    %688 = vmatpush2.msra.mxu0 0.0
    %689 = vmatprep.subr.mxu0 0.0
    %690 = vmatpush2.msra.mxu0 0.0
    %691 = vmatprep.subr.mxu0 0.0
    %692 = vmatpush2.msra.mxu0 0.0
    %693 = vmatprep.subr.mxu0 0.0
    %694 = vmatpush2.msra.mxu0 0.0
    %695 = vmatprep.subr.mxu0 0.0
    %696 = vmatpush2.msra.mxu0 0.0
    %697 = vmatprep.mubr.f32.mxu0 0.0
    %698 = vmatmul.mubr.f32.gmra.mxu0 %v631
    %v699 = vpop.f32.mrf.mxu0
    %v700 = vadd.f32 %v626, %v699
    %v701 = vpop.f32.mrf.mxu0
    %702 = vdwg.mxu0
    %703 = vst [vmem:[%s10] sm:$0xff] %v700
    %s704 = scalar_lea.vmem [#allocation2], 16
    %v705 = vld [vmem:[%s704] sm:$0xff]
    %v706 = vld [vmem:[%s3] sm:$0xff]
    %v707 = vld [vmem:[%s3 + $0x8] sm:$0xff]
    %v708 = vld [vmem:[%s3 + $0x10] sm:$0xff]
    %v709 = vld [vmem:[%s3 + $0x18] sm:$0xff]
    %711 = vrot.lane.b32.xlu0 %v493, 32
    %v712 = vpop.permute.xlu0 %711
    %v713 = vsel %vm289, %v712, 0
    %715 = vmatprep.subr.mxu0 0.0
    %716 = vmatpush1.msra.mxu0 0.0
    %717 = vmatprep.subr.mxu0 0.0
    %718 = vmatpush1.msra.mxu0 0.0
    %719 = vmatprep.subr.mxu0 0.0
    %720 = vmatpush1.msra.mxu0 0.0
    %721 = vmatprep.subr.mxu0 0.0
    %722 = vmatpush1.msra.mxu0 0.0
    %723 = vmatprep.subr.mxu0 0.0
    %724 = vmatpush1.msra.mxu0 0.0
    %725 = vmatprep.subr.mxu0 0.0
    %726 = vmatpush1.msra.mxu0 0.0
    %727 = vmatprep.subr.mxu0 0.0
    %728 = vmatpush1.msra.mxu0 0.0
    %729 = vmatprep.subr.mxu0 0.0
    %730 = vmatpush1.msra.mxu0 0.0
    %731 = vmatprep.subr.mxu0 0.0
    %732 = vmatpush1.msra.mxu0 0.0
    %733 = vmatprep.subr.mxu0 0.0
    %734 = vmatpush1.msra.mxu0 0.0
    %735 = vmatprep.subr.mxu0 0.0
    %736 = vmatpush1.msra.mxu0 0.0
    %737 = vmatprep.subr.mxu0 0.0
    %738 = vmatpush1.msra.mxu0 0.0
    %739 = vmatprep.subr.mxu0 0.0
    %740 = vmatpush1.msra.mxu0 %v709
    %741 = vmatprep.subr.mxu0 0.0
    %742 = vmatpush1.msra.mxu0 %v708
    %743 = vmatprep.subr.mxu0 0.0
    %744 = vmatpush1.msra.mxu0 %v707
    %745 = vmatprep.subr.mxu0 0.0
    %746 = vmatpush1.msra.mxu0 %v706
    %747 = vmatprep.subr.mxu0 0.0
    %748 = vmatpush2.msra.mxu0 0.0
    %749 = vmatprep.subr.mxu0 0.0
    %750 = vmatpush2.msra.mxu0 0.0
    %751 = vmatprep.subr.mxu0 0.0
    %752 = vmatpush2.msra.mxu0 0.0
    %753 = vmatprep.subr.mxu0 0.0
    %754 = vmatpush2.msra.mxu0 0.0
    %755 = vmatprep.subr.mxu0 0.0
    %756 = vmatpush2.msra.mxu0 0.0
    %757 = vmatprep.subr.mxu0 0.0
    %758 = vmatpush2.msra.mxu0 0.0
    %759 = vmatprep.subr.mxu0 0.0
    %760 = vmatpush2.msra.mxu0 0.0
    %761 = vmatprep.subr.mxu0 0.0
    %762 = vmatpush2.msra.mxu0 0.0
    %763 = vmatprep.subr.mxu0 0.0
    %764 = vmatpush2.msra.mxu0 0.0
    %765 = vmatprep.subr.mxu0 0.0
    %766 = vmatpush2.msra.mxu0 0.0
    %767 = vmatprep.subr.mxu0 0.0
    %768 = vmatpush2.msra.mxu0 0.0
    %769 = vmatprep.subr.mxu0 0.0
    %770 = vmatpush2.msra.mxu0 0.0
    %771 = vmatprep.subr.mxu0 0.0
    %772 = vmatpush2.msra.mxu0 0.0
    %773 = vmatprep.subr.mxu0 0.0
    %774 = vmatpush2.msra.mxu0 0.0
    %775 = vmatprep.subr.mxu0 0.0
    %776 = vmatpush2.msra.mxu0 0.0
    %777 = vmatprep.subr.mxu0 0.0
    %778 = vmatpush2.msra.mxu0 0.0
    %779 = vmatprep.mubr.f32.mxu0 0.0
    %780 = vmatmul.mubr.f32.gmra.mxu0 %v713
    %v781 = vpop.f32.mrf.mxu0
    %v782 = vadd.f32 0.0, %v781
    %v783 = vpop.f32.mrf.mxu0
    %784 = vdwg.mxu0
    %v785 = vadd.f32 %v705, %v782
    %v786 = vxor.u32 %v785, 2147483648
    %v787 = vmul.f32 %v786, 1.442695
    %v788 = vpow.pop %v787
    %v789 = vadd.f32 %v788, 1.0
    %v790 = vrcp.pop %v789
    %v791 = vmul.f32 1.0, %v790
    %v792 = vtanh.pop %v785
    %v793 = vmul.f32 %v791, %v487
    %795 = vrot.lane.b32.xlu0 %v792, 64
    %v796 = vpop.permute.xlu0 %795
    %v798 = vmul.f32 %v791, %v796
    %800 = vrot.lane.b32.xlu0 %v798, 32
    %v801 = vpop.permute.xlu0 %800
    %v803 = vadd.f32 %v793, %v801
    %v804 = vtanh.pop %v803
    %806 = vrot.lane.b32.xlu0 %v804, 64
    %v807 = vpop.permute.xlu0 %806
    %v809 = vmul.f32 %v791, %v807
    %v810 = vld [vmem:[%s4] sm:$0xff]
    %v811 = vld [vmem:[%s4 + $0x8] sm:$0xff]
    %v812 = vld [vmem:[%s4 + $0x10] sm:$0xff]
    %v813 = vld [vmem:[%s4 + $0x18] sm:$0xff]
    %v814 = vld [vmem:[%s4 + $0x20] sm:$0xff]
    %v815 = vld [vmem:[%s4 + $0x28] sm:$0xff]
    %v816 = vld [vmem:[%s4 + $0x30] sm:$0xff]
    %v817 = vld [vmem:[%s4 + $0x38] sm:$0xff]
    %v818 = vld [vmem:[#allocation5] sm:$0x1]
    %820 = vrot.lane.b32.xlu0 %v616, 64
    %v821 = vpop.permute.xlu0 %820
    %v823 = vsel %vm289, %v712, %v821
    %v825 = vlaneseq
    %v826 = vshrl.u32 %v825, 7
    %v827 = vsub.s32 0, %v826
    %v828 = vrot.slane %v818, %v827
    %v831 = vsel %vm515, %v823, 0
    %833 = vmatprep.subr.mxu0 0.0
    %834 = vmatpush1.msra.mxu0 0.0
    %835 = vmatprep.subr.mxu0 0.0
    %836 = vmatpush1.msra.mxu0 0.0
    %837 = vmatprep.subr.mxu0 0.0
    %838 = vmatpush1.msra.mxu0 0.0
    %839 = vmatprep.subr.mxu0 0.0
    %840 = vmatpush1.msra.mxu0 0.0
    %841 = vmatprep.subr.mxu0 0.0
    %842 = vmatpush1.msra.mxu0 0.0
    %843 = vmatprep.subr.mxu0 0.0
    %844 = vmatpush1.msra.mxu0 0.0
    %845 = vmatprep.subr.mxu0 0.0
    %846 = vmatpush1.msra.mxu0 0.0
    %847 = vmatprep.subr.mxu0 0.0
    %848 = vmatpush1.msra.mxu0 0.0
    %849 = vmatprep.subr.mxu0 0.0
    %850 = vmatpush1.msra.mxu0 %v817
    %851 = vmatprep.subr.mxu0 0.0
    %852 = vmatpush1.msra.mxu0 %v816
    %853 = vmatprep.subr.mxu0 0.0
    %854 = vmatpush1.msra.mxu0 %v815
    %855 = vmatprep.subr.mxu0 0.0
    %856 = vmatpush1.msra.mxu0 %v814
    %857 = vmatprep.subr.mxu0 0.0
    %858 = vmatpush1.msra.mxu0 %v813
    %859 = vmatprep.subr.mxu0 0.0
    %860 = vmatpush1.msra.mxu0 %v812
    %861 = vmatprep.subr.mxu0 0.0
    %862 = vmatpush1.msra.mxu0 %v811
    %863 = vmatprep.subr.mxu0 0.0
    %864 = vmatpush1.msra.mxu0 %v810
    %865 = vmatprep.subr.mxu0 0.0
    %866 = vmatpush2.msra.mxu0 0.0
    %867 = vmatprep.subr.mxu0 0.0
    %868 = vmatpush2.msra.mxu0 0.0
    %869 = vmatprep.subr.mxu0 0.0
    %870 = vmatpush2.msra.mxu0 0.0
    %871 = vmatprep.subr.mxu0 0.0
    %872 = vmatpush2.msra.mxu0 0.0
    %873 = vmatprep.subr.mxu0 0.0
    %874 = vmatpush2.msra.mxu0 0.0
    %875 = vmatprep.subr.mxu0 0.0
    %876 = vmatpush2.msra.mxu0 0.0
    %877 = vmatprep.subr.mxu0 0.0
    %878 = vmatpush2.msra.mxu0 0.0
    %879 = vmatprep.subr.mxu0 0.0
    %880 = vmatpush2.msra.mxu0 0.0
    %881 = vmatprep.subr.mxu0 0.0
    %882 = vmatpush2.msra.mxu0 0.0
    %883 = vmatprep.subr.mxu0 0.0
    %884 = vmatpush2.msra.mxu0 0.0
    %885 = vmatprep.subr.mxu0 0.0
    %886 = vmatpush2.msra.mxu0 0.0
    %887 = vmatprep.subr.mxu0 0.0
    %888 = vmatpush2.msra.mxu0 0.0
    %889 = vmatprep.subr.mxu0 0.0
    %890 = vmatpush2.msra.mxu0 0.0
    %891 = vmatprep.subr.mxu0 0.0
    %892 = vmatpush2.msra.mxu0 0.0
    %893 = vmatprep.subr.mxu0 0.0
    %894 = vmatpush2.msra.mxu0 0.0
    %895 = vmatprep.subr.mxu0 0.0
    %896 = vmatpush2.msra.mxu0 0.0
    %897 = vmatprep.mubr.f32.mxu0 0.0
    %898 = vmatmul.mubr.f32.gmra.mxu0 %v831
    %v899 = vpop.f32.mrf.mxu0
    %v900 = vadd.f32 %v828, %v899
    %v901 = vpop.f32.mrf.mxu0
    %902 = vdwg.mxu0
    %v903 = vxor.u32 %v900, 2147483648
    %v904 = vmul.f32 %v903, 1.442695
    %v905 = vpow.pop %v904
    %v906 = vadd.f32 %v905, 1.0
    %v907 = vrcp.pop %v906
    %v908 = vmul.f32 1.0, %v907
    %v909 = vtanh.pop %v900
    %v910 = vmul.f32 %v908, %v610
    %912 = vrot.lane.b32.xlu0 %v909, 64
    %v913 = vpop.permute.xlu0 %912
    %v915 = vmul.f32 %v908, %v913
    %917 = vrot.lane.b32.xlu0 %v915, 32
    %v918 = vpop.permute.xlu0 %917
    %v920 = vadd.f32 %v910, %v918
    %v921 = vtanh.pop %v920
    %923 = vrot.lane.b32.xlu0 %v921, 64
    %v924 = vpop.permute.xlu0 %923
    %v926 = vmul.f32 %v908, %v924
    %v927 = vld [vmem:[%s8] sm:$0xff]
    %v928 = vld [vmem:[%s8 + $0x8] sm:$0xff]
    %v929 = vld [vmem:[%s8 + $0x10] sm:$0xff]
    %v930 = vld [vmem:[%s8 + $0x18] sm:$0xff]
    %v931 = vld [vmem:[#allocation7] sm:$0x1]
    %v933 = vlaneseq
    %v934 = vshrl.u32 %v933, 7
    %v935 = vsub.s32 0, %v934
    %v936 = vrot.slane %v931, %v935
    %939 = vrot.lane.b32.xlu0 %v926, 32
    %v940 = vpop.permute.xlu0 %939
    %v941 = vsel %vm289, %v940, 0
    %943 = vmatprep.subr.mxu0 0.0
    %944 = vmatpush1.msra.mxu0 0.0
    %945 = vmatprep.subr.mxu0 0.0
    %946 = vmatpush1.msra.mxu0 0.0
    %947 = vmatprep.subr.mxu0 0.0
    %948 = vmatpush1.msra.mxu0 0.0
    %949 = vmatprep.subr.mxu0 0.0
    %950 = vmatpush1.msra.mxu0 0.0
    %951 = vmatprep.subr.mxu0 0.0
    %952 = vmatpush1.msra.mxu0 0.0
    %953 = vmatprep.subr.mxu0 0.0
    %954 = vmatpush1.msra.mxu0 0.0
    %955 = vmatprep.subr.mxu0 0.0
    %956 = vmatpush1.msra.mxu0 0.0
    %957 = vmatprep.subr.mxu0 0.0
    %958 = vmatpush1.msra.mxu0 0.0
    %959 = vmatprep.subr.mxu0 0.0
    %960 = vmatpush1.msra.mxu0 0.0
    %961 = vmatprep.subr.mxu0 0.0
    %962 = vmatpush1.msra.mxu0 0.0
    %963 = vmatprep.subr.mxu0 0.0
    %964 = vmatpush1.msra.mxu0 0.0
    %965 = vmatprep.subr.mxu0 0.0
    %966 = vmatpush1.msra.mxu0 0.0
    %967 = vmatprep.subr.mxu0 0.0
    %968 = vmatpush1.msra.mxu0 %v930
    %969 = vmatprep.subr.mxu0 0.0
    %970 = vmatpush1.msra.mxu0 %v929
    %971 = vmatprep.subr.mxu0 0.0
    %972 = vmatpush1.msra.mxu0 %v928
    %973 = vmatprep.subr.mxu0 0.0
    %974 = vmatpush1.msra.mxu0 %v927
    %975 = vmatprep.subr.mxu0 0.0
    %976 = vmatpush2.msra.mxu0 0.0
    %977 = vmatprep.subr.mxu0 0.0
    %978 = vmatpush2.msra.mxu0 0.0
    %979 = vmatprep.subr.mxu0 0.0
    %980 = vmatpush2.msra.mxu0 0.0
    %981 = vmatprep.subr.mxu0 0.0
    %982 = vmatpush2.msra.mxu0 0.0
    %983 = vmatprep.subr.mxu0 0.0
    %984 = vmatpush2.msra.mxu0 0.0
    %985 = vmatprep.subr.mxu0 0.0
    %986 = vmatpush2.msra.mxu0 0.0
    %987 = vmatprep.subr.mxu0 0.0
    %988 = vmatpush2.msra.mxu0 0.0
    %989 = vmatprep.subr.mxu0 0.0
    %990 = vmatpush2.msra.mxu0 0.0
    %991 = vmatprep.subr.mxu0 0.0
    %992 = vmatpush2.msra.mxu0 0.0
    %993 = vmatprep.subr.mxu0 0.0
    %994 = vmatpush2.msra.mxu0 0.0
    %995 = vmatprep.subr.mxu0 0.0
    %996 = vmatpush2.msra.mxu0 0.0
    %997 = vmatprep.subr.mxu0 0.0
    %998 = vmatpush2.msra.mxu0 0.0
    %999 = vmatprep.subr.mxu0 0.0
    %1000 = vmatpush2.msra.mxu0 0.0
    %1001 = vmatprep.subr.mxu0 0.0
    %1002 = vmatpush2.msra.mxu0 0.0
    %1003 = vmatprep.subr.mxu0 0.0
    %1004 = vmatpush2.msra.mxu0 0.0
    %1005 = vmatprep.subr.mxu0 0.0
    %1006 = vmatpush2.msra.mxu0 0.0
    %1007 = vmatprep.mubr.f32.mxu0 0.0
    %1008 = vmatmul.mubr.f32.gmra.mxu0 %v941
    %v1009 = vpop.f32.mrf.mxu0
    %v1010 = vadd.f32 %v936, %v1009
    %v1011 = vpop.f32.mrf.mxu0
    %1012 = vdwg.mxu0
    %s1013 = scalar_lea.vmem %s10, 8
    %1014 = vst [vmem:[%s1013] sm:$0xff] %v1010
    %s1015 = scalar_lea.vmem [#allocation2], 24
    %v1016 = vld [vmem:[%s1015] sm:$0xff]
    %v1017 = vld [vmem:[%s3] sm:$0xff]
    %v1018 = vld [vmem:[%s3 + $0x8] sm:$0xff]
    %v1019 = vld [vmem:[%s3 + $0x10] sm:$0xff]
    %v1020 = vld [vmem:[%s3 + $0x18] sm:$0xff]
    %1022 = vrot.lane.b32.xlu0 %v809, 32
    %v1023 = vpop.permute.xlu0 %1022
    %v1024 = vsel %vm289, %v1023, 0
    %1026 = vmatprep.subr.mxu0 0.0
    %1027 = vmatpush1.msra.mxu0 0.0
    %1028 = vmatprep.subr.mxu0 0.0
    %1029 = vmatpush1.msra.mxu0 0.0
    %1030 = vmatprep.subr.mxu0 0.0
    %1031 = vmatpush1.msra.mxu0 0.0
    %1032 = vmatprep.subr.mxu0 0.0
    %1033 = vmatpush1.msra.mxu0 0.0
    %1034 = vmatprep.subr.mxu0 0.0
    %1035 = vmatpush1.msra.mxu0 0.0
    %1036 = vmatprep.subr.mxu0 0.0
    %1037 = vmatpush1.msra.mxu0 0.0
    %1038 = vmatprep.subr.mxu0 0.0
    %1039 = vmatpush1.msra.mxu0 0.0
    %1040 = vmatprep.subr.mxu0 0.0
    %1041 = vmatpush1.msra.mxu0 0.0
    %1042 = vmatprep.subr.mxu0 0.0
    %1043 = vmatpush1.msra.mxu0 0.0
    %1044 = vmatprep.subr.mxu0 0.0
    %1045 = vmatpush1.msra.mxu0 0.0
    %1046 = vmatprep.subr.mxu0 0.0
    %1047 = vmatpush1.msra.mxu0 0.0
    %1048 = vmatprep.subr.mxu0 0.0
    %1049 = vmatpush1.msra.mxu0 0.0
    %1050 = vmatprep.subr.mxu0 0.0
    %1051 = vmatpush1.msra.mxu0 %v1020
    %1052 = vmatprep.subr.mxu0 0.0
    %1053 = vmatpush1.msra.mxu0 %v1019
    %1054 = vmatprep.subr.mxu0 0.0
    %1055 = vmatpush1.msra.mxu0 %v1018
    %1056 = vmatprep.subr.mxu0 0.0
    %1057 = vmatpush1.msra.mxu0 %v1017
    %1058 = vmatprep.subr.mxu0 0.0
    %1059 = vmatpush2.msra.mxu0 0.0
    %1060 = vmatprep.subr.mxu0 0.0
    %1061 = vmatpush2.msra.mxu0 0.0
    %1062 = vmatprep.subr.mxu0 0.0
    %1063 = vmatpush2.msra.mxu0 0.0
    %1064 = vmatprep.subr.mxu0 0.0
    %1065 = vmatpush2.msra.mxu0 0.0
    %1066 = vmatprep.subr.mxu0 0.0
    %1067 = vmatpush2.msra.mxu0 0.0
    %1068 = vmatprep.subr.mxu0 0.0
    %1069 = vmatpush2.msra.mxu0 0.0
    %1070 = vmatprep.subr.mxu0 0.0
    %1071 = vmatpush2.msra.mxu0 0.0
    %1072 = vmatprep.subr.mxu0 0.0
    %1073 = vmatpush2.msra.mxu0 0.0
    %1074 = vmatprep.subr.mxu0 0.0
    %1075 = vmatpush2.msra.mxu0 0.0
    %1076 = vmatprep.subr.mxu0 0.0
    %1077 = vmatpush2.msra.mxu0 0.0
    %1078 = vmatprep.subr.mxu0 0.0
    %1079 = vmatpush2.msra.mxu0 0.0
    %1080 = vmatprep.subr.mxu0 0.0
    %1081 = vmatpush2.msra.mxu0 0.0
    %1082 = vmatprep.subr.mxu0 0.0
    %1083 = vmatpush2.msra.mxu0 0.0
    %1084 = vmatprep.subr.mxu0 0.0
    %1085 = vmatpush2.msra.mxu0 0.0
    %1086 = vmatprep.subr.mxu0 0.0
    %1087 = vmatpush2.msra.mxu0 0.0
    %1088 = vmatprep.subr.mxu0 0.0
    %1089 = vmatpush2.msra.mxu0 0.0
    %1090 = vmatprep.mubr.f32.mxu0 0.0
    %1091 = vmatmul.mubr.f32.gmra.mxu0 %v1024
    %v1092 = vpop.f32.mrf.mxu0
    %v1093 = vadd.f32 0.0, %v1092
    %v1094 = vpop.f32.mrf.mxu0
    %1095 = vdwg.mxu0
    %v1096 = vadd.f32 %v1016, %v1093
    %v1097 = vxor.u32 %v1096, 2147483648
    %v1098 = vmul.f32 %v1097, 1.442695
    %v1099 = vpow.pop %v1098
    %v1100 = vadd.f32 %v1099, 1.0
    %v1101 = vrcp.pop %v1100
    %v1102 = vmul.f32 1.0, %v1101
    %v1103 = vtanh.pop %v1096
    %v1104 = vmul.f32 %v1102, %v803
    %1106 = vrot.lane.b32.xlu0 %v1103, 64
    %v1107 = vpop.permute.xlu0 %1106
    %v1109 = vmul.f32 %v1102, %v1107
    %1111 = vrot.lane.b32.xlu0 %v1109, 32
    %v1112 = vpop.permute.xlu0 %1111
    %v1114 = vadd.f32 %v1104, %v1112
    %v1115 = vtanh.pop %v1114
    %1117 = vrot.lane.b32.xlu0 %v1115, 64
    %v1118 = vpop.permute.xlu0 %1117
    %v1120 = vmul.f32 %v1102, %v1118
    %v1121 = vld [vmem:[%s4] sm:$0xff]
    %v1122 = vld [vmem:[%s4 + $0x8] sm:$0xff]
    %v1123 = vld [vmem:[%s4 + $0x10] sm:$0xff]
    %v1124 = vld [vmem:[%s4 + $0x18] sm:$0xff]
    %v1125 = vld [vmem:[%s4 + $0x20] sm:$0xff]
    %v1126 = vld [vmem:[%s4 + $0x28] sm:$0xff]
    %v1127 = vld [vmem:[%s4 + $0x30] sm:$0xff]
    %v1128 = vld [vmem:[%s4 + $0x38] sm:$0xff]
    %v1129 = vld [vmem:[#allocation5] sm:$0x1]
    %1131 = vrot.lane.b32.xlu0 %v926, 64
    %v1132 = vpop.permute.xlu0 %1131
    %v1134 = vsel %vm289, %v1023, %v1132
    %v1136 = vlaneseq
    %v1137 = vshrl.u32 %v1136, 7
    %v1138 = vsub.s32 0, %v1137
    %v1139 = vrot.slane %v1129, %v1138
    %v1142 = vsel %vm515, %v1134, 0
    %1144 = vmatprep.subr.mxu0 0.0
    %1145 = vmatpush1.msra.mxu0 0.0
    %1146 = vmatprep.subr.mxu0 0.0
    %1147 = vmatpush1.msra.mxu0 0.0
    %1148 = vmatprep.subr.mxu0 0.0
    %1149 = vmatpush1.msra.mxu0 0.0
    %1150 = vmatprep.subr.mxu0 0.0
    %1151 = vmatpush1.msra.mxu0 0.0
    %1152 = vmatprep.subr.mxu0 0.0
    %1153 = vmatpush1.msra.mxu0 0.0
    %1154 = vmatprep.subr.mxu0 0.0
    %1155 = vmatpush1.msra.mxu0 0.0
    %1156 = vmatprep.subr.mxu0 0.0
    %1157 = vmatpush1.msra.mxu0 0.0
    %1158 = vmatprep.subr.mxu0 0.0
    %1159 = vmatpush1.msra.mxu0 0.0
    %1160 = vmatprep.subr.mxu0 0.0
    %1161 = vmatpush1.msra.mxu0 %v1128
    %1162 = vmatprep.subr.mxu0 0.0
    %1163 = vmatpush1.msra.mxu0 %v1127
    %1164 = vmatprep.subr.mxu0 0.0
    %1165 = vmatpush1.msra.mxu0 %v1126
    %1166 = vmatprep.subr.mxu0 0.0
    %1167 = vmatpush1.msra.mxu0 %v1125
    %1168 = vmatprep.subr.mxu0 0.0
    %1169 = vmatpush1.msra.mxu0 %v1124
    %1170 = vmatprep.subr.mxu0 0.0
    %1171 = vmatpush1.msra.mxu0 %v1123
    %1172 = vmatprep.subr.mxu0 0.0
    %1173 = vmatpush1.msra.mxu0 %v1122
    %1174 = vmatprep.subr.mxu0 0.0
    %1175 = vmatpush1.msra.mxu0 %v1121
    %1176 = vmatprep.subr.mxu0 0.0
    %1177 = vmatpush2.msra.mxu0 0.0
    %1178 = vmatprep.subr.mxu0 0.0
    %1179 = vmatpush2.msra.mxu0 0.0
    %1180 = vmatprep.subr.mxu0 0.0
    %1181 = vmatpush2.msra.mxu0 0.0
    %1182 = vmatprep.subr.mxu0 0.0
    %1183 = vmatpush2.msra.mxu0 0.0
    %1184 = vmatprep.subr.mxu0 0.0
    %1185 = vmatpush2.msra.mxu0 0.0
    %1186 = vmatprep.subr.mxu0 0.0
    %1187 = vmatpush2.msra.mxu0 0.0
    %1188 = vmatprep.subr.mxu0 0.0
    %1189 = vmatpush2.msra.mxu0 0.0
    %1190 = vmatprep.subr.mxu0 0.0
    %1191 = vmatpush2.msra.mxu0 0.0
    %1192 = vmatprep.subr.mxu0 0.0
    %1193 = vmatpush2.msra.mxu0 0.0
    %1194 = vmatprep.subr.mxu0 0.0
    %1195 = vmatpush2.msra.mxu0 0.0
    %1196 = vmatprep.subr.mxu0 0.0
    %1197 = vmatpush2.msra.mxu0 0.0
    %1198 = vmatprep.subr.mxu0 0.0
    %1199 = vmatpush2.msra.mxu0 0.0
    %1200 = vmatprep.subr.mxu0 0.0
    %1201 = vmatpush2.msra.mxu0 0.0
    %1202 = vmatprep.subr.mxu0 0.0
    %1203 = vmatpush2.msra.mxu0 0.0
    %1204 = vmatprep.subr.mxu0 0.0
    %1205 = vmatpush2.msra.mxu0 0.0
    %1206 = vmatprep.subr.mxu0 0.0
    %1207 = vmatpush2.msra.mxu0 0.0
    %1208 = vmatprep.mubr.f32.mxu0 0.0
    %1209 = vmatmul.mubr.f32.gmra.mxu0 %v1142
    %v1210 = vpop.f32.mrf.mxu0
    %v1211 = vadd.f32 %v1139, %v1210
    %v1212 = vpop.f32.mrf.mxu0
    %1213 = vdwg.mxu0
    %v1214 = vxor.u32 %v1211, 2147483648
    %v1215 = vmul.f32 %v1214, 1.442695
    %v1216 = vpow.pop %v1215
    %v1217 = vadd.f32 %v1216, 1.0
    %v1218 = vrcp.pop %v1217
    %v1219 = vmul.f32 1.0, %v1218
    %v1220 = vtanh.pop %v1211
    %v1221 = vmul.f32 %v1219, %v920
    %1223 = vrot.lane.b32.xlu0 %v1220, 64
    %v1224 = vpop.permute.xlu0 %1223
    %v1226 = vmul.f32 %v1219, %v1224
    %1228 = vrot.lane.b32.xlu0 %v1226, 32
    %v1229 = vpop.permute.xlu0 %1228
    %v1231 = vadd.f32 %v1221, %v1229
    %v1232 = vtanh.pop %v1231
    %1234 = vrot.lane.b32.xlu0 %v1232, 64
    %v1235 = vpop.permute.xlu0 %1234
    %v1237 = vmul.f32 %v1219, %v1235
    %v1238 = vld [vmem:[%s8] sm:$0xff]
    %v1239 = vld [vmem:[%s8 + $0x8] sm:$0xff]
    %v1240 = vld [vmem:[%s8 + $0x10] sm:$0xff]
    %v1241 = vld [vmem:[%s8 + $0x18] sm:$0xff]
    %v1242 = vld [vmem:[#allocation7] sm:$0x1]
    %v1244 = vlaneseq
    %v1245 = vshrl.u32 %v1244, 7
    %v1246 = vsub.s32 0, %v1245
    %v1247 = vrot.slane %v1242, %v1246
    %1250 = vrot.lane.b32.xlu0 %v1237, 32
    %v1251 = vpop.permute.xlu0 %1250
    %v1252 = vsel %vm289, %v1251, 0
    %1254 = vmatprep.subr.mxu0 0.0
    %1255 = vmatpush1.msra.mxu0 0.0
    %1256 = vmatprep.subr.mxu0 0.0
    %1257 = vmatpush1.msra.mxu0 0.0
    %1258 = vmatprep.subr.mxu0 0.0
    %1259 = vmatpush1.msra.mxu0 0.0
    %1260 = vmatprep.subr.mxu0 0.0
    %1261 = vmatpush1.msra.mxu0 0.0
    %1262 = vmatprep.subr.mxu0 0.0
    %1263 = vmatpush1.msra.mxu0 0.0
    %1264 = vmatprep.subr.mxu0 0.0
    %1265 = vmatpush1.msra.mxu0 0.0
    %1266 = vmatprep.subr.mxu0 0.0
    %1267 = vmatpush1.msra.mxu0 0.0
    %1268 = vmatprep.subr.mxu0 0.0
    %1269 = vmatpush1.msra.mxu0 0.0
    %1270 = vmatprep.subr.mxu0 0.0
    %1271 = vmatpush1.msra.mxu0 0.0
    %1272 = vmatprep.subr.mxu0 0.0
    %1273 = vmatpush1.msra.mxu0 0.0
    %1274 = vmatprep.subr.mxu0 0.0
    %1275 = vmatpush1.msra.mxu0 0.0
    %1276 = vmatprep.subr.mxu0 0.0
    %1277 = vmatpush1.msra.mxu0 0.0
    %1278 = vmatprep.subr.mxu0 0.0
    %1279 = vmatpush1.msra.mxu0 %v1241
    %1280 = vmatprep.subr.mxu0 0.0
    %1281 = vmatpush1.msra.mxu0 %v1240
    %1282 = vmatprep.subr.mxu0 0.0
    %1283 = vmatpush1.msra.mxu0 %v1239
    %1284 = vmatprep.subr.mxu0 0.0
    %1285 = vmatpush1.msra.mxu0 %v1238
    %1286 = vmatprep.subr.mxu0 0.0
    %1287 = vmatpush2.msra.mxu0 0.0
    %1288 = vmatprep.subr.mxu0 0.0
    %1289 = vmatpush2.msra.mxu0 0.0
    %1290 = vmatprep.subr.mxu0 0.0
    %1291 = vmatpush2.msra.mxu0 0.0
    %1292 = vmatprep.subr.mxu0 0.0
    %1293 = vmatpush2.msra.mxu0 0.0
    %1294 = vmatprep.subr.mxu0 0.0
    %1295 = vmatpush2.msra.mxu0 0.0
    %1296 = vmatprep.subr.mxu0 0.0
    %1297 = vmatpush2.msra.mxu0 0.0
    %1298 = vmatprep.subr.mxu0 0.0
    %1299 = vmatpush2.msra.mxu0 0.0
    %1300 = vmatprep.subr.mxu0 0.0
    %1301 = vmatpush2.msra.mxu0 0.0
    %1302 = vmatprep.subr.mxu0 0.0
    %1303 = vmatpush2.msra.mxu0 0.0
    %1304 = vmatprep.subr.mxu0 0.0
    %1305 = vmatpush2.msra.mxu0 0.0
    %1306 = vmatprep.subr.mxu0 0.0
    %1307 = vmatpush2.msra.mxu0 0.0
    %1308 = vmatprep.subr.mxu0 0.0
    %1309 = vmatpush2.msra.mxu0 0.0
    %1310 = vmatprep.subr.mxu0 0.0
    %1311 = vmatpush2.msra.mxu0 0.0
    %1312 = vmatprep.subr.mxu0 0.0
    %1313 = vmatpush2.msra.mxu0 0.0
    %1314 = vmatprep.subr.mxu0 0.0
    %1315 = vmatpush2.msra.mxu0 0.0
    %1316 = vmatprep.subr.mxu0 0.0
    %1317 = vmatpush2.msra.mxu0 0.0
    %1318 = vmatprep.mubr.f32.mxu0 0.0
    %1319 = vmatmul.mubr.f32.gmra.mxu0 %v1252
    %v1320 = vpop.f32.mrf.mxu0
    %v1321 = vadd.f32 %v1247, %v1320
    %v1322 = vpop.f32.mrf.mxu0
    %1323 = vdwg.mxu0
    %s1324 = scalar_lea.vmem %s10, 16
    %1325 = vst [vmem:[%s1324] sm:$0xff] %v1321
    %s1326 = scalar_lea.vmem [#allocation2], 32
    %v1327 = vld [vmem:[%s1326] sm:$0xff]
    %v1328 = vld [vmem:[%s3] sm:$0xff]
    %v1329 = vld [vmem:[%s3 + $0x8] sm:$0xff]
    %v1330 = vld [vmem:[%s3 + $0x10] sm:$0xff]
    %v1331 = vld [vmem:[%s3 + $0x18] sm:$0xff]
    %1333 = vrot.lane.b32.xlu0 %v1120, 32
    %v1334 = vpop.permute.xlu0 %1333
    %v1335 = vsel %vm289, %v1334, 0
    %1337 = vmatprep.subr.mxu0 0.0
    %1338 = vmatpush1.msra.mxu0 0.0
    %1339 = vmatprep.subr.mxu0 0.0
    %1340 = vmatpush1.msra.mxu0 0.0
    %1341 = vmatprep.subr.mxu0 0.0
    %1342 = vmatpush1.msra.mxu0 0.0
    %1343 = vmatprep.subr.mxu0 0.0
    %1344 = vmatpush1.msra.mxu0 0.0
    %1345 = vmatprep.subr.mxu0 0.0
    %1346 = vmatpush1.msra.mxu0 0.0
    %1347 = vmatprep.subr.mxu0 0.0
    %1348 = vmatpush1.msra.mxu0 0.0
    %1349 = vmatprep.subr.mxu0 0.0
    %1350 = vmatpush1.msra.mxu0 0.0
    %1351 = vmatprep.subr.mxu0 0.0
    %1352 = vmatpush1.msra.mxu0 0.0
    %1353 = vmatprep.subr.mxu0 0.0
    %1354 = vmatpush1.msra.mxu0 0.0
    %1355 = vmatprep.subr.mxu0 0.0
    %1356 = vmatpush1.msra.mxu0 0.0
    %1357 = vmatprep.subr.mxu0 0.0
    %1358 = vmatpush1.msra.mxu0 0.0
    %1359 = vmatprep.subr.mxu0 0.0
    %1360 = vmatpush1.msra.mxu0 0.0
    %1361 = vmatprep.subr.mxu0 0.0
    %1362 = vmatpush1.msra.mxu0 %v1331
    %1363 = vmatprep.subr.mxu0 0.0
    %1364 = vmatpush1.msra.mxu0 %v1330
    %1365 = vmatprep.subr.mxu0 0.0
    %1366 = vmatpush1.msra.mxu0 %v1329
    %1367 = vmatprep.subr.mxu0 0.0
    %1368 = vmatpush1.msra.mxu0 %v1328
    %1369 = vmatprep.subr.mxu0 0.0
    %1370 = vmatpush2.msra.mxu0 0.0
    %1371 = vmatprep.subr.mxu0 0.0
    %1372 = vmatpush2.msra.mxu0 0.0
    %1373 = vmatprep.subr.mxu0 0.0
    %1374 = vmatpush2.msra.mxu0 0.0
    %1375 = vmatprep.subr.mxu0 0.0
    %1376 = vmatpush2.msra.mxu0 0.0
    %1377 = vmatprep.subr.mxu0 0.0
    %1378 = vmatpush2.msra.mxu0 0.0
    %1379 = vmatprep.subr.mxu0 0.0
    %1380 = vmatpush2.msra.mxu0 0.0
    %1381 = vmatprep.subr.mxu0 0.0
    %1382 = vmatpush2.msra.mxu0 0.0
    %1383 = vmatprep.subr.mxu0 0.0
    %1384 = vmatpush2.msra.mxu0 0.0
    %1385 = vmatprep.subr.mxu0 0.0
    %1386 = vmatpush2.msra.mxu0 0.0
    %1387 = vmatprep.subr.mxu0 0.0
    %1388 = vmatpush2.msra.mxu0 0.0
    %1389 = vmatprep.subr.mxu0 0.0
    %1390 = vmatpush2.msra.mxu0 0.0
    %1391 = vmatprep.subr.mxu0 0.0
    %1392 = vmatpush2.msra.mxu0 0.0
    %1393 = vmatprep.subr.mxu0 0.0
    %1394 = vmatpush2.msra.mxu0 0.0
    %1395 = vmatprep.subr.mxu0 0.0
    %1396 = vmatpush2.msra.mxu0 0.0
    %1397 = vmatprep.subr.mxu0 0.0
    %1398 = vmatpush2.msra.mxu0 0.0
    %1399 = vmatprep.subr.mxu0 0.0
    %1400 = vmatpush2.msra.mxu0 0.0
    %1401 = vmatprep.mubr.f32.mxu0 0.0
    %1402 = vmatmul.mubr.f32.gmra.mxu0 %v1335
    %v1403 = vpop.f32.mrf.mxu0
    %v1404 = vadd.f32 0.0, %v1403
    %v1405 = vpop.f32.mrf.mxu0
    %1406 = vdwg.mxu0
    %v1407 = vadd.f32 %v1327, %v1404
    %v1408 = vxor.u32 %v1407, 2147483648
    %v1409 = vmul.f32 %v1408, 1.442695
    %v1410 = vpow.pop %v1409
    %v1411 = vadd.f32 %v1410, 1.0
    %v1412 = vrcp.pop %v1411
    %v1413 = vmul.f32 1.0, %v1412
    %v1414 = vtanh.pop %v1407
    %v1415 = vmul.f32 %v1413, %v1114
    %1417 = vrot.lane.b32.xlu0 %v1414, 64
    %v1418 = vpop.permute.xlu0 %1417
    %v1420 = vmul.f32 %v1413, %v1418
    %1422 = vrot.lane.b32.xlu0 %v1420, 32
    %v1423 = vpop.permute.xlu0 %1422
    %v1425 = vadd.f32 %v1415, %v1423
    %v1426 = vtanh.pop %v1425
    %1428 = vrot.lane.b32.xlu0 %v1426, 64
    %v1429 = vpop.permute.xlu0 %1428
    %v1431 = vmul.f32 %v1413, %v1429
    %v1432 = vld [vmem:[%s4] sm:$0xff]
    %v1433 = vld [vmem:[%s4 + $0x8] sm:$0xff]
    %v1434 = vld [vmem:[%s4 + $0x10] sm:$0xff]
    %v1435 = vld [vmem:[%s4 + $0x18] sm:$0xff]
    %v1436 = vld [vmem:[%s4 + $0x20] sm:$0xff]
    %v1437 = vld [vmem:[%s4 + $0x28] sm:$0xff]
    %v1438 = vld [vmem:[%s4 + $0x30] sm:$0xff]
    %v1439 = vld [vmem:[%s4 + $0x38] sm:$0xff]
    %v1440 = vld [vmem:[#allocation5] sm:$0x1]
    %1442 = vrot.lane.b32.xlu0 %v1237, 64
    %v1443 = vpop.permute.xlu0 %1442
    %v1445 = vsel %vm289, %v1334, %v1443
    %v1447 = vlaneseq
    %v1448 = vshrl.u32 %v1447, 7
    %v1449 = vsub.s32 0, %v1448
    %v1450 = vrot.slane %v1440, %v1449
    %v1453 = vsel %vm515, %v1445, 0
    %1455 = vmatprep.subr.mxu0 0.0
    %1456 = vmatpush1.msra.mxu0 0.0
    %1457 = vmatprep.subr.mxu0 0.0
    %1458 = vmatpush1.msra.mxu0 0.0
    %1459 = vmatprep.subr.mxu0 0.0
    %1460 = vmatpush1.msra.mxu0 0.0
    %1461 = vmatprep.subr.mxu0 0.0
    %1462 = vmatpush1.msra.mxu0 0.0
    %1463 = vmatprep.subr.mxu0 0.0
    %1464 = vmatpush1.msra.mxu0 0.0
    %1465 = vmatprep.subr.mxu0 0.0
    %1466 = vmatpush1.msra.mxu0 0.0
    %1467 = vmatprep.subr.mxu0 0.0
    %1468 = vmatpush1.msra.mxu0 0.0
    %1469 = vmatprep.subr.mxu0 0.0
    %1470 = vmatpush1.msra.mxu0 0.0
    %1471 = vmatprep.subr.mxu0 0.0
    %1472 = vmatpush1.msra.mxu0 %v1439
    %1473 = vmatprep.subr.mxu0 0.0
    %1474 = vmatpush1.msra.mxu0 %v1438
    %1475 = vmatprep.subr.mxu0 0.0
    %1476 = vmatpush1.msra.mxu0 %v1437
    %1477 = vmatprep.subr.mxu0 0.0
    %1478 = vmatpush1.msra.mxu0 %v1436
    %1479 = vmatprep.subr.mxu0 0.0
    %1480 = vmatpush1.msra.mxu0 %v1435
    %1481 = vmatprep.subr.mxu0 0.0
    %1482 = vmatpush1.msra.mxu0 %v1434
    %1483 = vmatprep.subr.mxu0 0.0
    %1484 = vmatpush1.msra.mxu0 %v1433
    %1485 = vmatprep.subr.mxu0 0.0
    %1486 = vmatpush1.msra.mxu0 %v1432
    %1487 = vmatprep.subr.mxu0 0.0
    %1488 = vmatpush2.msra.mxu0 0.0
    %1489 = vmatprep.subr.mxu0 0.0
    %1490 = vmatpush2.msra.mxu0 0.0
    %1491 = vmatprep.subr.mxu0 0.0
    %1492 = vmatpush2.msra.mxu0 0.0
    %1493 = vmatprep.subr.mxu0 0.0
    %1494 = vmatpush2.msra.mxu0 0.0
    %1495 = vmatprep.subr.mxu0 0.0
    %1496 = vmatpush2.msra.mxu0 0.0
    %1497 = vmatprep.subr.mxu0 0.0
    %1498 = vmatpush2.msra.mxu0 0.0
    %1499 = vmatprep.subr.mxu0 0.0
    %1500 = vmatpush2.msra.mxu0 0.0
    %1501 = vmatprep.subr.mxu0 0.0
    %1502 = vmatpush2.msra.mxu0 0.0
    %1503 = vmatprep.subr.mxu0 0.0
    %1504 = vmatpush2.msra.mxu0 0.0
    %1505 = vmatprep.subr.mxu0 0.0
    %1506 = vmatpush2.msra.mxu0 0.0
    %1507 = vmatprep.subr.mxu0 0.0
    %1508 = vmatpush2.msra.mxu0 0.0
    %1509 = vmatprep.subr.mxu0 0.0
    %1510 = vmatpush2.msra.mxu0 0.0
    %1511 = vmatprep.subr.mxu0 0.0
    %1512 = vmatpush2.msra.mxu0 0.0
    %1513 = vmatprep.subr.mxu0 0.0
    %1514 = vmatpush2.msra.mxu0 0.0
    %1515 = vmatprep.subr.mxu0 0.0
    %1516 = vmatpush2.msra.mxu0 0.0
    %1517 = vmatprep.subr.mxu0 0.0
    %1518 = vmatpush2.msra.mxu0 0.0
    %1519 = vmatprep.mubr.f32.mxu0 0.0
    %1520 = vmatmul.mubr.f32.gmra.mxu0 %v1453
    %v1521 = vpop.f32.mrf.mxu0
    %v1522 = vadd.f32 %v1450, %v1521
    %v1523 = vpop.f32.mrf.mxu0
    %1524 = vdwg.mxu0
    %v1525 = vxor.u32 %v1522, 2147483648
    %v1526 = vmul.f32 %v1525, 1.442695
    %v1527 = vpow.pop %v1526
    %v1528 = vadd.f32 %v1527, 1.0
    %v1529 = vrcp.pop %v1528
    %v1530 = vmul.f32 1.0, %v1529
    %v1531 = vtanh.pop %v1522
    %v1532 = vmul.f32 %v1530, %v1231
    %1534 = vrot.lane.b32.xlu0 %v1531, 64
    %v1535 = vpop.permute.xlu0 %1534
    %v1537 = vmul.f32 %v1530, %v1535
    %1539 = vrot.lane.b32.xlu0 %v1537, 32
    %v1540 = vpop.permute.xlu0 %1539
    %v1542 = vadd.f32 %v1532, %v1540
    %v1543 = vtanh.pop %v1542
    %1545 = vrot.lane.b32.xlu0 %v1543, 64
    %v1546 = vpop.permute.xlu0 %1545
    %v1548 = vmul.f32 %v1530, %v1546
    %v1549 = vld [vmem:[%s8] sm:$0xff]
    %v1550 = vld [vmem:[%s8 + $0x8] sm:$0xff]
    %v1551 = vld [vmem:[%s8 + $0x10] sm:$0xff]
    %v1552 = vld [vmem:[%s8 + $0x18] sm:$0xff]
    %v1553 = vld [vmem:[#allocation7] sm:$0x1]
    %v1555 = vlaneseq
    %v1556 = vshrl.u32 %v1555, 7
    %v1557 = vsub.s32 0, %v1556
    %v1558 = vrot.slane %v1553, %v1557
    %1561 = vrot.lane.b32.xlu0 %v1548, 32
    %v1562 = vpop.permute.xlu0 %1561
    %v1563 = vsel %vm289, %v1562, 0
    %1565 = vmatprep.subr.mxu0 0.0
    %1566 = vmatpush1.msra.mxu0 0.0
    %1567 = vmatprep.subr.mxu0 0.0
    %1568 = vmatpush1.msra.mxu0 0.0
    %1569 = vmatprep.subr.mxu0 0.0
    %1570 = vmatpush1.msra.mxu0 0.0
    %1571 = vmatprep.subr.mxu0 0.0
    %1572 = vmatpush1.msra.mxu0 0.0
    %1573 = vmatprep.subr.mxu0 0.0
    %1574 = vmatpush1.msra.mxu0 0.0
    %1575 = vmatprep.subr.mxu0 0.0
    %1576 = vmatpush1.msra.mxu0 0.0
    %1577 = vmatprep.subr.mxu0 0.0
    %1578 = vmatpush1.msra.mxu0 0.0
    %1579 = vmatprep.subr.mxu0 0.0
    %1580 = vmatpush1.msra.mxu0 0.0
    %1581 = vmatprep.subr.mxu0 0.0
    %1582 = vmatpush1.msra.mxu0 0.0
    %1583 = vmatprep.subr.mxu0 0.0
    %1584 = vmatpush1.msra.mxu0 0.0
    %1585 = vmatprep.subr.mxu0 0.0
    %1586 = vmatpush1.msra.mxu0 0.0
    %1587 = vmatprep.subr.mxu0 0.0
    %1588 = vmatpush1.msra.mxu0 0.0
    %1589 = vmatprep.subr.mxu0 0.0
    %1590 = vmatpush1.msra.mxu0 %v1552
    %1591 = vmatprep.subr.mxu0 0.0
    %1592 = vmatpush1.msra.mxu0 %v1551
    %1593 = vmatprep.subr.mxu0 0.0
    %1594 = vmatpush1.msra.mxu0 %v1550
    %1595 = vmatprep.subr.mxu0 0.0
    %1596 = vmatpush1.msra.mxu0 %v1549
    %1597 = vmatprep.subr.mxu0 0.0
    %1598 = vmatpush2.msra.mxu0 0.0
    %1599 = vmatprep.subr.mxu0 0.0
    %1600 = vmatpush2.msra.mxu0 0.0
    %1601 = vmatprep.subr.mxu0 0.0
    %1602 = vmatpush2.msra.mxu0 0.0
    %1603 = vmatprep.subr.mxu0 0.0
    %1604 = vmatpush2.msra.mxu0 0.0
    %1605 = vmatprep.subr.mxu0 0.0
    %1606 = vmatpush2.msra.mxu0 0.0
    %1607 = vmatprep.subr.mxu0 0.0
    %1608 = vmatpush2.msra.mxu0 0.0
    %1609 = vmatprep.subr.mxu0 0.0
    %1610 = vmatpush2.msra.mxu0 0.0
    %1611 = vmatprep.subr.mxu0 0.0
    %1612 = vmatpush2.msra.mxu0 0.0
    %1613 = vmatprep.subr.mxu0 0.0
    %1614 = vmatpush2.msra.mxu0 0.0
    %1615 = vmatprep.subr.mxu0 0.0
    %1616 = vmatpush2.msra.mxu0 0.0
    %1617 = vmatprep.subr.mxu0 0.0
    %1618 = vmatpush2.msra.mxu0 0.0
    %1619 = vmatprep.subr.mxu0 0.0
    %1620 = vmatpush2.msra.mxu0 0.0
    %1621 = vmatprep.subr.mxu0 0.0
    %1622 = vmatpush2.msra.mxu0 0.0
    %1623 = vmatprep.subr.mxu0 0.0
    %1624 = vmatpush2.msra.mxu0 0.0
    %1625 = vmatprep.subr.mxu0 0.0
    %1626 = vmatpush2.msra.mxu0 0.0
    %1627 = vmatprep.subr.mxu0 0.0
    %1628 = vmatpush2.msra.mxu0 0.0
    %1629 = vmatprep.mubr.f32.mxu0 0.0
    %1630 = vmatmul.mubr.f32.gmra.mxu0 %v1563
    %v1631 = vpop.f32.mrf.mxu0
    %v1632 = vadd.f32 %v1558, %v1631
    %v1633 = vpop.f32.mrf.mxu0
    %1634 = vdwg.mxu0
    %s1635 = scalar_lea.vmem %s10, 24
    %1636 = vst [vmem:[%s1635] sm:$0xff] %v1632
    %s1637 = scalar_lea.vmem [#allocation2], 40
    %v1638 = vld [vmem:[%s1637] sm:$0xff]
    %v1639 = vld [vmem:[%s3] sm:$0xff]
    %v1640 = vld [vmem:[%s3 + $0x8] sm:$0xff]
    %v1641 = vld [vmem:[%s3 + $0x10] sm:$0xff]
    %v1642 = vld [vmem:[%s3 + $0x18] sm:$0xff]
    %1644 = vrot.lane.b32.xlu0 %v1431, 32
    %v1645 = vpop.permute.xlu0 %1644
    %v1646 = vsel %vm289, %v1645, 0
    %1648 = vmatprep.subr.mxu0 0.0
    %1649 = vmatpush1.msra.mxu0 0.0
    %1650 = vmatprep.subr.mxu0 0.0
    %1651 = vmatpush1.msra.mxu0 0.0
    %1652 = vmatprep.subr.mxu0 0.0
    %1653 = vmatpush1.msra.mxu0 0.0
    %1654 = vmatprep.subr.mxu0 0.0
    %1655 = vmatpush1.msra.mxu0 0.0
    %1656 = vmatprep.subr.mxu0 0.0
    %1657 = vmatpush1.msra.mxu0 0.0
    %1658 = vmatprep.subr.mxu0 0.0
    %1659 = vmatpush1.msra.mxu0 0.0
    %1660 = vmatprep.subr.mxu0 0.0
    %1661 = vmatpush1.msra.mxu0 0.0
    %1662 = vmatprep.subr.mxu0 0.0
    %1663 = vmatpush1.msra.mxu0 0.0
    %1664 = vmatprep.subr.mxu0 0.0
    %1665 = vmatpush1.msra.mxu0 0.0
    %1666 = vmatprep.subr.mxu0 0.0
    %1667 = vmatpush1.msra.mxu0 0.0
    %1668 = vmatprep.subr.mxu0 0.0
    %1669 = vmatpush1.msra.mxu0 0.0
    %1670 = vmatprep.subr.mxu0 0.0
    %1671 = vmatpush1.msra.mxu0 0.0
    %1672 = vmatprep.subr.mxu0 0.0
    %1673 = vmatpush1.msra.mxu0 %v1642
    %1674 = vmatprep.subr.mxu0 0.0
    %1675 = vmatpush1.msra.mxu0 %v1641
    %1676 = vmatprep.subr.mxu0 0.0
    %1677 = vmatpush1.msra.mxu0 %v1640
    %1678 = vmatprep.subr.mxu0 0.0
    %1679 = vmatpush1.msra.mxu0 %v1639
    %1680 = vmatprep.subr.mxu0 0.0
    %1681 = vmatpush2.msra.mxu0 0.0
    %1682 = vmatprep.subr.mxu0 0.0
    %1683 = vmatpush2.msra.mxu0 0.0
    %1684 = vmatprep.subr.mxu0 0.0
    %1685 = vmatpush2.msra.mxu0 0.0
    %1686 = vmatprep.subr.mxu0 0.0
    %1687 = vmatpush2.msra.mxu0 0.0
    %1688 = vmatprep.subr.mxu0 0.0
    %1689 = vmatpush2.msra.mxu0 0.0
    %1690 = vmatprep.subr.mxu0 0.0
    %1691 = vmatpush2.msra.mxu0 0.0
    %1692 = vmatprep.subr.mxu0 0.0
    %1693 = vmatpush2.msra.mxu0 0.0
    %1694 = vmatprep.subr.mxu0 0.0
    %1695 = vmatpush2.msra.mxu0 0.0
    %1696 = vmatprep.subr.mxu0 0.0
    %1697 = vmatpush2.msra.mxu0 0.0
    %1698 = vmatprep.subr.mxu0 0.0
    %1699 = vmatpush2.msra.mxu0 0.0
    %1700 = vmatprep.subr.mxu0 0.0
    %1701 = vmatpush2.msra.mxu0 0.0
    %1702 = vmatprep.subr.mxu0 0.0
    %1703 = vmatpush2.msra.mxu0 0.0
    %1704 = vmatprep.subr.mxu0 0.0
    %1705 = vmatpush2.msra.mxu0 0.0
    %1706 = vmatprep.subr.mxu0 0.0
    %1707 = vmatpush2.msra.mxu0 0.0
    %1708 = vmatprep.subr.mxu0 0.0
    %1709 = vmatpush2.msra.mxu0 0.0
    %1710 = vmatprep.subr.mxu0 0.0
    %1711 = vmatpush2.msra.mxu0 0.0
    %1712 = vmatprep.mubr.f32.mxu0 0.0
    %1713 = vmatmul.mubr.f32.gmra.mxu0 %v1646
    %v1714 = vpop.f32.mrf.mxu0
    %v1715 = vadd.f32 0.0, %v1714
    %v1716 = vpop.f32.mrf.mxu0
    %1717 = vdwg.mxu0
    %v1718 = vadd.f32 %v1638, %v1715
    %v1719 = vxor.u32 %v1718, 2147483648
    %v1720 = vmul.f32 %v1719, 1.442695
    %v1721 = vpow.pop %v1720
    %v1722 = vadd.f32 %v1721, 1.0
    %v1723 = vrcp.pop %v1722
    %v1724 = vmul.f32 1.0, %v1723
    %v1725 = vtanh.pop %v1718
    %v1726 = vmul.f32 %v1724, %v1425
    %1728 = vrot.lane.b32.xlu0 %v1725, 64
    %v1729 = vpop.permute.xlu0 %1728
    %v1731 = vmul.f32 %v1724, %v1729
    %1733 = vrot.lane.b32.xlu0 %v1731, 32
    %v1734 = vpop.permute.xlu0 %1733
    %v1736 = vadd.f32 %v1726, %v1734
    %v1737 = vtanh.pop %v1736
    %1739 = vrot.lane.b32.xlu0 %v1737, 64
    %v1740 = vpop.permute.xlu0 %1739
    %v1742 = vmul.f32 %v1724, %v1740
    %v1743 = vld [vmem:[%s4] sm:$0xff]
    %v1744 = vld [vmem:[%s4 + $0x8] sm:$0xff]
    %v1745 = vld [vmem:[%s4 + $0x10] sm:$0xff]
    %v1746 = vld [vmem:[%s4 + $0x18] sm:$0xff]
    %v1747 = vld [vmem:[%s4 + $0x20] sm:$0xff]
    %v1748 = vld [vmem:[%s4 + $0x28] sm:$0xff]
    %v1749 = vld [vmem:[%s4 + $0x30] sm:$0xff]
    %v1750 = vld [vmem:[%s4 + $0x38] sm:$0xff]
    %v1751 = vld [vmem:[#allocation5] sm:$0x1]
    %1753 = vrot.lane.b32.xlu0 %v1548, 64
    %v1754 = vpop.permute.xlu0 %1753
    %v1756 = vsel %vm289, %v1645, %v1754
    %v1758 = vlaneseq
    %v1759 = vshrl.u32 %v1758, 7
    %v1760 = vsub.s32 0, %v1759
    %v1761 = vrot.slane %v1751, %v1760
    %v1764 = vsel %vm515, %v1756, 0
    %1766 = vmatprep.subr.mxu0 0.0
    %1767 = vmatpush1.msra.mxu0 0.0
    %1768 = vmatprep.subr.mxu0 0.0
    %1769 = vmatpush1.msra.mxu0 0.0
    %1770 = vmatprep.subr.mxu0 0.0
    %1771 = vmatpush1.msra.mxu0 0.0
    %1772 = vmatprep.subr.mxu0 0.0
    %1773 = vmatpush1.msra.mxu0 0.0
    %1774 = vmatprep.subr.mxu0 0.0
    %1775 = vmatpush1.msra.mxu0 0.0
    %1776 = vmatprep.subr.mxu0 0.0
    %1777 = vmatpush1.msra.mxu0 0.0
    %1778 = vmatprep.subr.mxu0 0.0
    %1779 = vmatpush1.msra.mxu0 0.0
    %1780 = vmatprep.subr.mxu0 0.0
    %1781 = vmatpush1.msra.mxu0 0.0
    %1782 = vmatprep.subr.mxu0 0.0
    %1783 = vmatpush1.msra.mxu0 %v1750
    %1784 = vmatprep.subr.mxu0 0.0
    %1785 = vmatpush1.msra.mxu0 %v1749
    %1786 = vmatprep.subr.mxu0 0.0
    %1787 = vmatpush1.msra.mxu0 %v1748
    %1788 = vmatprep.subr.mxu0 0.0
    %1789 = vmatpush1.msra.mxu0 %v1747
    %1790 = vmatprep.subr.mxu0 0.0
    %1791 = vmatpush1.msra.mxu0 %v1746
    %1792 = vmatprep.subr.mxu0 0.0
    %1793 = vmatpush1.msra.mxu0 %v1745
    %1794 = vmatprep.subr.mxu0 0.0
    %1795 = vmatpush1.msra.mxu0 %v1744
    %1796 = vmatprep.subr.mxu0 0.0
    %1797 = vmatpush1.msra.mxu0 %v1743
    %1798 = vmatprep.subr.mxu0 0.0
    %1799 = vmatpush2.msra.mxu0 0.0
    %1800 = vmatprep.subr.mxu0 0.0
    %1801 = vmatpush2.msra.mxu0 0.0
    %1802 = vmatprep.subr.mxu0 0.0
    %1803 = vmatpush2.msra.mxu0 0.0
    %1804 = vmatprep.subr.mxu0 0.0
    %1805 = vmatpush2.msra.mxu0 0.0
    %1806 = vmatprep.subr.mxu0 0.0
    %1807 = vmatpush2.msra.mxu0 0.0
    %1808 = vmatprep.subr.mxu0 0.0
    %1809 = vmatpush2.msra.mxu0 0.0
    %1810 = vmatprep.subr.mxu0 0.0
    %1811 = vmatpush2.msra.mxu0 0.0
    %1812 = vmatprep.subr.mxu0 0.0
    %1813 = vmatpush2.msra.mxu0 0.0
    %1814 = vmatprep.subr.mxu0 0.0
    %1815 = vmatpush2.msra.mxu0 0.0
    %1816 = vmatprep.subr.mxu0 0.0
    %1817 = vmatpush2.msra.mxu0 0.0
    %1818 = vmatprep.subr.mxu0 0.0
    %1819 = vmatpush2.msra.mxu0 0.0
    %1820 = vmatprep.subr.mxu0 0.0
    %1821 = vmatpush2.msra.mxu0 0.0
    %1822 = vmatprep.subr.mxu0 0.0
    %1823 = vmatpush2.msra.mxu0 0.0
    %1824 = vmatprep.subr.mxu0 0.0
    %1825 = vmatpush2.msra.mxu0 0.0
    %1826 = vmatprep.subr.mxu0 0.0
    %1827 = vmatpush2.msra.mxu0 0.0
    %1828 = vmatprep.subr.mxu0 0.0
    %1829 = vmatpush2.msra.mxu0 0.0
    %1830 = vmatprep.mubr.f32.mxu0 0.0
    %1831 = vmatmul.mubr.f32.gmra.mxu0 %v1764
    %v1832 = vpop.f32.mrf.mxu0
    %v1833 = vadd.f32 %v1761, %v1832
    %v1834 = vpop.f32.mrf.mxu0
    %1835 = vdwg.mxu0
    %v1836 = vxor.u32 %v1833, 2147483648
    %v1837 = vmul.f32 %v1836, 1.442695
    %v1838 = vpow.pop %v1837
    %v1839 = vadd.f32 %v1838, 1.0
    %v1840 = vrcp.pop %v1839
    %v1841 = vmul.f32 1.0, %v1840
    %v1842 = vtanh.pop %v1833
    %v1843 = vmul.f32 %v1841, %v1542
    %1845 = vrot.lane.b32.xlu0 %v1842, 64
    %v1846 = vpop.permute.xlu0 %1845
    %v1848 = vmul.f32 %v1841, %v1846
    %1850 = vrot.lane.b32.xlu0 %v1848, 32
    %v1851 = vpop.permute.xlu0 %1850
    %v1853 = vadd.f32 %v1843, %v1851
    %v1854 = vtanh.pop %v1853
    %1856 = vrot.lane.b32.xlu0 %v1854, 64
    %v1857 = vpop.permute.xlu0 %1856
    %v1859 = vmul.f32 %v1841, %v1857
    %v1860 = vld [vmem:[%s8] sm:$0xff]
    %v1861 = vld [vmem:[%s8 + $0x8] sm:$0xff]
    %v1862 = vld [vmem:[%s8 + $0x10] sm:$0xff]
    %v1863 = vld [vmem:[%s8 + $0x18] sm:$0xff]
    %v1864 = vld [vmem:[#allocation7] sm:$0x1]
    %v1866 = vlaneseq
    %v1867 = vshrl.u32 %v1866, 7
    %v1868 = vsub.s32 0, %v1867
    %v1869 = vrot.slane %v1864, %v1868
    %1872 = vrot.lane.b32.xlu0 %v1859, 32
    %v1873 = vpop.permute.xlu0 %1872
    %v1874 = vsel %vm289, %v1873, 0
    %1876 = vmatprep.subr.mxu0 0.0
    %1877 = vmatpush1.msra.mxu0 0.0
    %1878 = vmatprep.subr.mxu0 0.0
    %1879 = vmatpush1.msra.mxu0 0.0
    %1880 = vmatprep.subr.mxu0 0.0
    %1881 = vmatpush1.msra.mxu0 0.0
    %1882 = vmatprep.subr.mxu0 0.0
    %1883 = vmatpush1.msra.mxu0 0.0
    %1884 = vmatprep.subr.mxu0 0.0
    %1885 = vmatpush1.msra.mxu0 0.0
    %1886 = vmatprep.subr.mxu0 0.0
    %1887 = vmatpush1.msra.mxu0 0.0
    %1888 = vmatprep.subr.mxu0 0.0
    %1889 = vmatpush1.msra.mxu0 0.0
    %1890 = vmatprep.subr.mxu0 0.0
    %1891 = vmatpush1.msra.mxu0 0.0
    %1892 = vmatprep.subr.mxu0 0.0
    %1893 = vmatpush1.msra.mxu0 0.0
    %1894 = vmatprep.subr.mxu0 0.0
    %1895 = vmatpush1.msra.mxu0 0.0
    %1896 = vmatprep.subr.mxu0 0.0
    %1897 = vmatpush1.msra.mxu0 0.0
    %1898 = vmatprep.subr.mxu0 0.0
    %1899 = vmatpush1.msra.mxu0 0.0
    %1900 = vmatprep.subr.mxu0 0.0
    %1901 = vmatpush1.msra.mxu0 %v1863
    %1902 = vmatprep.subr.mxu0 0.0
    %1903 = vmatpush1.msra.mxu0 %v1862
    %1904 = vmatprep.subr.mxu0 0.0
    %1905 = vmatpush1.msra.mxu0 %v1861
    %1906 = vmatprep.subr.mxu0 0.0
    %1907 = vmatpush1.msra.mxu0 %v1860
    %1908 = vmatprep.subr.mxu0 0.0
    %1909 = vmatpush2.msra.mxu0 0.0
    %1910 = vmatprep.subr.mxu0 0.0
    %1911 = vmatpush2.msra.mxu0 0.0
    %1912 = vmatprep.subr.mxu0 0.0
    %1913 = vmatpush2.msra.mxu0 0.0
    %1914 = vmatprep.subr.mxu0 0.0
    %1915 = vmatpush2.msra.mxu0 0.0
    %1916 = vmatprep.subr.mxu0 0.0
    %1917 = vmatpush2.msra.mxu0 0.0
    %1918 = vmatprep.subr.mxu0 0.0
    %1919 = vmatpush2.msra.mxu0 0.0
    %1920 = vmatprep.subr.mxu0 0.0
    %1921 = vmatpush2.msra.mxu0 0.0
    %1922 = vmatprep.subr.mxu0 0.0
    %1923 = vmatpush2.msra.mxu0 0.0
    %1924 = vmatprep.subr.mxu0 0.0
    %1925 = vmatpush2.msra.mxu0 0.0
    %1926 = vmatprep.subr.mxu0 0.0
    %1927 = vmatpush2.msra.mxu0 0.0
    %1928 = vmatprep.subr.mxu0 0.0
    %1929 = vmatpush2.msra.mxu0 0.0
    %1930 = vmatprep.subr.mxu0 0.0
    %1931 = vmatpush2.msra.mxu0 0.0
    %1932 = vmatprep.subr.mxu0 0.0
    %1933 = vmatpush2.msra.mxu0 0.0
    %1934 = vmatprep.subr.mxu0 0.0
    %1935 = vmatpush2.msra.mxu0 0.0
    %1936 = vmatprep.subr.mxu0 0.0
    %1937 = vmatpush2.msra.mxu0 0.0
    %1938 = vmatprep.subr.mxu0 0.0
    %1939 = vmatpush2.msra.mxu0 0.0
    %1940 = vmatprep.mubr.f32.mxu0 0.0
    %1941 = vmatmul.mubr.f32.gmra.mxu0 %v1874
    %v1942 = vpop.f32.mrf.mxu0
    %v1943 = vadd.f32 %v1869, %v1942
    %v1944 = vpop.f32.mrf.mxu0
    %1945 = vdwg.mxu0
    %s1946 = scalar_lea.vmem %s10, 32
    %1947 = vst [vmem:[%s1946] sm:$0xff] %v1943
    %s1948 = scalar_lea.vmem [#allocation2], 48
    %v1949 = vld [vmem:[%s1948] sm:$0xff]
    %v1950 = vld [vmem:[%s3] sm:$0xff]
    %v1951 = vld [vmem:[%s3 + $0x8] sm:$0xff]
    %v1952 = vld [vmem:[%s3 + $0x10] sm:$0xff]
    %v1953 = vld [vmem:[%s3 + $0x18] sm:$0xff]
    %1955 = vrot.lane.b32.xlu0 %v1742, 32
    %v1956 = vpop.permute.xlu0 %1955
    %v1957 = vsel %vm289, %v1956, 0
    %1959 = vmatprep.subr.mxu0 0.0
    %1960 = vmatpush1.msra.mxu0 0.0
    %1961 = vmatprep.subr.mxu0 0.0
    %1962 = vmatpush1.msra.mxu0 0.0
    %1963 = vmatprep.subr.mxu0 0.0
    %1964 = vmatpush1.msra.mxu0 0.0
    %1965 = vmatprep.subr.mxu0 0.0
    %1966 = vmatpush1.msra.mxu0 0.0
    %1967 = vmatprep.subr.mxu0 0.0
    %1968 = vmatpush1.msra.mxu0 0.0
    %1969 = vmatprep.subr.mxu0 0.0
    %1970 = vmatpush1.msra.mxu0 0.0
    %1971 = vmatprep.subr.mxu0 0.0
    %1972 = vmatpush1.msra.mxu0 0.0
    %1973 = vmatprep.subr.mxu0 0.0
    %1974 = vmatpush1.msra.mxu0 0.0
    %1975 = vmatprep.subr.mxu0 0.0
    %1976 = vmatpush1.msra.mxu0 0.0
    %1977 = vmatprep.subr.mxu0 0.0
    %1978 = vmatpush1.msra.mxu0 0.0
    %1979 = vmatprep.subr.mxu0 0.0
    %1980 = vmatpush1.msra.mxu0 0.0
    %1981 = vmatprep.subr.mxu0 0.0
    %1982 = vmatpush1.msra.mxu0 0.0
    %1983 = vmatprep.subr.mxu0 0.0
    %1984 = vmatpush1.msra.mxu0 %v1953
    %1985 = vmatprep.subr.mxu0 0.0
    %1986 = vmatpush1.msra.mxu0 %v1952
    %1987 = vmatprep.subr.mxu0 0.0
    %1988 = vmatpush1.msra.mxu0 %v1951
    %1989 = vmatprep.subr.mxu0 0.0
    %1990 = vmatpush1.msra.mxu0 %v1950
    %1991 = vmatprep.subr.mxu0 0.0
    %1992 = vmatpush2.msra.mxu0 0.0
    %1993 = vmatprep.subr.mxu0 0.0
    %1994 = vmatpush2.msra.mxu0 0.0
    %1995 = vmatprep.subr.mxu0 0.0
    %1996 = vmatpush2.msra.mxu0 0.0
    %1997 = vmatprep.subr.mxu0 0.0
    %1998 = vmatpush2.msra.mxu0 0.0
    %1999 = vmatprep.subr.mxu0 0.0
    %2000 = vmatpush2.msra.mxu0 0.0
    %2001 = vmatprep.subr.mxu0 0.0
    %2002 = vmatpush2.msra.mxu0 0.0
    %2003 = vmatprep.subr.mxu0 0.0
    %2004 = vmatpush2.msra.mxu0 0.0
    %2005 = vmatprep.subr.mxu0 0.0
    %2006 = vmatpush2.msra.mxu0 0.0
    %2007 = vmatprep.subr.mxu0 0.0
    %2008 = vmatpush2.msra.mxu0 0.0
    %2009 = vmatprep.subr.mxu0 0.0
    %2010 = vmatpush2.msra.mxu0 0.0
    %2011 = vmatprep.subr.mxu0 0.0
    %2012 = vmatpush2.msra.mxu0 0.0
    %2013 = vmatprep.subr.mxu0 0.0
    %2014 = vmatpush2.msra.mxu0 0.0
    %2015 = vmatprep.subr.mxu0 0.0
    %2016 = vmatpush2.msra.mxu0 0.0
    %2017 = vmatprep.subr.mxu0 0.0
    %2018 = vmatpush2.msra.mxu0 0.0
    %2019 = vmatprep.subr.mxu0 0.0
    %2020 = vmatpush2.msra.mxu0 0.0
    %2021 = vmatprep.subr.mxu0 0.0
    %2022 = vmatpush2.msra.mxu0 0.0
    %2023 = vmatprep.mubr.f32.mxu0 0.0
    %2024 = vmatmul.mubr.f32.gmra.mxu0 %v1957
    %v2025 = vpop.f32.mrf.mxu0
    %v2026 = vadd.f32 0.0, %v2025
    %v2027 = vpop.f32.mrf.mxu0
    %2028 = vdwg.mxu0
    %v2029 = vadd.f32 %v1949, %v2026
    %v2030 = vxor.u32 %v2029, 2147483648
    %v2031 = vmul.f32 %v2030, 1.442695
    %v2032 = vpow.pop %v2031
    %v2033 = vadd.f32 %v2032, 1.0
    %v2034 = vrcp.pop %v2033
    %v2035 = vmul.f32 1.0, %v2034
    %v2036 = vtanh.pop %v2029
    %v2037 = vmul.f32 %v2035, %v1736
    %2039 = vrot.lane.b32.xlu0 %v2036, 64
    %v2040 = vpop.permute.xlu0 %2039
    %v2042 = vmul.f32 %v2035, %v2040
    %2044 = vrot.lane.b32.xlu0 %v2042, 32
    %v2045 = vpop.permute.xlu0 %2044
    %v2047 = vadd.f32 %v2037, %v2045
    %v2048 = vtanh.pop %v2047
    %2050 = vrot.lane.b32.xlu0 %v2048, 64
    %v2051 = vpop.permute.xlu0 %2050
    %v2053 = vmul.f32 %v2035, %v2051
    %v2054 = vld [vmem:[%s4] sm:$0xff]
    %v2055 = vld [vmem:[%s4 + $0x8] sm:$0xff]
    %v2056 = vld [vmem:[%s4 + $0x10] sm:$0xff]
    %v2057 = vld [vmem:[%s4 + $0x18] sm:$0xff]
    %v2058 = vld [vmem:[%s4 + $0x20] sm:$0xff]
    %v2059 = vld [vmem:[%s4 + $0x28] sm:$0xff]
    %v2060 = vld [vmem:[%s4 + $0x30] sm:$0xff]
    %v2061 = vld [vmem:[%s4 + $0x38] sm:$0xff]
    %v2062 = vld [vmem:[#allocation5] sm:$0x1]
    %2064 = vrot.lane.b32.xlu0 %v1859, 64
    %v2065 = vpop.permute.xlu0 %2064
    %v2067 = vsel %vm289, %v1956, %v2065
    %v2069 = vlaneseq
    %v2070 = vshrl.u32 %v2069, 7
    %v2071 = vsub.s32 0, %v2070
    %v2072 = vrot.slane %v2062, %v2071
    %v2075 = vsel %vm515, %v2067, 0
    %2077 = vmatprep.subr.mxu0 0.0
    %2078 = vmatpush1.msra.mxu0 0.0
    %2079 = vmatprep.subr.mxu0 0.0
    %2080 = vmatpush1.msra.mxu0 0.0
    %2081 = vmatprep.subr.mxu0 0.0
    %2082 = vmatpush1.msra.mxu0 0.0
    %2083 = vmatprep.subr.mxu0 0.0
    %2084 = vmatpush1.msra.mxu0 0.0
    %2085 = vmatprep.subr.mxu0 0.0
    %2086 = vmatpush1.msra.mxu0 0.0
    %2087 = vmatprep.subr.mxu0 0.0
    %2088 = vmatpush1.msra.mxu0 0.0
    %2089 = vmatprep.subr.mxu0 0.0
    %2090 = vmatpush1.msra.mxu0 0.0
    %2091 = vmatprep.subr.mxu0 0.0
    %2092 = vmatpush1.msra.mxu0 0.0
    %2093 = vmatprep.subr.mxu0 0.0
    %2094 = vmatpush1.msra.mxu0 %v2061
    %2095 = vmatprep.subr.mxu0 0.0
    %2096 = vmatpush1.msra.mxu0 %v2060
    %2097 = vmatprep.subr.mxu0 0.0
    %2098 = vmatpush1.msra.mxu0 %v2059
    %2099 = vmatprep.subr.mxu0 0.0
    %2100 = vmatpush1.msra.mxu0 %v2058
    %2101 = vmatprep.subr.mxu0 0.0
    %2102 = vmatpush1.msra.mxu0 %v2057
    %2103 = vmatprep.subr.mxu0 0.0
    %2104 = vmatpush1.msra.mxu0 %v2056
    %2105 = vmatprep.subr.mxu0 0.0
    %2106 = vmatpush1.msra.mxu0 %v2055
    %2107 = vmatprep.subr.mxu0 0.0
    %2108 = vmatpush1.msra.mxu0 %v2054
    %2109 = vmatprep.subr.mxu0 0.0
    %2110 = vmatpush2.msra.mxu0 0.0
    %2111 = vmatprep.subr.mxu0 0.0
    %2112 = vmatpush2.msra.mxu0 0.0
    %2113 = vmatprep.subr.mxu0 0.0
    %2114 = vmatpush2.msra.mxu0 0.0
    %2115 = vmatprep.subr.mxu0 0.0
    %2116 = vmatpush2.msra.mxu0 0.0
    %2117 = vmatprep.subr.mxu0 0.0
    %2118 = vmatpush2.msra.mxu0 0.0
    %2119 = vmatprep.subr.mxu0 0.0
    %2120 = vmatpush2.msra.mxu0 0.0
    %2121 = vmatprep.subr.mxu0 0.0
    %2122 = vmatpush2.msra.mxu0 0.0
    %2123 = vmatprep.subr.mxu0 0.0
    %2124 = vmatpush2.msra.mxu0 0.0
    %2125 = vmatprep.subr.mxu0 0.0
    %2126 = vmatpush2.msra.mxu0 0.0
    %2127 = vmatprep.subr.mxu0 0.0
    %2128 = vmatpush2.msra.mxu0 0.0
    %2129 = vmatprep.subr.mxu0 0.0
    %2130 = vmatpush2.msra.mxu0 0.0
    %2131 = vmatprep.subr.mxu0 0.0
    %2132 = vmatpush2.msra.mxu0 0.0
    %2133 = vmatprep.subr.mxu0 0.0
    %2134 = vmatpush2.msra.mxu0 0.0
    %2135 = vmatprep.subr.mxu0 0.0
    %2136 = vmatpush2.msra.mxu0 0.0
    %2137 = vmatprep.subr.mxu0 0.0
    %2138 = vmatpush2.msra.mxu0 0.0
    %2139 = vmatprep.subr.mxu0 0.0
    %2140 = vmatpush2.msra.mxu0 0.0
    %2141 = vmatprep.mubr.f32.mxu0 0.0
    %2142 = vmatmul.mubr.f32.gmra.mxu0 %v2075
    %v2143 = vpop.f32.mrf.mxu0
    %v2144 = vadd.f32 %v2072, %v2143
    %v2145 = vpop.f32.mrf.mxu0
    %2146 = vdwg.mxu0
    %v2147 = vxor.u32 %v2144, 2147483648
    %v2148 = vmul.f32 %v2147, 1.442695
    %v2149 = vpow.pop %v2148
    %v2150 = vadd.f32 %v2149, 1.0
    %v2151 = vrcp.pop %v2150
    %v2152 = vmul.f32 1.0, %v2151
    %v2153 = vtanh.pop %v2144
    %v2154 = vmul.f32 %v2152, %v1853
    %2156 = vrot.lane.b32.xlu0 %v2153, 64
    %v2157 = vpop.permute.xlu0 %2156
    %v2159 = vmul.f32 %v2152, %v2157
    %2161 = vrot.lane.b32.xlu0 %v2159, 32
    %v2162 = vpop.permute.xlu0 %2161
    %v2164 = vadd.f32 %v2154, %v2162
    %v2165 = vtanh.pop %v2164
    %2167 = vrot.lane.b32.xlu0 %v2165, 64
    %v2168 = vpop.permute.xlu0 %2167
    %v2170 = vmul.f32 %v2152, %v2168
    %v2171 = vld [vmem:[%s8] sm:$0xff]
    %v2172 = vld [vmem:[%s8 + $0x8] sm:$0xff]
    %v2173 = vld [vmem:[%s8 + $0x10] sm:$0xff]
    %v2174 = vld [vmem:[%s8 + $0x18] sm:$0xff]
    %v2175 = vld [vmem:[#allocation7] sm:$0x1]
    %v2177 = vlaneseq
    %v2178 = vshrl.u32 %v2177, 7
    %v2179 = vsub.s32 0, %v2178
    %v2180 = vrot.slane %v2175, %v2179
    %2183 = vrot.lane.b32.xlu0 %v2170, 32
    %v2184 = vpop.permute.xlu0 %2183
    %v2185 = vsel %vm289, %v2184, 0
    %2187 = vmatprep.subr.mxu0 0.0
    %2188 = vmatpush1.msra.mxu0 0.0
    %2189 = vmatprep.subr.mxu0 0.0
    %2190 = vmatpush1.msra.mxu0 0.0
    %2191 = vmatprep.subr.mxu0 0.0
    %2192 = vmatpush1.msra.mxu0 0.0
    %2193 = vmatprep.subr.mxu0 0.0
    %2194 = vmatpush1.msra.mxu0 0.0
    %2195 = vmatprep.subr.mxu0 0.0
    %2196 = vmatpush1.msra.mxu0 0.0
    %2197 = vmatprep.subr.mxu0 0.0
    %2198 = vmatpush1.msra.mxu0 0.0
    %2199 = vmatprep.subr.mxu0 0.0
    %2200 = vmatpush1.msra.mxu0 0.0
    %2201 = vmatprep.subr.mxu0 0.0
    %2202 = vmatpush1.msra.mxu0 0.0
    %2203 = vmatprep.subr.mxu0 0.0
    %2204 = vmatpush1.msra.mxu0 0.0
    %2205 = vmatprep.subr.mxu0 0.0
    %2206 = vmatpush1.msra.mxu0 0.0
    %2207 = vmatprep.subr.mxu0 0.0
    %2208 = vmatpush1.msra.mxu0 0.0
    %2209 = vmatprep.subr.mxu0 0.0
    %2210 = vmatpush1.msra.mxu0 0.0
    %2211 = vmatprep.subr.mxu0 0.0
    %2212 = vmatpush1.msra.mxu0 %v2174
    %2213 = vmatprep.subr.mxu0 0.0
    %2214 = vmatpush1.msra.mxu0 %v2173
    %2215 = vmatprep.subr.mxu0 0.0
    %2216 = vmatpush1.msra.mxu0 %v2172
    %2217 = vmatprep.subr.mxu0 0.0
    %2218 = vmatpush1.msra.mxu0 %v2171
    %2219 = vmatprep.subr.mxu0 0.0
    %2220 = vmatpush2.msra.mxu0 0.0
    %2221 = vmatprep.subr.mxu0 0.0
    %2222 = vmatpush2.msra.mxu0 0.0
    %2223 = vmatprep.subr.mxu0 0.0
    %2224 = vmatpush2.msra.mxu0 0.0
    %2225 = vmatprep.subr.mxu0 0.0
    %2226 = vmatpush2.msra.mxu0 0.0
    %2227 = vmatprep.subr.mxu0 0.0
    %2228 = vmatpush2.msra.mxu0 0.0
    %2229 = vmatprep.subr.mxu0 0.0
    %2230 = vmatpush2.msra.mxu0 0.0
    %2231 = vmatprep.subr.mxu0 0.0
    %2232 = vmatpush2.msra.mxu0 0.0
    %2233 = vmatprep.subr.mxu0 0.0
    %2234 = vmatpush2.msra.mxu0 0.0
    %2235 = vmatprep.subr.mxu0 0.0
    %2236 = vmatpush2.msra.mxu0 0.0
    %2237 = vmatprep.subr.mxu0 0.0
    %2238 = vmatpush2.msra.mxu0 0.0
    %2239 = vmatprep.subr.mxu0 0.0
    %2240 = vmatpush2.msra.mxu0 0.0
    %2241 = vmatprep.subr.mxu0 0.0
    %2242 = vmatpush2.msra.mxu0 0.0
    %2243 = vmatprep.subr.mxu0 0.0
    %2244 = vmatpush2.msra.mxu0 0.0
    %2245 = vmatprep.subr.mxu0 0.0
    %2246 = vmatpush2.msra.mxu0 0.0
    %2247 = vmatprep.subr.mxu0 0.0
    %2248 = vmatpush2.msra.mxu0 0.0
    %2249 = vmatprep.subr.mxu0 0.0
    %2250 = vmatpush2.msra.mxu0 0.0
    %2251 = vmatprep.mubr.f32.mxu0 0.0
    %2252 = vmatmul.mubr.f32.gmra.mxu0 %v2185
    %v2253 = vpop.f32.mrf.mxu0
    %v2254 = vadd.f32 %v2180, %v2253
    %v2255 = vpop.f32.mrf.mxu0
    %2256 = vdwg.mxu0
    %s2257 = scalar_lea.vmem %s10, 40
    %2258 = vst [vmem:[%s2257] sm:$0xff] %v2254
    %s2259 = scalar_lea.vmem [#allocation2], 56
    %v2260 = vld [vmem:[%s2259] sm:$0xff]
    %v2261 = vld [vmem:[%s3] sm:$0xff]
    %v2262 = vld [vmem:[%s3 + $0x8] sm:$0xff]
    %v2263 = vld [vmem:[%s3 + $0x10] sm:$0xff]
    %v2264 = vld [vmem:[%s3 + $0x18] sm:$0xff]
    %2266 = vrot.lane.b32.xlu0 %v2053, 32
    %v2267 = vpop.permute.xlu0 %2266
    %v2268 = vsel %vm289, %v2267, 0
    %2270 = vmatprep.subr.mxu0 0.0
    %2271 = vmatpush1.msra.mxu0 0.0
    %2272 = vmatprep.subr.mxu0 0.0
    %2273 = vmatpush1.msra.mxu0 0.0
    %2274 = vmatprep.subr.mxu0 0.0
    %2275 = vmatpush1.msra.mxu0 0.0
    %2276 = vmatprep.subr.mxu0 0.0
    %2277 = vmatpush1.msra.mxu0 0.0
    %2278 = vmatprep.subr.mxu0 0.0
    %2279 = vmatpush1.msra.mxu0 0.0
    %2280 = vmatprep.subr.mxu0 0.0
    %2281 = vmatpush1.msra.mxu0 0.0
    %2282 = vmatprep.subr.mxu0 0.0
    %2283 = vmatpush1.msra.mxu0 0.0
    %2284 = vmatprep.subr.mxu0 0.0
    %2285 = vmatpush1.msra.mxu0 0.0
    %2286 = vmatprep.subr.mxu0 0.0
    %2287 = vmatpush1.msra.mxu0 0.0
    %2288 = vmatprep.subr.mxu0 0.0
    %2289 = vmatpush1.msra.mxu0 0.0
    %2290 = vmatprep.subr.mxu0 0.0
    %2291 = vmatpush1.msra.mxu0 0.0
    %2292 = vmatprep.subr.mxu0 0.0
    %2293 = vmatpush1.msra.mxu0 0.0
    %2294 = vmatprep.subr.mxu0 0.0
    %2295 = vmatpush1.msra.mxu0 %v2264
    %2296 = vmatprep.subr.mxu0 0.0
    %2297 = vmatpush1.msra.mxu0 %v2263
    %2298 = vmatprep.subr.mxu0 0.0
    %2299 = vmatpush1.msra.mxu0 %v2262
    %2300 = vmatprep.subr.mxu0 0.0
    %2301 = vmatpush1.msra.mxu0 %v2261
    %2302 = vmatprep.subr.mxu0 0.0
    %2303 = vmatpush2.msra.mxu0 0.0
    %2304 = vmatprep.subr.mxu0 0.0
    %2305 = vmatpush2.msra.mxu0 0.0
    %2306 = vmatprep.subr.mxu0 0.0
    %2307 = vmatpush2.msra.mxu0 0.0
    %2308 = vmatprep.subr.mxu0 0.0
    %2309 = vmatpush2.msra.mxu0 0.0
    %2310 = vmatprep.subr.mxu0 0.0
    %2311 = vmatpush2.msra.mxu0 0.0
    %2312 = vmatprep.subr.mxu0 0.0
    %2313 = vmatpush2.msra.mxu0 0.0
    %2314 = vmatprep.subr.mxu0 0.0
    %2315 = vmatpush2.msra.mxu0 0.0
    %2316 = vmatprep.subr.mxu0 0.0
    %2317 = vmatpush2.msra.mxu0 0.0
    %2318 = vmatprep.subr.mxu0 0.0
    %2319 = vmatpush2.msra.mxu0 0.0
    %2320 = vmatprep.subr.mxu0 0.0
    %2321 = vmatpush2.msra.mxu0 0.0
    %2322 = vmatprep.subr.mxu0 0.0
    %2323 = vmatpush2.msra.mxu0 0.0
    %2324 = vmatprep.subr.mxu0 0.0
    %2325 = vmatpush2.msra.mxu0 0.0
    %2326 = vmatprep.subr.mxu0 0.0
    %2327 = vmatpush2.msra.mxu0 0.0
    %2328 = vmatprep.subr.mxu0 0.0
    %2329 = vmatpush2.msra.mxu0 0.0
    %2330 = vmatprep.subr.mxu0 0.0
    %2331 = vmatpush2.msra.mxu0 0.0
    %2332 = vmatprep.subr.mxu0 0.0
    %2333 = vmatpush2.msra.mxu0 0.0
    %2334 = vmatprep.mubr.f32.mxu0 0.0
    %2335 = vmatmul.mubr.f32.gmra.mxu0 %v2268
    %v2336 = vpop.f32.mrf.mxu0
    %v2337 = vadd.f32 0.0, %v2336
    %v2338 = vpop.f32.mrf.mxu0
    %2339 = vdwg.mxu0
    %v2340 = vadd.f32 %v2260, %v2337
    %v2341 = vxor.u32 %v2340, 2147483648
    %v2342 = vmul.f32 %v2341, 1.442695
    %v2343 = vpow.pop %v2342
    %v2344 = vadd.f32 %v2343, 1.0
    %v2345 = vrcp.pop %v2344
    %v2346 = vmul.f32 1.0, %v2345
    %v2347 = vtanh.pop %v2340
    %v2348 = vmul.f32 %v2346, %v2047
    %2350 = vrot.lane.b32.xlu0 %v2347, 64
    %v2351 = vpop.permute.xlu0 %2350
    %v2353 = vmul.f32 %v2346, %v2351
    %2355 = vrot.lane.b32.xlu0 %v2353, 32
    %v2356 = vpop.permute.xlu0 %2355
    %v2358 = vadd.f32 %v2348, %v2356
    %v2359 = vtanh.pop %v2358
    %2361 = vrot.lane.b32.xlu0 %v2359, 64
    %v2362 = vpop.permute.xlu0 %2361
    %v2364 = vmul.f32 %v2346, %v2362
    %v2365 = vld [vmem:[%s4] sm:$0xff]
    %v2366 = vld [vmem:[%s4 + $0x8] sm:$0xff]
    %v2367 = vld [vmem:[%s4 + $0x10] sm:$0xff]
    %v2368 = vld [vmem:[%s4 + $0x18] sm:$0xff]
    %v2369 = vld [vmem:[%s4 + $0x20] sm:$0xff]
    %v2370 = vld [vmem:[%s4 + $0x28] sm:$0xff]
    %v2371 = vld [vmem:[%s4 + $0x30] sm:$0xff]
    %v2372 = vld [vmem:[%s4 + $0x38] sm:$0xff]
    %v2373 = vld [vmem:[#allocation5] sm:$0x1]
    %2375 = vrot.lane.b32.xlu0 %v2170, 64
    %v2376 = vpop.permute.xlu0 %2375
    %v2378 = vsel %vm289, %v2267, %v2376
    %v2380 = vlaneseq
    %v2381 = vshrl.u32 %v2380, 7
    %v2382 = vsub.s32 0, %v2381
    %v2383 = vrot.slane %v2373, %v2382
    %v2386 = vsel %vm515, %v2378, 0
    %2388 = vmatprep.subr.mxu0 0.0
    %2389 = vmatpush1.msra.mxu0 0.0
    %2390 = vmatprep.subr.mxu0 0.0
    %2391 = vmatpush1.msra.mxu0 0.0
    %2392 = vmatprep.subr.mxu0 0.0
    %2393 = vmatpush1.msra.mxu0 0.0
    %2394 = vmatprep.subr.mxu0 0.0
    %2395 = vmatpush1.msra.mxu0 0.0
    %2396 = vmatprep.subr.mxu0 0.0
    %2397 = vmatpush1.msra.mxu0 0.0
    %2398 = vmatprep.subr.mxu0 0.0
    %2399 = vmatpush1.msra.mxu0 0.0
    %2400 = vmatprep.subr.mxu0 0.0
    %2401 = vmatpush1.msra.mxu0 0.0
    %2402 = vmatprep.subr.mxu0 0.0
    %2403 = vmatpush1.msra.mxu0 0.0
    %2404 = vmatprep.subr.mxu0 0.0
    %2405 = vmatpush1.msra.mxu0 %v2372
    %2406 = vmatprep.subr.mxu0 0.0
    %2407 = vmatpush1.msra.mxu0 %v2371
    %2408 = vmatprep.subr.mxu0 0.0
    %2409 = vmatpush1.msra.mxu0 %v2370
    %2410 = vmatprep.subr.mxu0 0.0
    %2411 = vmatpush1.msra.mxu0 %v2369
    %2412 = vmatprep.subr.mxu0 0.0
    %2413 = vmatpush1.msra.mxu0 %v2368
    %2414 = vmatprep.subr.mxu0 0.0
    %2415 = vmatpush1.msra.mxu0 %v2367
    %2416 = vmatprep.subr.mxu0 0.0
    %2417 = vmatpush1.msra.mxu0 %v2366
    %2418 = vmatprep.subr.mxu0 0.0
    %2419 = vmatpush1.msra.mxu0 %v2365
    %2420 = vmatprep.subr.mxu0 0.0
    %2421 = vmatpush2.msra.mxu0 0.0
    %2422 = vmatprep.subr.mxu0 0.0
    %2423 = vmatpush2.msra.mxu0 0.0
    %2424 = vmatprep.subr.mxu0 0.0
    %2425 = vmatpush2.msra.mxu0 0.0
    %2426 = vmatprep.subr.mxu0 0.0
    %2427 = vmatpush2.msra.mxu0 0.0
    %2428 = vmatprep.subr.mxu0 0.0
    %2429 = vmatpush2.msra.mxu0 0.0
    %2430 = vmatprep.subr.mxu0 0.0
    %2431 = vmatpush2.msra.mxu0 0.0
    %2432 = vmatprep.subr.mxu0 0.0
    %2433 = vmatpush2.msra.mxu0 0.0
    %2434 = vmatprep.subr.mxu0 0.0
    %2435 = vmatpush2.msra.mxu0 0.0
    %2436 = vmatprep.subr.mxu0 0.0
    %2437 = vmatpush2.msra.mxu0 0.0
    %2438 = vmatprep.subr.mxu0 0.0
    %2439 = vmatpush2.msra.mxu0 0.0
    %2440 = vmatprep.subr.mxu0 0.0
    %2441 = vmatpush2.msra.mxu0 0.0
    %2442 = vmatprep.subr.mxu0 0.0
    %2443 = vmatpush2.msra.mxu0 0.0
    %2444 = vmatprep.subr.mxu0 0.0
    %2445 = vmatpush2.msra.mxu0 0.0
    %2446 = vmatprep.subr.mxu0 0.0
    %2447 = vmatpush2.msra.mxu0 0.0
    %2448 = vmatprep.subr.mxu0 0.0
    %2449 = vmatpush2.msra.mxu0 0.0
    %2450 = vmatprep.subr.mxu0 0.0
    %2451 = vmatpush2.msra.mxu0 0.0
    %2452 = vmatprep.mubr.f32.mxu0 0.0
    %2453 = vmatmul.mubr.f32.gmra.mxu0 %v2386
    %v2454 = vpop.f32.mrf.mxu0
    %v2455 = vadd.f32 %v2383, %v2454
    %v2456 = vpop.f32.mrf.mxu0
    %2457 = vdwg.mxu0
    %v2458 = vxor.u32 %v2455, 2147483648
    %v2459 = vmul.f32 %v2458, 1.442695
    %v2460 = vpow.pop %v2459
    %v2461 = vadd.f32 %v2460, 1.0
    %v2462 = vrcp.pop %v2461
    %v2463 = vmul.f32 1.0, %v2462
    %v2464 = vtanh.pop %v2455
    %v2465 = vmul.f32 %v2463, %v2164
    %2467 = vrot.lane.b32.xlu0 %v2464, 64
    %v2468 = vpop.permute.xlu0 %2467
    %v2470 = vmul.f32 %v2463, %v2468
    %2472 = vrot.lane.b32.xlu0 %v2470, 32
    %v2473 = vpop.permute.xlu0 %2472
    %v2475 = vadd.f32 %v2465, %v2473
    %v2476 = vtanh.pop %v2475
    %2478 = vrot.lane.b32.xlu0 %v2476, 64
    %v2479 = vpop.permute.xlu0 %2478
    %v2481 = vmul.f32 %v2463, %v2479
    %v2482 = vld [vmem:[%s8] sm:$0xff]
    %v2483 = vld [vmem:[%s8 + $0x8] sm:$0xff]
    %v2484 = vld [vmem:[%s8 + $0x10] sm:$0xff]
    %v2485 = vld [vmem:[%s8 + $0x18] sm:$0xff]
    %v2486 = vld [vmem:[#allocation7] sm:$0x1]
    %v2488 = vlaneseq
    %v2489 = vshrl.u32 %v2488, 7
    %v2490 = vsub.s32 0, %v2489
    %v2491 = vrot.slane %v2486, %v2490
    %2494 = vrot.lane.b32.xlu0 %v2481, 32
    %v2495 = vpop.permute.xlu0 %2494
    %v2496 = vsel %vm289, %v2495, 0
    %2498 = vmatprep.subr.mxu0 0.0
    %2499 = vmatpush1.msra.mxu0 0.0
    %2500 = vmatprep.subr.mxu0 0.0
    %2501 = vmatpush1.msra.mxu0 0.0
    %2502 = vmatprep.subr.mxu0 0.0
    %2503 = vmatpush1.msra.mxu0 0.0
    %2504 = vmatprep.subr.mxu0 0.0
    %2505 = vmatpush1.msra.mxu0 0.0
    %2506 = vmatprep.subr.mxu0 0.0
    %2507 = vmatpush1.msra.mxu0 0.0
    %2508 = vmatprep.subr.mxu0 0.0
    %2509 = vmatpush1.msra.mxu0 0.0
    %2510 = vmatprep.subr.mxu0 0.0
    %2511 = vmatpush1.msra.mxu0 0.0
    %2512 = vmatprep.subr.mxu0 0.0
    %2513 = vmatpush1.msra.mxu0 0.0
    %2514 = vmatprep.subr.mxu0 0.0
    %2515 = vmatpush1.msra.mxu0 0.0
    %2516 = vmatprep.subr.mxu0 0.0
    %2517 = vmatpush1.msra.mxu0 0.0
    %2518 = vmatprep.subr.mxu0 0.0
    %2519 = vmatpush1.msra.mxu0 0.0
    %2520 = vmatprep.subr.mxu0 0.0
    %2521 = vmatpush1.msra.mxu0 0.0
    %2522 = vmatprep.subr.mxu0 0.0
    %2523 = vmatpush1.msra.mxu0 %v2485
    %2524 = vmatprep.subr.mxu0 0.0
    %2525 = vmatpush1.msra.mxu0 %v2484
    %2526 = vmatprep.subr.mxu0 0.0
    %2527 = vmatpush1.msra.mxu0 %v2483
    %2528 = vmatprep.subr.mxu0 0.0
    %2529 = vmatpush1.msra.mxu0 %v2482
    %2530 = vmatprep.subr.mxu0 0.0
    %2531 = vmatpush2.msra.mxu0 0.0
    %2532 = vmatprep.subr.mxu0 0.0
    %2533 = vmatpush2.msra.mxu0 0.0
    %2534 = vmatprep.subr.mxu0 0.0
    %2535 = vmatpush2.msra.mxu0 0.0
    %2536 = vmatprep.subr.mxu0 0.0
    %2537 = vmatpush2.msra.mxu0 0.0
    %2538 = vmatprep.subr.mxu0 0.0
    %2539 = vmatpush2.msra.mxu0 0.0
    %2540 = vmatprep.subr.mxu0 0.0
    %2541 = vmatpush2.msra.mxu0 0.0
    %2542 = vmatprep.subr.mxu0 0.0
    %2543 = vmatpush2.msra.mxu0 0.0
    %2544 = vmatprep.subr.mxu0 0.0
    %2545 = vmatpush2.msra.mxu0 0.0
    %2546 = vmatprep.subr.mxu0 0.0
    %2547 = vmatpush2.msra.mxu0 0.0
    %2548 = vmatprep.subr.mxu0 0.0
    %2549 = vmatpush2.msra.mxu0 0.0
    %2550 = vmatprep.subr.mxu0 0.0
    %2551 = vmatpush2.msra.mxu0 0.0
    %2552 = vmatprep.subr.mxu0 0.0
    %2553 = vmatpush2.msra.mxu0 0.0
    %2554 = vmatprep.subr.mxu0 0.0
    %2555 = vmatpush2.msra.mxu0 0.0
    %2556 = vmatprep.subr.mxu0 0.0
    %2557 = vmatpush2.msra.mxu0 0.0
    %2558 = vmatprep.subr.mxu0 0.0
    %2559 = vmatpush2.msra.mxu0 0.0
    %2560 = vmatprep.subr.mxu0 0.0
    %2561 = vmatpush2.msra.mxu0 0.0
    %2562 = vmatprep.mubr.f32.mxu0 0.0
    %2563 = vmatmul.mubr.f32.gmra.mxu0 %v2496
    %v2564 = vpop.f32.mrf.mxu0
    %v2565 = vadd.f32 %v2491, %v2564
    %v2566 = vpop.f32.mrf.mxu0
    %2567 = vdwg.mxu0
    %s2568 = scalar_lea.vmem %s10, 48
    %2569 = vst [vmem:[%s2568] sm:$0xff] %v2565
    %v2570 = vld [vmem:[%s4] sm:$0xff]
    %v2571 = vld [vmem:[%s4 + $0x8] sm:$0xff]
    %v2572 = vld [vmem:[%s4 + $0x10] sm:$0xff]
    %v2573 = vld [vmem:[%s4 + $0x18] sm:$0xff]
    %v2574 = vld [vmem:[%s4 + $0x20] sm:$0xff]
    %v2575 = vld [vmem:[%s4 + $0x28] sm:$0xff]
    %v2576 = vld [vmem:[%s4 + $0x30] sm:$0xff]
    %v2577 = vld [vmem:[%s4 + $0x38] sm:$0xff]
    %v2578 = vld [vmem:[#allocation5] sm:$0x1]
    %2580 = vrot.lane.b32.xlu0 %v2364, 32
    %v2581 = vpop.permute.xlu0 %2580
    %2583 = vrot.lane.b32.xlu0 %v2481, 64
    %v2584 = vpop.permute.xlu0 %2583
    %v2586 = vsel %vm289, %v2581, %v2584
    %v2588 = vlaneseq
    %v2589 = vshrl.u32 %v2588, 7
    %v2590 = vsub.s32 0, %v2589
    %v2591 = vrot.slane %v2578, %v2590
    %v2594 = vsel %vm515, %v2586, 0
    %2596 = vmatprep.subr.mxu0 0.0
    %2597 = vmatpush1.msra.mxu0 0.0
    %2598 = vmatprep.subr.mxu0 0.0
    %2599 = vmatpush1.msra.mxu0 0.0
    %2600 = vmatprep.subr.mxu0 0.0
    %2601 = vmatpush1.msra.mxu0 0.0
    %2602 = vmatprep.subr.mxu0 0.0
    %2603 = vmatpush1.msra.mxu0 0.0
    %2604 = vmatprep.subr.mxu0 0.0
    %2605 = vmatpush1.msra.mxu0 0.0
    %2606 = vmatprep.subr.mxu0 0.0
    %2607 = vmatpush1.msra.mxu0 0.0
    %2608 = vmatprep.subr.mxu0 0.0
    %2609 = vmatpush1.msra.mxu0 0.0
    %2610 = vmatprep.subr.mxu0 0.0
    %2611 = vmatpush1.msra.mxu0 0.0
    %2612 = vmatprep.subr.mxu0 0.0
    %2613 = vmatpush1.msra.mxu0 %v2577
    %2614 = vmatprep.subr.mxu0 0.0
    %2615 = vmatpush1.msra.mxu0 %v2576
    %2616 = vmatprep.subr.mxu0 0.0
    %2617 = vmatpush1.msra.mxu0 %v2575
    %2618 = vmatprep.subr.mxu0 0.0
    %2619 = vmatpush1.msra.mxu0 %v2574
    %2620 = vmatprep.subr.mxu0 0.0
    %2621 = vmatpush1.msra.mxu0 %v2573
    %2622 = vmatprep.subr.mxu0 0.0
    %2623 = vmatpush1.msra.mxu0 %v2572
    %2624 = vmatprep.subr.mxu0 0.0
    %2625 = vmatpush1.msra.mxu0 %v2571
    %2626 = vmatprep.subr.mxu0 0.0
    %2627 = vmatpush1.msra.mxu0 %v2570
    %2628 = vmatprep.subr.mxu0 0.0
    %2629 = vmatpush2.msra.mxu0 0.0
    %2630 = vmatprep.subr.mxu0 0.0
    %2631 = vmatpush2.msra.mxu0 0.0
    %2632 = vmatprep.subr.mxu0 0.0
    %2633 = vmatpush2.msra.mxu0 0.0
    %2634 = vmatprep.subr.mxu0 0.0
    %2635 = vmatpush2.msra.mxu0 0.0
    %2636 = vmatprep.subr.mxu0 0.0
    %2637 = vmatpush2.msra.mxu0 0.0
    %2638 = vmatprep.subr.mxu0 0.0
    %2639 = vmatpush2.msra.mxu0 0.0
    %2640 = vmatprep.subr.mxu0 0.0
    %2641 = vmatpush2.msra.mxu0 0.0
    %2642 = vmatprep.subr.mxu0 0.0
    %2643 = vmatpush2.msra.mxu0 0.0
    %2644 = vmatprep.subr.mxu0 0.0
    %2645 = vmatpush2.msra.mxu0 0.0
    %2646 = vmatprep.subr.mxu0 0.0
    %2647 = vmatpush2.msra.mxu0 0.0
    %2648 = vmatprep.subr.mxu0 0.0
    %2649 = vmatpush2.msra.mxu0 0.0
    %2650 = vmatprep.subr.mxu0 0.0
    %2651 = vmatpush2.msra.mxu0 0.0
    %2652 = vmatprep.subr.mxu0 0.0
    %2653 = vmatpush2.msra.mxu0 0.0
    %2654 = vmatprep.subr.mxu0 0.0
    %2655 = vmatpush2.msra.mxu0 0.0
    %2656 = vmatprep.subr.mxu0 0.0
    %2657 = vmatpush2.msra.mxu0 0.0
    %2658 = vmatprep.subr.mxu0 0.0
    %2659 = vmatpush2.msra.mxu0 0.0
    %2660 = vmatprep.mubr.f32.mxu0 0.0
    %2661 = vmatmul.mubr.f32.gmra.mxu0 %v2594
    %v2662 = vpop.f32.mrf.mxu0
    %v2663 = vadd.f32 %v2591, %v2662
    %v2664 = vpop.f32.mrf.mxu0
    %2665 = vdwg.mxu0
    %v2666 = vxor.u32 %v2663, 2147483648
    %v2667 = vmul.f32 %v2666, 1.442695
    %v2668 = vpow.pop %v2667
    %v2669 = vadd.f32 %v2668, 1.0
    %v2670 = vrcp.pop %v2669
    %v2671 = vmul.f32 1.0, %v2670
    %v2672 = vtanh.pop %v2663
    %v2673 = vmul.f32 %v2671, %v2475
    %2675 = vrot.lane.b32.xlu0 %v2672, 64
    %v2676 = vpop.permute.xlu0 %2675
    %v2678 = vmul.f32 %v2671, %v2676
    %2680 = vrot.lane.b32.xlu0 %v2678, 32
    %v2681 = vpop.permute.xlu0 %2680
    %v2683 = vadd.f32 %v2673, %v2681
    %v2684 = vtanh.pop %v2683
    %2686 = vrot.lane.b32.xlu0 %v2684, 64
    %v2687 = vpop.permute.xlu0 %2686
    %v2689 = vmul.f32 %v2671, %v2687
    %v2690 = vld [vmem:[%s8] sm:$0xff]
    %v2691 = vld [vmem:[%s8 + $0x8] sm:$0xff]
    %v2692 = vld [vmem:[%s8 + $0x10] sm:$0xff]
    %v2693 = vld [vmem:[%s8 + $0x18] sm:$0xff]
    %v2694 = vld [vmem:[#allocation7] sm:$0x1]
    %v2696 = vlaneseq
    %v2697 = vshrl.u32 %v2696, 7
    %v2698 = vsub.s32 0, %v2697
    %v2699 = vrot.slane %v2694, %v2698
    %2702 = vrot.lane.b32.xlu0 %v2689, 32
    %v2703 = vpop.permute.xlu0 %2702
    %v2704 = vsel %vm289, %v2703, 0
    %2706 = vmatprep.subr.mxu0 0.0
    %2707 = vmatpush1.msra.mxu0 0.0
    %2708 = vmatprep.subr.mxu0 0.0
    %2709 = vmatpush1.msra.mxu0 0.0
    %2710 = vmatprep.subr.mxu0 0.0
    %2711 = vmatpush1.msra.mxu0 0.0
    %2712 = vmatprep.subr.mxu0 0.0
    %2713 = vmatpush1.msra.mxu0 0.0
    %2714 = vmatprep.subr.mxu0 0.0
    %2715 = vmatpush1.msra.mxu0 0.0
    %2716 = vmatprep.subr.mxu0 0.0
    %2717 = vmatpush1.msra.mxu0 0.0
    %2718 = vmatprep.subr.mxu0 0.0
    %2719 = vmatpush1.msra.mxu0 0.0
    %2720 = vmatprep.subr.mxu0 0.0
    %2721 = vmatpush1.msra.mxu0 0.0
    %2722 = vmatprep.subr.mxu0 0.0
    %2723 = vmatpush1.msra.mxu0 0.0
    %2724 = vmatprep.subr.mxu0 0.0
    %2725 = vmatpush1.msra.mxu0 0.0
    %2726 = vmatprep.subr.mxu0 0.0
    %2727 = vmatpush1.msra.mxu0 0.0
    %2728 = vmatprep.subr.mxu0 0.0
    %2729 = vmatpush1.msra.mxu0 0.0
    %2730 = vmatprep.subr.mxu0 0.0
    %2731 = vmatpush1.msra.mxu0 %v2693
    %2732 = vmatprep.subr.mxu0 0.0
    %2733 = vmatpush1.msra.mxu0 %v2692
    %2734 = vmatprep.subr.mxu0 0.0
    %2735 = vmatpush1.msra.mxu0 %v2691
    %2736 = vmatprep.subr.mxu0 0.0
    %2737 = vmatpush1.msra.mxu0 %v2690
    %2738 = vmatprep.subr.mxu0 0.0
    %2739 = vmatpush2.msra.mxu0 0.0
    %2740 = vmatprep.subr.mxu0 0.0
    %2741 = vmatpush2.msra.mxu0 0.0
    %2742 = vmatprep.subr.mxu0 0.0
    %2743 = vmatpush2.msra.mxu0 0.0
    %2744 = vmatprep.subr.mxu0 0.0
    %2745 = vmatpush2.msra.mxu0 0.0
    %2746 = vmatprep.subr.mxu0 0.0
    %2747 = vmatpush2.msra.mxu0 0.0
    %2748 = vmatprep.subr.mxu0 0.0
    %2749 = vmatpush2.msra.mxu0 0.0
    %2750 = vmatprep.subr.mxu0 0.0
    %2751 = vmatpush2.msra.mxu0 0.0
    %2752 = vmatprep.subr.mxu0 0.0
    %2753 = vmatpush2.msra.mxu0 0.0
    %2754 = vmatprep.subr.mxu0 0.0
    %2755 = vmatpush2.msra.mxu0 0.0
    %2756 = vmatprep.subr.mxu0 0.0
    %2757 = vmatpush2.msra.mxu0 0.0
    %2758 = vmatprep.subr.mxu0 0.0
    %2759 = vmatpush2.msra.mxu0 0.0
    %2760 = vmatprep.subr.mxu0 0.0
    %2761 = vmatpush2.msra.mxu0 0.0
    %2762 = vmatprep.subr.mxu0 0.0
    %2763 = vmatpush2.msra.mxu0 0.0
    %2764 = vmatprep.subr.mxu0 0.0
    %2765 = vmatpush2.msra.mxu0 0.0
    %2766 = vmatprep.subr.mxu0 0.0
    %2767 = vmatpush2.msra.mxu0 0.0
    %2768 = vmatprep.subr.mxu0 0.0
    %2769 = vmatpush2.msra.mxu0 0.0
    %2770 = vmatprep.mubr.f32.mxu0 0.0
    %2771 = vmatmul.mubr.f32.gmra.mxu0 %v2704
    %v2772 = vpop.f32.mrf.mxu0
    %v2773 = vadd.f32 %v2699, %v2772
    %v2774 = vpop.f32.mrf.mxu0
    %2775 = vdwg.mxu0
    %2776 = vst [vmem:[%s10 + $0x38] sm:$0xff] %v2773
    %2777 = vst.msk [vmem:[%s11] sm:$0xff] %vm289, %v2581
    %2779 = vrot.lane.b32.xlu0 %v2358, 96
    %v2780 = vpop.permute.xlu0 %2779
    %2782 = vst.msk [vmem:[%s12] sm:$0xff] %vm289, %v2780
    %s2784 = scalar_lea.vmem %s11, 8
    %2785 = vst.msk [vmem:[%s2784] sm:$0xff] %vm289, %v2703
    %2787 = vrot.lane.b32.xlu0 %v2683, 96
    %v2788 = vpop.permute.xlu0 %2787
    %s2790 = scalar_lea.vmem %s12, 8
    %2791 = vst.msk [vmem:[%s2790] sm:$0xff] %vm289, %v2788
    // Predicated region
    $region54: #{rnn_forward.1} parent=1 // pred_check
      _
    $region55: #{rnn_forward.1} parent=1 // pred_check_branch
      %2793 = sbr.rel (0) target = $region57
    $region56: #{rnn_forward.1} parent=1 // pred_region
      _
    $region57: #{rnn_forward.1} parent=1 // pred_fallthru
      _
    // Predicated region
    $region58: #{rnn_forward.1} parent=1 // pred_check
      _
    $region59: #{rnn_forward.1} parent=1 // pred_check_branch
      %2795 = sbr.rel (0) target = $region61
    $region60: #{rnn_forward.1} parent=1 // pred_region
      _
    $region61: #{rnn_forward.1} parent=1 // pred_fallthru
      _
    // Predicated region
    $region62: #{rnn_forward.1} parent=1 // pred_check
      _
    $region63: #{rnn_forward.1} parent=1 // pred_check_branch
      %2797 = sbr.rel (0) target = $region65
    $region64: #{rnn_forward.1} parent=1 // pred_region
      _
    $region65: #{rnn_forward.1} parent=1 // pred_fallthru
      _
    // Predicated region
    $region66: #{rnn_forward.1} parent=1 // pred_check
      _
    $region67: #{rnn_forward.1} parent=1 // pred_check_branch
      %2799 = sbr.rel (0) target = $region69
    $region68: #{rnn_forward.1} parent=1 // pred_region
      _
    $region69: #{rnn_forward.1} parent=1 // pred_fallthru
      _
    // Predicated region
    $region70: #{rnn_forward.1} parent=1 // pred_check
      _
    $region71: #{rnn_forward.1} parent=1 // pred_check_branch
      %2801 = sbr.rel (0) target = $region73
    $region72: #{rnn_forward.1} parent=1 // pred_region
      _
    $region73: #{rnn_forward.1} parent=1 // pred_fallthru
      _
    // Predicated region
    $region74: #{rnn_forward.1} parent=1 // pred_check
      _
    $region75: #{rnn_forward.1} parent=1 // pred_check_branch
      %2803 = sbr.rel (0) target = $region77
    $region76: #{rnn_forward.1} parent=1 // pred_region
      _
    $region77: #{rnn_forward.1} parent=1 // pred_fallthru
      _
    %2804 = vsyncpa [#allocation4], 1
    %2805 = vsyncpa [#allocation6], 1

</llo_original>
